<compile_context>
chip_gen: v7x
topology: tpu7x:2x2x1
jax: 0.10.0
libtpu: 0.0.40
codegen_flags: <defaults>
</compile_context>

<pallas_src>
import jax
import jax.numpy as jnp
from jax.experimental import pallas as pl
from jax.experimental.pallas import tpu as pltpu

IMG_DIM = 2048                 # img_emb feature dim
HID_DIM = 768                  # BERT hidden size
IN_DIM = IMG_DIM + HID_DIM     # 2816 = fc3 input dim
OUT_DIM = 1000                 # fc3: nn.Linear(2816, 1000)
OUT_PAD = 1024                 # lane-aligned (multiple of 128)


def _device_kind():
    try:
        return jax.devices()[0].device_kind.lower()
    except Exception:
        return ""


_KIND = _device_kind()
_IS_V7X = "7" in _KIND
# v5e/v6e: fewer, bigger grid steps (per-step overhead isn't hidden when
# mem-bound).  v7x: keep 4 tiles so each of the 2 TensorCores gets >=2.
TN = 256 if _IS_V7X else 512
N_TILES = OUT_PAD // TN


def vqa_fc3_kernel(x_ref, w_ref, b_ref, out_ref):
    # One lane-dense output tile: (B_pad, TN) = (B_pad, IN_DIM) @ (IN_DIM, TN) + bias
    tn = out_ref.shape[-1]
    col = pl.multiple_of(pl.program_id(0) * tn, 128)
    acc = jnp.dot(x_ref[...], w_ref[...], preferred_element_type=jnp.float32)
    out_ref[...] = acc + b_ref[:, pl.ds(col, tn)]   # bias resident, aligned slice


def prepare_fc3_params(w_fc3, b_fc3, tn=TN):
    """One-time weight prep (NOT in the per-call hot path).

    w_fc3: (1000, 2816) PyTorch nn.Linear layout; b_fc3: (1000,).
    Returns:
      w_packed: (OUT_PAD//tn, IN_DIM, tn) bfloat16 — tile j is W^T[:, j*tn:(j+1)*tn],
                contiguous in HBM so each streamed tile is a single dense DMA.
      b_packed: (1, OUT_PAD) float32 — zero-padded bias, kept resident in VMEM.
    """
    n_tiles = OUT_PAD // tn
    w_t = jnp.zeros((IN_DIM, OUT_PAD), jnp.float32).at[:, :OUT_DIM].set(
        jnp.asarray(w_fc3, jnp.float32).T)
    w_packed = (w_t.reshape(IN_DIM, n_tiles, tn)
                   .transpose(1, 0, 2)
                   .astype(jnp.bfloat16))
    b_packed = jnp.zeros((1, OUT_PAD), jnp.float32).at[:, :OUT_DIM].set(
        jnp.asarray(b_fc3, jnp.float32).reshape(1, OUT_DIM))
    return w_packed, b_packed


def vqa_forward(img_emb, question_hidden, w_packed, b_packed, *,
                core_parallel=False):
    """img_emb: (B, 2048) f32; question_hidden: (B, S, 768) f32
    (= BERT last_hidden_state); w_packed/b_packed from prepare_fc3_params."""
    B = img_emb.shape[0]
    n_tiles, _, tn = w_packed.shape

    # CLS slice + concat in the wrapper: fc3(cat(img, cls)) needs only (B, 2816).
    cls = question_hidden[:, 0, :]                                  # (B, 768)
    x = jnp.concatenate([img_emb, cls], axis=1).astype(jnp.bfloat16)  # (B, 2816) bf16

    # Pad batch to a multiple of 16 sublanes (bf16 packs 16 rows per vreg).
    b_pad = max(16, ((B + 15) // 16) * 16)
    if b_pad != B:
        x = jnp.pad(x, ((0, b_pad - B), (0, 0)))
    # TODO(synk): if B ever grows large (thousands of rows) add an M-tile grid
    # axis so the resident activation block stays within v7x's 64 MiB VMEM.

    if core_parallel:
        dim_sem = (getattr(pltpu, "CORE_PARALLEL", pltpu.PARALLEL),)
    else:
        dim_sem = (pltpu.PARALLEL,)

    out = pl.pallas_call(
        vqa_fc3_kernel,
        out_shape=jax.ShapeDtypeStruct((b_pad, OUT_PAD), jnp.float32),
        grid=(n_tiles,),
        in_specs=[
            # activation: resident across the whole grid (constant index_map)
            pl.BlockSpec((b_pad, IN_DIM), lambda j: (0, 0)),
            # weight: one contiguous bf16 tile per grid step, leading dim squeezed
            pl.BlockSpec((None, IN_DIM, tn), lambda j: (j, 0, 0)),
            # bias: full (1, OUT_PAD) block, resident (no per-tile DMA)
            pl.BlockSpec((1, OUT_PAD), lambda j: (0, 0)),
        ],
        out_specs=pl.BlockSpec((b_pad, tn), lambda j: (0, j)),
        compiler_params=pltpu.CompilerParams(
            dimension_semantics=dim_sem,
            # double-buffered bf16 weight tiles (<=2.75 MiB each) + small
            # activation/bias/output blocks: ~6 MiB; leave generous headroom.
            vmem_limit_bytes=32 << 20,
        ),
    )(x, w_packed, b_packed)

    return out[:B, :OUT_DIM]


if __name__ == "__main__":
    key = jax.random.PRNGKey(0)
    kimg, kq, kw, kb = jax.random.split(key, 4)

    B, S = 2, 8
    img_emb = jax.random.normal(kimg, (B, IMG_DIM), jnp.float32)

    # TODO(synk): self.bert is an external HuggingFace encoder; its
    # last_hidden_state is synthesized deterministically here instead.
    question_hidden = jax.random.normal(kq, (B, S, HID_DIM), jnp.float32)

    # fc3 parameters in PyTorch nn.Linear layout: weight (out, in), bias (out,).
    bound = 1.0 / float(jnp.sqrt(jnp.float32(IN_DIM)))
    w_fc3 = jax.random.uniform(kw, (OUT_DIM, IN_DIM), jnp.float32, -bound, bound)
    b_fc3 = jax.random.uniform(kb, (OUT_DIM,), jnp.float32, -bound, bound)
    # Note: fc1/fc2 of the PyTorch module are never used in forward(); omitted.
    # TODO(synk): predict=True branch (single sample, concat on dim 0) is the
    # same math with B=1; only the batched (predict=False) path is exercised.

    # One-time parameter prep (done at weight-load time, not per forward call).
    w_packed, b_packed = prepare_fc3_params(w_fc3, b_fc3)

    def _run(core_parallel):
        return jax.block_until_ready(
            vqa_forward(img_emb, question_hidden, w_packed, b_packed,
                        core_parallel=core_parallel))

    if _IS_V7X:
        # Engage v7x's second TensorCore on the N-tile axis; fall back to plain
        # "parallel" semantics if core-level sharding is rejected by this stack.
        try:
            out = _run(True)
        except Exception:
            out = _run(False)
    else:
        out = _run(False)

    # Reference matching the kernel's numerics: bf16 inputs, f32 accumulation.
    x_f32 = jnp.concatenate([img_emb, question_hidden[:, 0, :]], axis=1)
    x_bf = x_f32.astype(jnp.bfloat16).astype(jnp.float32)
    w_bf = w_fc3.astype(jnp.bfloat16).astype(jnp.float32)
    ref_bf = x_bf @ w_bf.T + b_fc3
    # Full-f32 reference of the original module (loose tolerance: bf16 inputs).
    ref_f32 = x_f32 @ w_fc3.T + b_fc3

    assert out.shape == (B, OUT_DIM), out.shape
    assert jnp.allclose(out, ref_bf, atol=1e-3, rtol=1e-3), \
        float(jnp.max(jnp.abs(out - ref_bf)))
    assert jnp.allclose(out, ref_f32, atol=5e-2, rtol=5e-2), \
        float(jnp.max(jnp.abs(out - ref_f32)))
    print("KERNEL_OK")
</pallas_src>

<mosaic_0001>
module attributes {stable_mosaic.version = 11 : i64} {
  func.func @vqa_fc3_kernel(%arg0: i32, %arg1: memref<16x2816xbf16, #tpu.memory_space<vmem>>, %arg2: memref<1x2816x512xbf16, #tpu.memory_space<vmem>>, %arg3: memref<1x1024xf32, #tpu.memory_space<vmem>>, %arg4: memref<16x512xf32, #tpu.memory_space<vmem>>) attributes {dimension_semantics = [#tpu.dimension_semantics<parallel>], iteration_bounds = array<i64: 2>, scalar_prefetch = 0 : i64, scratch_operands = 0 : i64, tpu.core_type = #tpu.core_type<tc>, window_params = [{pipeline_mode = #tpu.pipeline_mode<synchronous>, transform_indices = @transform_0, window_bounds = array<i64: 16, 2816>}, {transform_indices = @transform_1, window_bounds = array<i64: 1, 2816, 512>}, {pipeline_mode = #tpu.pipeline_mode<synchronous>, transform_indices = @transform_2, window_bounds = array<i64: 1, 1024>}, {transform_indices = @transform_3, window_bounds = array<i64: 16, 512>}]} {
    %c512_i32 = arith.constant 512 : i32
    %0 = arith.muli %arg0, %c512_i32 : i32
    %1 = tpu.assume_multiple %0, 128 : i32
    %c0 = arith.constant 0 : index
    %c0_0 = arith.constant 0 : index
    %2 = vector.load %arg1[%c0, %c0_0] : memref<16x2816xbf16, #tpu.memory_space<vmem>>, vector<16x2816xbf16>
    %c0_1 = arith.constant 0 : index
    %c0_2 = arith.constant 0 : index
    %c0_3 = arith.constant 0 : index
    %3 = vector.load %arg2[%c0_1, %c0_2, %c0_3] : memref<1x2816x512xbf16, #tpu.memory_space<vmem>>, vector<1x2816x512xbf16>
    %4 = vector.shape_cast %3 : vector<1x2816x512xbf16> to vector<2816x512xbf16>
    %cst = arith.constant dense<0.000000e+00> : vector<16x512xf32>
    %5 = tpu.matmul %2, %4, %cst {dimension_numbers = #tpu.dot_dimension_numbers<[1], [0], [0], [1], [0, 0, 1, 1], [], []>} : vector<16x2816xbf16>, vector<2816x512xbf16>, vector<16x512xf32> -> vector<16x512xf32>
    %c0_4 = arith.constant 0 : index
    %6 = arith.index_cast %1 : i32 to index
    %7 = vector.load %arg3[%c0_4, %6] : memref<1x1024xf32, #tpu.memory_space<vmem>>, vector<1x512xf32>
    %8 = vector.broadcast %7 : vector<1x512xf32> to vector<16x512xf32>
    %9 = arith.addf %5, %8 : vector<16x512xf32>
    %c0_5 = arith.constant 0 : index
    %c0_6 = arith.constant 0 : index
    %10 = vector.load %arg4[%c0_5, %c0_6] : memref<16x512xf32, #tpu.memory_space<vmem>>, vector<16x512xf32>
    tpu.vector_store %arg4[%c0_5, %c0_6], %9 {strides = array<i32>} : memref<16x512xf32, #tpu.memory_space<vmem>>, vector<16x512xf32>,
    return
  }
  func.func @transform_0(%arg0: i32) -> (i32, i32) {
    %c0_i32 = arith.constant 0 : i32
    %c0_i32_0 = arith.constant 0 : i32
    %c0_i32_1 = arith.constant 0 : i32
    return %c0_i32, %c0_i32_0 : i32, i32
  }
  func.func @transform_1(%arg0: i32) -> (i32, i32, i32) {
    %c0_i32 = arith.constant 0 : i32
    %c0_i32_0 = arith.constant 0 : i32
    %c0_i32_1 = arith.constant 0 : i32
    return %arg0, %c0_i32, %c0_i32_0 : i32, i32, i32
  }
  func.func @transform_2(%arg0: i32) -> (i32, i32) {
    %c0_i32 = arith.constant 0 : i32
    %c0_i32_0 = arith.constant 0 : i32
    %c0_i32_1 = arith.constant 0 : i32
    return %c0_i32, %c0_i32_0 : i32, i32
  }
  func.func @transform_3(%arg0: i32) -> (i32, i32) {
    %c0_i32 = arith.constant 0 : i32
    %c0_i32_0 = arith.constant 0 : i32
    return %c0_i32, %arg0 : i32, i32
  }
}

</mosaic_0001>

<llo_original>
// kernel: tpu_custom_call.1
$region0: #{tpu_custom_call.1}
  #allocation0 [shape = 'u32[]', space=smem, size = 0x4, offset = 0x4, fixed_abs, tag = 'smem constant byte address 0x4 - core index']
  #allocation1 [shape = 'u32[144,128]{1,0:T(1,128)}', space=vmem, size = 0x12000, scoped, tag = 'internal scratch']
  %s0 = inlined_call_operand.hbm [shape: bf16[16,2816], index: 0, kind: input, shape index: {}]
  %s1 = inlined_call_operand.hbm [shape: bf16[2,2816,512], index: 1, kind: input, shape index: {}]
  %s2 = inlined_call_operand.hbm [shape: f32[1,1024], index: 2, kind: input, shape index: {}]
  %s3 = inlined_call_operand.hbm [shape: f32[16,1024], index: 3, kind: output, shape index: {}]
  %s4 = sld [smem:[#allocation0]]
  $region57: #{tpu_custom_call.1} parent=0
    _
  %s6 = ssub.s32 1, %s4
  %s7 = scalar_select 0, %s6, %s4
  $region1: #{tpu_custom_call.1} parent=0
    #allocation2 [shape = 'u8[90112]{0}', space=vmem, size = 0x16000, scoped, tag = 'input window, operand 0, single buffered']
    #allocation3 [shape = 's32[2]{0}', space=sflag, size = 0x8, scoped, tag = 'scoped memory for tpu_custom_call.1']
    #allocation4 [shape = 's32[2]{0}', space=sflag, size = 0x8, scoped, tag = 'scoped memory for tpu_custom_call.1']
    #allocation5 [shape = 'u8[5767168]{0}', space=vmem, size = 0x580000, scoped, tag = 'input window, operand 1']
    #allocation6 [shape = 's32[2]{0}', space=sflag, size = 0x8, scoped, tag = 'scoped memory for tpu_custom_call.1']
    #allocation7 [shape = 'u8[4096]{0}', space=vmem, size = 0x1000, scoped, tag = 'input window, operand 2, single buffered']
    #allocation8 [shape = 'u8[65536]{0}', space=vmem, size = 0x10000, scoped, tag = 'output window, operand 0']
    %8 = vsyncpa [#allocation3], 0
    %9 = vsyncpa [#allocation6], 0
    %s10 = scalar_lea.sflag [#allocation6], 1
    %11 = vsyncpa %s10, 0
    %12 = vsyncpa [#allocation4], 0
    %s13 = scalar_lea.sflag [#allocation4], 1
    %14 = vsyncpa %s13, 0
    loop: start=0, step=1, limit=4
    $region2: #{tpu_custom_call.1} parent=1 // loop_pre_header
      _
    $region3: #{tpu_custom_call.1} parent=1 // loop_header
      %s16 = sphi 0, %s20
      %p17 = scmp.ge.s32.totalorder %s16, 4
      %s24 = sphi 0, %s24
      %s26 = sphi 0, %s24
      %s27 = sphi 0, %s26
      %s41 = sphi 0, %s27
      %s47 = sphi 0, %s49
      %s50 = sphi 0, %s47
      %s51 = sphi 0, %s50
      %s67 = sphi 0, %s51
      %s71 = sphi 0, %s71
      %s73 = sphi 0, %s71
      %s74 = sphi 0, %s73
      %s88 = sphi 0, %s74
      %s94 = sphi 0, %s96
      %s97 = sphi 0, %s94
      %s98 = sphi 0, %s97
      %s114 = sphi 0, %s98
    $region4: #{tpu_custom_call.1} parent=1 // loop_header_branch
      %19 = sbr.rel (%p17) target = $region8
    $region5: #{tpu_custom_call.1} parent=1 // loop_body
      %s21 = ssub.s32 %s16, 1
      %s22 = ssub.s32 %s16, 2
      %s23 = sadd.s32 %s16, 1
      %s25 = sadd.s32 %s24, 1
      %p28 = scmp.eq.s32.totalorder %s16, 1
      %p29 = scmp.ne.s32.totalorder %s24, %s26
      %p30 = scmp.eq.s32.totalorder %s16, 0
      %p31 = por %p29, %p30
      %p32 = scmp.ne.s32.totalorder %s24, %s26
      %p33 = scmp.eq.s32.totalorder %s21, 1
      %p34 = por %p32, %p33
      %p35 = scmp.ne.s32.totalorder %s26, %s27
      %p36 = scmp.eq.s32.totalorder %s21, 0
      %p37 = por %p35, %p36
      %p38 = scmp.ne.s32.totalorder %s26, %s27
      %p39 = scmp.eq.s32.totalorder %s22, 1
      %p40 = por %p38, %p39
      %p42 = scmp.ne.s32.totalorder %s27, %s41
      %p43 = scmp.eq.s32.totalorder %s22, 0
      %p44 = por %p42, %p43
      %s45 = ssub.s32 %s16, %s23
      %p46 = scmp.eq.s32.totalorder %s45, 0
      %s48 = sadd.s32 %s47, 1
      %s49 = scalar_select %p46, %s47, %s48
      %p52 = pneg %p46
      %p53 = scmp.eq.s32.totalorder %s16, 1
      %p54 = por %p52, %p53
      %p55 = scmp.ne.s32.totalorder %s47, %s50
      %p56 = scmp.eq.s32.totalorder %s16, 0
      %p57 = por %p55, %p56
      %p58 = scmp.ne.s32.totalorder %s47, %s50
      %p59 = scmp.eq.s32.totalorder %s21, 1
      %p60 = por %p58, %p59
      %p61 = scmp.ne.s32.totalorder %s50, %s51
      %p62 = scmp.eq.s32.totalorder %s21, 0
      %p63 = por %p61, %p62
      %p64 = scmp.ne.s32.totalorder %s50, %s51
      %p65 = scmp.eq.s32.totalorder %s22, 1
      %p66 = por %p64, %p65
      %p68 = scmp.ne.s32.totalorder %s51, %s67
      %p69 = scmp.eq.s32.totalorder %s22, 0
      %p70 = por %p68, %p69
      %s72 = sadd.s32 %s71, 1
      %p75 = scmp.eq.s32.totalorder %s16, 1
      %p76 = scmp.ne.s32.totalorder %s71, %s73
      %p77 = scmp.eq.s32.totalorder %s16, 0
      %p78 = por %p76, %p77
      %p79 = scmp.ne.s32.totalorder %s71, %s73
      %p80 = scmp.eq.s32.totalorder %s21, 1
      %p81 = por %p79, %p80
      %p82 = scmp.ne.s32.totalorder %s73, %s74
      %p83 = scmp.eq.s32.totalorder %s21, 0
      %p84 = por %p82, %p83
      %p85 = scmp.ne.s32.totalorder %s73, %s74
      %p86 = scmp.eq.s32.totalorder %s22, 1
      %p87 = por %p85, %p86
      %p89 = scmp.ne.s32.totalorder %s74, %s88
      %p90 = scmp.eq.s32.totalorder %s22, 0
      %p91 = por %p89, %p90
      %s92 = ssub.s32 %s16, %s23
      %p93 = scmp.eq.s32.totalorder %s92, 0
      %s95 = sadd.s32 %s94, 1
      %s96 = scalar_select %p93, %s94, %s95
      %p99 = pneg %p93
      %p100 = scmp.eq.s32.totalorder %s16, 1
      %p101 = por %p99, %p100
      %p102 = scmp.ne.s32.totalorder %s94, %s97
      %p103 = scmp.eq.s32.totalorder %s16, 0
      %p104 = por %p102, %p103
      %p105 = scmp.ne.s32.totalorder %s94, %s97
      %p106 = scmp.eq.s32.totalorder %s21, 1
      %p107 = por %p105, %p106
      %p108 = scmp.ne.s32.totalorder %s97, %s98
      %p109 = scmp.eq.s32.totalorder %s21, 0
      %p110 = por %p108, %p109
      %p111 = scmp.ne.s32.totalorder %s97, %s98
      %p112 = scmp.eq.s32.totalorder %s22, 1
      %p113 = por %p111, %p112
      %p115 = scmp.ne.s32.totalorder %s98, %s114
      %p116 = scmp.eq.s32.totalorder %s22, 0
      %p117 = por %p115, %p116
      %p118 = scmp.le.s32.totalorder 1, %s16
      %p119 = scmp.lt.s32.totalorder %s16, 3
      %p120 = pnand %p118, %p119
      %p121 = pneg %p120
      // Predicated region
      $region9: #{tpu_custom_call.1} parent=5 // pred_check
        _
      $region10: #{tpu_custom_call.1} parent=5 // pred_check_branch
        %123 = sbr.rel (%p120) target = $region12
      $region11: #{tpu_custom_call.1} parent=5 // pred_region
        %s124 = ssub.s32 %s16, 1
        // Predicated region
        $region13: #{tpu_custom_call.1} parent=11 // pred_check
          %p125 = pneg %p37
        $region14: #{tpu_custom_call.1} parent=11 // pred_check_branch
          %127 = sbr.rel (%p125) target = $region16
        $region15: #{tpu_custom_call.1} parent=11 // pred_region
          %s129 = ssub.s32 2816, 2816
          %130 = vsyncadd [#allocation3], %s129
          %s131 = sshll.u32 [#allocation2], 4
          %s132 = int_to_ptr.vmem [resolvable:$true] %s131
          %137 = dma.hbm_to_vmem [thread:$0]  %s0, 2816, %s132, [#allocation3], 1408, 1408, 88
        $region16: #{tpu_custom_call.1} parent=11 // pred_fallthru
          _
        // Predicated region
        $region17: #{tpu_custom_call.1} parent=11 // pred_check
          %p138 = pneg %p84
        $region18: #{tpu_custom_call.1} parent=11 // pred_check_branch
          %140 = sbr.rel (%p138) target = $region20
        $region19: #{tpu_custom_call.1} parent=11 // pred_region
          %s142 = ssub.s32 128, 128
          %143 = vsyncadd [#allocation6], %s142
          %s145 = sshll.u32 [#allocation7], 4
          %s146 = int_to_ptr.vmem [resolvable:$true] %s145
          %148 = dma.hbm_to_vmem [thread:$0]  %s2, 128, %s146, [#allocation6]
        $region20: #{tpu_custom_call.1} parent=11 // pred_fallthru
          _
      $region12: #{tpu_custom_call.1} parent=5 // pred_fallthru
        _
      %p149 = scmp.lt.s32.totalorder %s16, 2
      // Predicated region
      $region21: #{tpu_custom_call.1} parent=5 // pred_check
        %p150 = pneg %p149
      $region22: #{tpu_custom_call.1} parent=5 // pred_check_branch
        %152 = sbr.rel (%p150) target = $region24
      $region23: #{tpu_custom_call.1} parent=5 // pred_region
        // Predicated region
        $region25: #{tpu_custom_call.1} parent=23 // pred_check
          %p153 = pneg %p57
        $region26: #{tpu_custom_call.1} parent=23 // pred_check_branch
          %155 = sbr.rel (%p153) target = $region28
        $region27: #{tpu_custom_call.1} parent=23 // pred_region
          %s156 = sand.u32 %s16, 1
          %s157 = scalar_lea.sflag [#allocation6], %s156
          %s158 = sand.u32 %s47, 1
          %s159 = smul.addr %s158, 5632
          %s160 = scalar_lea.vmem [#allocation5], %s159
          %s162 = ssub.s32 90112, 90112
          %163 = vsyncadd %s157, %s162
          %s164 = smul.addr %s16, 1408
          %s165 = smul.addr %s164, 64
          %s166 = scalar_lea.hbm %s1, %s165
          %s167 = sshll.u32 %s160, 4
          %s168 = int_to_ptr.vmem [resolvable:$true] %s167
          %173 = dma.hbm_to_vmem [thread:$0]  %s166, 90112, %s168, %s157, 256, 256, 16
        $region28: #{tpu_custom_call.1} parent=23 // pred_fallthru
          _
      $region24: #{tpu_custom_call.1} parent=5 // pred_fallthru
        _
      %p174 = scmp.le.s32.totalorder 1, %s16
      %p175 = scmp.lt.s32.totalorder %s16, 3
      %p176 = pnand %p174, %p175
      %p177 = pneg %p176
      // Predicated region
      $region29: #{tpu_custom_call.1} parent=5 // pred_check
        _
      $region30: #{tpu_custom_call.1} parent=5 // pred_check_branch
        %179 = sbr.rel (%p176) target = $region32
      $region31: #{tpu_custom_call.1} parent=5 // pred_region
        %s180 = ssub.s32 %s16, 1
        // Predicated region
        $region33: #{tpu_custom_call.1} parent=31 // pred_check
          %p181 = pneg %p37
        $region34: #{tpu_custom_call.1} parent=31 // pred_check_branch
          %183 = sbr.rel (%p181) target = $region36
        $region35: #{tpu_custom_call.1} parent=31 // pred_region
          %184 = dma.done [#allocation3], 2816
        $region36: #{tpu_custom_call.1} parent=31 // pred_fallthru
          _
        %s185 = sand.u32 %s21, 1
        %s186 = scalar_lea.sflag [#allocation6], %s185
        %s187 = sand.u32 %s50, 1
        %s188 = smul.addr %s187, 5632
        %s189 = scalar_lea.vmem [#allocation5], %s188
        // Predicated region
        $region37: #{tpu_custom_call.1} parent=31 // pred_check
          %p190 = pneg %p63
        $region38: #{tpu_custom_call.1} parent=31 // pred_check_branch
          %192 = sbr.rel (%p190) target = $region40
        $region39: #{tpu_custom_call.1} parent=31 // pred_region
          %193 = dma.done %s186, 90112
        $region40: #{tpu_custom_call.1} parent=31 // pred_fallthru
          _
        // Predicated region
        $region41: #{tpu_custom_call.1} parent=31 // pred_check
          %p194 = pneg %p84
        $region42: #{tpu_custom_call.1} parent=31 // pred_check_branch
          %196 = sbr.rel (%p194) target = $region44
        $region43: #{tpu_custom_call.1} parent=31 // pred_region
          %197 = dma.done [#allocation6], 128
        $region44: #{tpu_custom_call.1} parent=31 // pred_fallthru
          _
        %p198 = pneg %p37
        %p199 = pneg %p34
        %s200 = sand.u32 %s21, 1
        %s201 = scalar_lea.sflag [#allocation6], %s200
        %s202 = sand.u32 %s50, 1
        %s203 = smul.addr %s202, 5632
        %s204 = scalar_lea.vmem [#allocation5], %s203
        %p205 = pneg %p63
        %p206 = pneg %p60
        %p207 = pneg %p84
        %p208 = pneg %p81
        %p209 = pneg %p110
        %p210 = pneg %p107
        %s211 = sand.u32 %s97, 1
        %s212 = scalar_lea.sflag [#allocation4], %s211
        %s213 = sand.u32 %s97, 1
        %s214 = smul.addr %s213, 64
        %s215 = scalar_lea.vmem [#allocation8], %s214
        %s216 = smul.u32 4, %s21
        %s217 = smul.u32 %s21, 512
        %v218 = vld [vmem:[#allocation2] sm:$0xff]
        %v219 = vld [vmem:[#allocation2 + $0x8] sm:$0xff]
        %v220 = vld [vmem:[#allocation2 + $0x10] sm:$0xff]
        %v221 = vld [vmem:[#allocation2 + $0x18] sm:$0xff]
        %v222 = vld [vmem:[#allocation2 + $0x20] sm:$0xff]
        %v223 = vld [vmem:[#allocation2 + $0x28] sm:$0xff]
        %v224 = vld [vmem:[#allocation2 + $0x30] sm:$0xff]
        %v225 = vld [vmem:[#allocation2 + $0x38] sm:$0xff]
        %v226 = vld [vmem:[#allocation2 + $0x40] sm:$0xff]
        %v227 = vld [vmem:[#allocation2 + $0x48] sm:$0xff]
        %v228 = vld [vmem:[#allocation2 + $0x50] sm:$0xff]
        %v229 = vld [vmem:[#allocation2 + $0x58] sm:$0xff]
        %v230 = vld [vmem:[#allocation2 + $0x60] sm:$0xff]
        %v231 = vld [vmem:[#allocation2 + $0x68] sm:$0xff]
        %v232 = vld [vmem:[#allocation2 + $0x70] sm:$0xff]
        %v233 = vld [vmem:[#allocation2 + $0x78] sm:$0xff]
        %v234 = vld [vmem:[#allocation2 + $0x80] sm:$0xff]
        %v235 = vld [vmem:[#allocation2 + $0x88] sm:$0xff]
        %v236 = vld [vmem:[#allocation2 + $0x90] sm:$0xff]
        %v237 = vld [vmem:[#allocation2 + $0x98] sm:$0xff]
        %v238 = vld [vmem:[#allocation2 + $0xa0] sm:$0xff]
        %v239 = vld [vmem:[#allocation2 + $0xa8] sm:$0xff]
        %v240 = vld [vmem:[%s189] sm:$0xff]
        %v241 = vld [vmem:[%s189 + $0x8] sm:$0xff]
        %v242 = vld [vmem:[%s189 + $0x10] sm:$0xff]
        %v243 = vld [vmem:[%s189 + $0x18] sm:$0xff]
        %v244 = vld [vmem:[%s189 + $0x20] sm:$0xff]
        %v245 = vld [vmem:[%s189 + $0x28] sm:$0xff]
        %v246 = vld [vmem:[%s189 + $0x30] sm:$0xff]
        %v247 = vld [vmem:[%s189 + $0x38] sm:$0xff]
        %v248 = vld [vmem:[%s189 + $0x40] sm:$0xff]
        %v249 = vld [vmem:[%s189 + $0x48] sm:$0xff]
        %v250 = vld [vmem:[%s189 + $0x50] sm:$0xff]
        %v251 = vld [vmem:[%s189 + $0x58] sm:$0xff]
        %v252 = vld [vmem:[%s189 + $0x60] sm:$0xff]
        %v253 = vld [vmem:[%s189 + $0x68] sm:$0xff]
        %v254 = vld [vmem:[%s189 + $0x70] sm:$0xff]
        %v255 = vld [vmem:[%s189 + $0x78] sm:$0xff]
        %v256 = vld [vmem:[%s189 + $0x80] sm:$0xff]
        %v257 = vld [vmem:[%s189 + $0x88] sm:$0xff]
        %v258 = vld [vmem:[%s189 + $0x90] sm:$0xff]
        %v259 = vld [vmem:[%s189 + $0x98] sm:$0xff]
        %v260 = vld [vmem:[%s189 + $0xa0] sm:$0xff]
        %v261 = vld [vmem:[%s189 + $0xa8] sm:$0xff]
        %v262 = vld [vmem:[%s189 + $0xb0] sm:$0xff]
        %v263 = vld [vmem:[%s189 + $0xb8] sm:$0xff]
        %v264 = vld [vmem:[%s189 + $0xc0] sm:$0xff]
        %v265 = vld [vmem:[%s189 + $0xc8] sm:$0xff]
        %v266 = vld [vmem:[%s189 + $0xd0] sm:$0xff]
        %v267 = vld [vmem:[%s189 + $0xd8] sm:$0xff]
        %v268 = vld [vmem:[%s189 + $0xe0] sm:$0xff]
        %v269 = vld [vmem:[%s189 + $0xe8] sm:$0xff]
        %v270 = vld [vmem:[%s189 + $0xf0] sm:$0xff]
        %v271 = vld [vmem:[%s189 + $0xf8] sm:$0xff]
        %v272 = vld [vmem:[%s189 + $0x100] sm:$0xff]
        %v273 = vld [vmem:[%s189 + $0x108] sm:$0xff]
        %v274 = vld [vmem:[%s189 + $0x110] sm:$0xff]
        %v275 = vld [vmem:[%s189 + $0x118] sm:$0xff]
        %v276 = vld [vmem:[%s189 + $0x120] sm:$0xff]
        %v277 = vld [vmem:[%s189 + $0x128] sm:$0xff]
        %v278 = vld [vmem:[%s189 + $0x130] sm:$0xff]
        %v279 = vld [vmem:[%s189 + $0x138] sm:$0xff]
        %v280 = vld [vmem:[%s189 + $0x140] sm:$0xff]
        %v281 = vld [vmem:[%s189 + $0x148] sm:$0xff]
        %v282 = vld [vmem:[%s189 + $0x150] sm:$0xff]
        %v283 = vld [vmem:[%s189 + $0x158] sm:$0xff]
        %v284 = vld [vmem:[%s189 + $0x160] sm:$0xff]
        %v285 = vld [vmem:[%s189 + $0x168] sm:$0xff]
        %v286 = vld [vmem:[%s189 + $0x170] sm:$0xff]
        %v287 = vld [vmem:[%s189 + $0x178] sm:$0xff]
        %v288 = vld [vmem:[%s189 + $0x180] sm:$0xff]
        %v289 = vld [vmem:[%s189 + $0x188] sm:$0xff]
        %v290 = vld [vmem:[%s189 + $0x190] sm:$0xff]
        %v291 = vld [vmem:[%s189 + $0x198] sm:$0xff]
        %v292 = vld [vmem:[%s189 + $0x1a0] sm:$0xff]
        %v293 = vld [vmem:[%s189 + $0x1a8] sm:$0xff]
        %v294 = vld [vmem:[%s189 + $0x1b0] sm:$0xff]
        %v295 = vld [vmem:[%s189 + $0x1b8] sm:$0xff]
        %v296 = vld [vmem:[%s189 + $0x1c0] sm:$0xff]
        %v297 = vld [vmem:[%s189 + $0x1c8] sm:$0xff]
        %v298 = vld [vmem:[%s189 + $0x1d0] sm:$0xff]
        %v299 = vld [vmem:[%s189 + $0x1d8] sm:$0xff]
        %v300 = vld [vmem:[%s189 + $0x1e0] sm:$0xff]
        %v301 = vld [vmem:[%s189 + $0x1e8] sm:$0xff]
        %v302 = vld [vmem:[%s189 + $0x1f0] sm:$0xff]
        %v303 = vld [vmem:[%s189 + $0x1f8] sm:$0xff]
        %v304 = vld [vmem:[%s189 + $0x200] sm:$0xff]
        %v305 = vld [vmem:[%s189 + $0x208] sm:$0xff]
        %v306 = vld [vmem:[%s189 + $0x210] sm:$0xff]
        %v307 = vld [vmem:[%s189 + $0x218] sm:$0xff]
        %v308 = vld [vmem:[%s189 + $0x220] sm:$0xff]
        %v309 = vld [vmem:[%s189 + $0x228] sm:$0xff]
        %v310 = vld [vmem:[%s189 + $0x230] sm:$0xff]
        %v311 = vld [vmem:[%s189 + $0x238] sm:$0xff]
        %v312 = vld [vmem:[%s189 + $0x240] sm:$0xff]
        %v313 = vld [vmem:[%s189 + $0x248] sm:$0xff]
        %v314 = vld [vmem:[%s189 + $0x250] sm:$0xff]
        %v315 = vld [vmem:[%s189 + $0x258] sm:$0xff]
        %v316 = vld [vmem:[%s189 + $0x260] sm:$0xff]
        %v317 = vld [vmem:[%s189 + $0x268] sm:$0xff]
        %v318 = vld [vmem:[%s189 + $0x270] sm:$0xff]
        %v319 = vld [vmem:[%s189 + $0x278] sm:$0xff]
        %v320 = vld [vmem:[%s189 + $0x280] sm:$0xff]
        %v321 = vld [vmem:[%s189 + $0x288] sm:$0xff]
        %v322 = vld [vmem:[%s189 + $0x290] sm:$0xff]
        %v323 = vld [vmem:[%s189 + $0x298] sm:$0xff]
        %v324 = vld [vmem:[%s189 + $0x2a0] sm:$0xff]
        %v325 = vld [vmem:[%s189 + $0x2a8] sm:$0xff]
        %v326 = vld [vmem:[%s189 + $0x2b0] sm:$0xff]
        %v327 = vld [vmem:[%s189 + $0x2b8] sm:$0xff]
        %v328 = vld [vmem:[%s189 + $0x2c0] sm:$0xff]
        %v329 = vld [vmem:[%s189 + $0x2c8] sm:$0xff]
        %v330 = vld [vmem:[%s189 + $0x2d0] sm:$0xff]
        %v331 = vld [vmem:[%s189 + $0x2d8] sm:$0xff]
        %v332 = vld [vmem:[%s189 + $0x2e0] sm:$0xff]
        %v333 = vld [vmem:[%s189 + $0x2e8] sm:$0xff]
        %v334 = vld [vmem:[%s189 + $0x2f0] sm:$0xff]
        %v335 = vld [vmem:[%s189 + $0x2f8] sm:$0xff]
        %v336 = vld [vmem:[%s189 + $0x300] sm:$0xff]
        %v337 = vld [vmem:[%s189 + $0x308] sm:$0xff]
        %v338 = vld [vmem:[%s189 + $0x310] sm:$0xff]
        %v339 = vld [vmem:[%s189 + $0x318] sm:$0xff]
        %v340 = vld [vmem:[%s189 + $0x320] sm:$0xff]
        %v341 = vld [vmem:[%s189 + $0x328] sm:$0xff]
        %v342 = vld [vmem:[%s189 + $0x330] sm:$0xff]
        %v343 = vld [vmem:[%s189 + $0x338] sm:$0xff]
        %v344 = vld [vmem:[%s189 + $0x340] sm:$0xff]
        %v345 = vld [vmem:[%s189 + $0x348] sm:$0xff]
        %v346 = vld [vmem:[%s189 + $0x350] sm:$0xff]
        %v347 = vld [vmem:[%s189 + $0x358] sm:$0xff]
        %v348 = vld [vmem:[%s189 + $0x360] sm:$0xff]
        %v349 = vld [vmem:[%s189 + $0x368] sm:$0xff]
        %v350 = vld [vmem:[%s189 + $0x370] sm:$0xff]
        %v351 = vld [vmem:[%s189 + $0x378] sm:$0xff]
        %v352 = vld [vmem:[%s189 + $0x380] sm:$0xff]
        %v353 = vld [vmem:[%s189 + $0x388] sm:$0xff]
        %v354 = vld [vmem:[%s189 + $0x390] sm:$0xff]
        %v355 = vld [vmem:[%s189 + $0x398] sm:$0xff]
        %v356 = vld [vmem:[%s189 + $0x3a0] sm:$0xff]
        %v357 = vld [vmem:[%s189 + $0x3a8] sm:$0xff]
        %v358 = vld [vmem:[%s189 + $0x3b0] sm:$0xff]
        %v359 = vld [vmem:[%s189 + $0x3b8] sm:$0xff]
        %v360 = vld [vmem:[%s189 + $0x3c0] sm:$0xff]
        %v361 = vld [vmem:[%s189 + $0x3c8] sm:$0xff]
        %v362 = vld [vmem:[%s189 + $0x3d0] sm:$0xff]
        %v363 = vld [vmem:[%s189 + $0x3d8] sm:$0xff]
        %v364 = vld [vmem:[%s189 + $0x3e0] sm:$0xff]
        %v365 = vld [vmem:[%s189 + $0x3e8] sm:$0xff]
        %v366 = vld [vmem:[%s189 + $0x3f0] sm:$0xff]
        %v367 = vld [vmem:[%s189 + $0x3f8] sm:$0xff]
        %v368 = vld [vmem:[%s189 + $0x400] sm:$0xff]
        %v369 = vld [vmem:[%s189 + $0x408] sm:$0xff]
        %v370 = vld [vmem:[%s189 + $0x410] sm:$0xff]
        %v371 = vld [vmem:[%s189 + $0x418] sm:$0xff]
        %v372 = vld [vmem:[%s189 + $0x420] sm:$0xff]
        %v373 = vld [vmem:[%s189 + $0x428] sm:$0xff]
        %v374 = vld [vmem:[%s189 + $0x430] sm:$0xff]
        %v375 = vld [vmem:[%s189 + $0x438] sm:$0xff]
        %v376 = vld [vmem:[%s189 + $0x440] sm:$0xff]
        %v377 = vld [vmem:[%s189 + $0x448] sm:$0xff]
        %v378 = vld [vmem:[%s189 + $0x450] sm:$0xff]
        %v379 = vld [vmem:[%s189 + $0x458] sm:$0xff]
        %v380 = vld [vmem:[%s189 + $0x460] sm:$0xff]
        %v381 = vld [vmem:[%s189 + $0x468] sm:$0xff]
        %v382 = vld [vmem:[%s189 + $0x470] sm:$0xff]
        %v383 = vld [vmem:[%s189 + $0x478] sm:$0xff]
        %v384 = vld [vmem:[%s189 + $0x480] sm:$0xff]
        %v385 = vld [vmem:[%s189 + $0x488] sm:$0xff]
        %v386 = vld [vmem:[%s189 + $0x490] sm:$0xff]
        %v387 = vld [vmem:[%s189 + $0x498] sm:$0xff]
        %v388 = vld [vmem:[%s189 + $0x4a0] sm:$0xff]
        %v389 = vld [vmem:[%s189 + $0x4a8] sm:$0xff]
        %v390 = vld [vmem:[%s189 + $0x4b0] sm:$0xff]
        %v391 = vld [vmem:[%s189 + $0x4b8] sm:$0xff]
        %v392 = vld [vmem:[%s189 + $0x4c0] sm:$0xff]
        %v393 = vld [vmem:[%s189 + $0x4c8] sm:$0xff]
        %v394 = vld [vmem:[%s189 + $0x4d0] sm:$0xff]
        %v395 = vld [vmem:[%s189 + $0x4d8] sm:$0xff]
        %v396 = vld [vmem:[%s189 + $0x4e0] sm:$0xff]
        %v397 = vld [vmem:[%s189 + $0x4e8] sm:$0xff]
        %v398 = vld [vmem:[%s189 + $0x4f0] sm:$0xff]
        %v399 = vld [vmem:[%s189 + $0x4f8] sm:$0xff]
        %v400 = vld [vmem:[%s189 + $0x500] sm:$0xff]
        %v401 = vld [vmem:[%s189 + $0x508] sm:$0xff]
        %v402 = vld [vmem:[%s189 + $0x510] sm:$0xff]
        %v403 = vld [vmem:[%s189 + $0x518] sm:$0xff]
        %v404 = vld [vmem:[%s189 + $0x520] sm:$0xff]
        %v405 = vld [vmem:[%s189 + $0x528] sm:$0xff]
        %v406 = vld [vmem:[%s189 + $0x530] sm:$0xff]
        %v407 = vld [vmem:[%s189 + $0x538] sm:$0xff]
        %v408 = vld [vmem:[%s189 + $0x540] sm:$0xff]
        %v409 = vld [vmem:[%s189 + $0x548] sm:$0xff]
        %v410 = vld [vmem:[%s189 + $0x550] sm:$0xff]
        %v411 = vld [vmem:[%s189 + $0x558] sm:$0xff]
        %v412 = vld [vmem:[%s189 + $0x560] sm:$0xff]
        %v413 = vld [vmem:[%s189 + $0x568] sm:$0xff]
        %v414 = vld [vmem:[%s189 + $0x570] sm:$0xff]
        %v415 = vld [vmem:[%s189 + $0x578] sm:$0xff]
        %v416 = vld [vmem:[%s189 + $0x580] sm:$0xff]
        %v417 = vld [vmem:[%s189 + $0x588] sm:$0xff]
        %v418 = vld [vmem:[%s189 + $0x590] sm:$0xff]
        %v419 = vld [vmem:[%s189 + $0x598] sm:$0xff]
        %v420 = vld [vmem:[%s189 + $0x5a0] sm:$0xff]
        %v421 = vld [vmem:[%s189 + $0x5a8] sm:$0xff]
        %v422 = vld [vmem:[%s189 + $0x5b0] sm:$0xff]
        %v423 = vld [vmem:[%s189 + $0x5b8] sm:$0xff]
        %v424 = vld [vmem:[%s189 + $0x5c0] sm:$0xff]
        %v425 = vld [vmem:[%s189 + $0x5c8] sm:$0xff]
        %v426 = vld [vmem:[%s189 + $0x5d0] sm:$0xff]
        %v427 = vld [vmem:[%s189 + $0x5d8] sm:$0xff]
        %v428 = vld [vmem:[%s189 + $0x5e0] sm:$0xff]
        %v429 = vld [vmem:[%s189 + $0x5e8] sm:$0xff]
        %v430 = vld [vmem:[%s189 + $0x5f0] sm:$0xff]
        %v431 = vld [vmem:[%s189 + $0x5f8] sm:$0xff]
        %v432 = vld [vmem:[%s189 + $0x600] sm:$0xff]
        %v433 = vld [vmem:[%s189 + $0x608] sm:$0xff]
        %v434 = vld [vmem:[%s189 + $0x610] sm:$0xff]
        %v435 = vld [vmem:[%s189 + $0x618] sm:$0xff]
        %v436 = vld [vmem:[%s189 + $0x620] sm:$0xff]
        %v437 = vld [vmem:[%s189 + $0x628] sm:$0xff]
        %v438 = vld [vmem:[%s189 + $0x630] sm:$0xff]
        %v439 = vld [vmem:[%s189 + $0x638] sm:$0xff]
        %v440 = vld [vmem:[%s189 + $0x640] sm:$0xff]
        %v441 = vld [vmem:[%s189 + $0x648] sm:$0xff]
        %v442 = vld [vmem:[%s189 + $0x650] sm:$0xff]
        %v443 = vld [vmem:[%s189 + $0x658] sm:$0xff]
        %v444 = vld [vmem:[%s189 + $0x660] sm:$0xff]
        %v445 = vld [vmem:[%s189 + $0x668] sm:$0xff]
        %v446 = vld [vmem:[%s189 + $0x670] sm:$0xff]
        %v447 = vld [vmem:[%s189 + $0x678] sm:$0xff]
        %v448 = vld [vmem:[%s189 + $0x680] sm:$0xff]
        %v449 = vld [vmem:[%s189 + $0x688] sm:$0xff]
        %v450 = vld [vmem:[%s189 + $0x690] sm:$0xff]
        %v451 = vld [vmem:[%s189 + $0x698] sm:$0xff]
        %v452 = vld [vmem:[%s189 + $0x6a0] sm:$0xff]
        %v453 = vld [vmem:[%s189 + $0x6a8] sm:$0xff]
        %v454 = vld [vmem:[%s189 + $0x6b0] sm:$0xff]
        %v455 = vld [vmem:[%s189 + $0x6b8] sm:$0xff]
        %v456 = vld [vmem:[%s189 + $0x6c0] sm:$0xff]
        %v457 = vld [vmem:[%s189 + $0x6c8] sm:$0xff]
        %v458 = vld [vmem:[%s189 + $0x6d0] sm:$0xff]
        %v459 = vld [vmem:[%s189 + $0x6d8] sm:$0xff]
        %v460 = vld [vmem:[%s189 + $0x6e0] sm:$0xff]
        %v461 = vld [vmem:[%s189 + $0x6e8] sm:$0xff]
        %v462 = vld [vmem:[%s189 + $0x6f0] sm:$0xff]
        %v463 = vld [vmem:[%s189 + $0x6f8] sm:$0xff]
        %v464 = vld [vmem:[%s189 + $0x700] sm:$0xff]
        %v465 = vld [vmem:[%s189 + $0x708] sm:$0xff]
        %v466 = vld [vmem:[%s189 + $0x710] sm:$0xff]
        %v467 = vld [vmem:[%s189 + $0x718] sm:$0xff]
        %v468 = vld [vmem:[%s189 + $0x720] sm:$0xff]
        %v469 = vld [vmem:[%s189 + $0x728] sm:$0xff]
        %v470 = vld [vmem:[%s189 + $0x730] sm:$0xff]
        %v471 = vld [vmem:[%s189 + $0x738] sm:$0xff]
        %v472 = vld [vmem:[%s189 + $0x740] sm:$0xff]
        %v473 = vld [vmem:[%s189 + $0x748] sm:$0xff]
        %v474 = vld [vmem:[%s189 + $0x750] sm:$0xff]
        %v475 = vld [vmem:[%s189 + $0x758] sm:$0xff]
        %v476 = vld [vmem:[%s189 + $0x760] sm:$0xff]
        %v477 = vld [vmem:[%s189 + $0x768] sm:$0xff]
        %v478 = vld [vmem:[%s189 + $0x770] sm:$0xff]
        %v479 = vld [vmem:[%s189 + $0x778] sm:$0xff]
        %v480 = vld [vmem:[%s189 + $0x780] sm:$0xff]
        %v481 = vld [vmem:[%s189 + $0x788] sm:$0xff]
        %v482 = vld [vmem:[%s189 + $0x790] sm:$0xff]
        %v483 = vld [vmem:[%s189 + $0x798] sm:$0xff]
        %v484 = vld [vmem:[%s189 + $0x7a0] sm:$0xff]
        %v485 = vld [vmem:[%s189 + $0x7a8] sm:$0xff]
        %v486 = vld [vmem:[%s189 + $0x7b0] sm:$0xff]
        %v487 = vld [vmem:[%s189 + $0x7b8] sm:$0xff]
        %v488 = vld [vmem:[%s189 + $0x7c0] sm:$0xff]
        %v489 = vld [vmem:[%s189 + $0x7c8] sm:$0xff]
        %v490 = vld [vmem:[%s189 + $0x7d0] sm:$0xff]
        %v491 = vld [vmem:[%s189 + $0x7d8] sm:$0xff]
        %v492 = vld [vmem:[%s189 + $0x7e0] sm:$0xff]
        %v493 = vld [vmem:[%s189 + $0x7e8] sm:$0xff]
        %v494 = vld [vmem:[%s189 + $0x7f0] sm:$0xff]
        %v495 = vld [vmem:[%s189 + $0x7f8] sm:$0xff]
        %v496 = vld [vmem:[%s189 + $0x800] sm:$0xff]
        %v497 = vld [vmem:[%s189 + $0x808] sm:$0xff]
        %v498 = vld [vmem:[%s189 + $0x810] sm:$0xff]
        %v499 = vld [vmem:[%s189 + $0x818] sm:$0xff]
        %v500 = vld [vmem:[%s189 + $0x820] sm:$0xff]
        %v501 = vld [vmem:[%s189 + $0x828] sm:$0xff]
        %v502 = vld [vmem:[%s189 + $0x830] sm:$0xff]
        %v503 = vld [vmem:[%s189 + $0x838] sm:$0xff]
        %v504 = vld [vmem:[%s189 + $0x840] sm:$0xff]
        %v505 = vld [vmem:[%s189 + $0x848] sm:$0xff]
        %v506 = vld [vmem:[%s189 + $0x850] sm:$0xff]
        %v507 = vld [vmem:[%s189 + $0x858] sm:$0xff]
        %v508 = vld [vmem:[%s189 + $0x860] sm:$0xff]
        %v509 = vld [vmem:[%s189 + $0x868] sm:$0xff]
        %v510 = vld [vmem:[%s189 + $0x870] sm:$0xff]
        %v511 = vld [vmem:[%s189 + $0x878] sm:$0xff]
        %v512 = vld [vmem:[%s189 + $0x880] sm:$0xff]
        %v513 = vld [vmem:[%s189 + $0x888] sm:$0xff]
        %v514 = vld [vmem:[%s189 + $0x890] sm:$0xff]
        %v515 = vld [vmem:[%s189 + $0x898] sm:$0xff]
        %v516 = vld [vmem:[%s189 + $0x8a0] sm:$0xff]
        %v517 = vld [vmem:[%s189 + $0x8a8] sm:$0xff]
        %v518 = vld [vmem:[%s189 + $0x8b0] sm:$0xff]
        %v519 = vld [vmem:[%s189 + $0x8b8] sm:$0xff]
        %v520 = vld [vmem:[%s189 + $0x8c0] sm:$0xff]
        %v521 = vld [vmem:[%s189 + $0x8c8] sm:$0xff]
        %v522 = vld [vmem:[%s189 + $0x8d0] sm:$0xff]
        %v523 = vld [vmem:[%s189 + $0x8d8] sm:$0xff]
        %v524 = vld [vmem:[%s189 + $0x8e0] sm:$0xff]
        %v525 = vld [vmem:[%s189 + $0x8e8] sm:$0xff]
        %v526 = vld [vmem:[%s189 + $0x8f0] sm:$0xff]
        %v527 = vld [vmem:[%s189 + $0x8f8] sm:$0xff]
        %v528 = vld [vmem:[%s189 + $0x900] sm:$0xff]
        %v529 = vld [vmem:[%s189 + $0x908] sm:$0xff]
        %v530 = vld [vmem:[%s189 + $0x910] sm:$0xff]
        %v531 = vld [vmem:[%s189 + $0x918] sm:$0xff]
        %v532 = vld [vmem:[%s189 + $0x920] sm:$0xff]
        %v533 = vld [vmem:[%s189 + $0x928] sm:$0xff]
        %v534 = vld [vmem:[%s189 + $0x930] sm:$0xff]
        %v535 = vld [vmem:[%s189 + $0x938] sm:$0xff]
        %v536 = vld [vmem:[%s189 + $0x940] sm:$0xff]
        %v537 = vld [vmem:[%s189 + $0x948] sm:$0xff]
        %v538 = vld [vmem:[%s189 + $0x950] sm:$0xff]
        %v539 = vld [vmem:[%s189 + $0x958] sm:$0xff]
        %v540 = vld [vmem:[%s189 + $0x960] sm:$0xff]
        %v541 = vld [vmem:[%s189 + $0x968] sm:$0xff]
        %v542 = vld [vmem:[%s189 + $0x970] sm:$0xff]
        %v543 = vld [vmem:[%s189 + $0x978] sm:$0xff]
        %v544 = vld [vmem:[%s189 + $0x980] sm:$0xff]
        %v545 = vld [vmem:[%s189 + $0x988] sm:$0xff]
        %v546 = vld [vmem:[%s189 + $0x990] sm:$0xff]
        %v547 = vld [vmem:[%s189 + $0x998] sm:$0xff]
        %v548 = vld [vmem:[%s189 + $0x9a0] sm:$0xff]
        %v549 = vld [vmem:[%s189 + $0x9a8] sm:$0xff]
        %v550 = vld [vmem:[%s189 + $0x9b0] sm:$0xff]
        %v551 = vld [vmem:[%s189 + $0x9b8] sm:$0xff]
        %v552 = vld [vmem:[%s189 + $0x9c0] sm:$0xff]
        %v553 = vld [vmem:[%s189 + $0x9c8] sm:$0xff]
        %v554 = vld [vmem:[%s189 + $0x9d0] sm:$0xff]
        %v555 = vld [vmem:[%s189 + $0x9d8] sm:$0xff]
        %v556 = vld [vmem:[%s189 + $0x9e0] sm:$0xff]
        %v557 = vld [vmem:[%s189 + $0x9e8] sm:$0xff]
        %v558 = vld [vmem:[%s189 + $0x9f0] sm:$0xff]
        %v559 = vld [vmem:[%s189 + $0x9f8] sm:$0xff]
        %v560 = vld [vmem:[%s189 + $0xa00] sm:$0xff]
        %v561 = vld [vmem:[%s189 + $0xa08] sm:$0xff]
        %v562 = vld [vmem:[%s189 + $0xa10] sm:$0xff]
        %v563 = vld [vmem:[%s189 + $0xa18] sm:$0xff]
        %v564 = vld [vmem:[%s189 + $0xa20] sm:$0xff]
        %v565 = vld [vmem:[%s189 + $0xa28] sm:$0xff]
        %v566 = vld [vmem:[%s189 + $0xa30] sm:$0xff]
        %v567 = vld [vmem:[%s189 + $0xa38] sm:$0xff]
        %v568 = vld [vmem:[%s189 + $0xa40] sm:$0xff]
        %v569 = vld [vmem:[%s189 + $0xa48] sm:$0xff]
        %v570 = vld [vmem:[%s189 + $0xa50] sm:$0xff]
        %v571 = vld [vmem:[%s189 + $0xa58] sm:$0xff]
        %v572 = vld [vmem:[%s189 + $0xa60] sm:$0xff]
        %v573 = vld [vmem:[%s189 + $0xa68] sm:$0xff]
        %v574 = vld [vmem:[%s189 + $0xa70] sm:$0xff]
        %v575 = vld [vmem:[%s189 + $0xa78] sm:$0xff]
        %v576 = vld [vmem:[%s189 + $0xa80] sm:$0xff]
        %v577 = vld [vmem:[%s189 + $0xa88] sm:$0xff]
        %v578 = vld [vmem:[%s189 + $0xa90] sm:$0xff]
        %v579 = vld [vmem:[%s189 + $0xa98] sm:$0xff]
        %v580 = vld [vmem:[%s189 + $0xaa0] sm:$0xff]
        %v581 = vld [vmem:[%s189 + $0xaa8] sm:$0xff]
        %v582 = vld [vmem:[%s189 + $0xab0] sm:$0xff]
        %v583 = vld [vmem:[%s189 + $0xab8] sm:$0xff]
        %v584 = vld [vmem:[%s189 + $0xac0] sm:$0xff]
        %v585 = vld [vmem:[%s189 + $0xac8] sm:$0xff]
        %v586 = vld [vmem:[%s189 + $0xad0] sm:$0xff]
        %v587 = vld [vmem:[%s189 + $0xad8] sm:$0xff]
        %v588 = vld [vmem:[%s189 + $0xae0] sm:$0xff]
        %v589 = vld [vmem:[%s189 + $0xae8] sm:$0xff]
        %v590 = vld [vmem:[%s189 + $0xaf0] sm:$0xff]
        %v591 = vld [vmem:[%s189 + $0xaf8] sm:$0xff]
        %v592 = vld [vmem:[%s189 + $0xb00] sm:$0xff]
        %v593 = vld [vmem:[%s189 + $0xb08] sm:$0xff]
        %v594 = vld [vmem:[%s189 + $0xb10] sm:$0xff]
        %v595 = vld [vmem:[%s189 + $0xb18] sm:$0xff]
        %v596 = vld [vmem:[%s189 + $0xb20] sm:$0xff]
        %v597 = vld [vmem:[%s189 + $0xb28] sm:$0xff]
        %v598 = vld [vmem:[%s189 + $0xb30] sm:$0xff]
        %v599 = vld [vmem:[%s189 + $0xb38] sm:$0xff]
        %v600 = vld [vmem:[%s189 + $0xb40] sm:$0xff]
        %v601 = vld [vmem:[%s189 + $0xb48] sm:$0xff]
        %v602 = vld [vmem:[%s189 + $0xb50] sm:$0xff]
        %v603 = vld [vmem:[%s189 + $0xb58] sm:$0xff]
        %v604 = vld [vmem:[%s189 + $0xb60] sm:$0xff]
        %v605 = vld [vmem:[%s189 + $0xb68] sm:$0xff]
        %v606 = vld [vmem:[%s189 + $0xb70] sm:$0xff]
        %v607 = vld [vmem:[%s189 + $0xb78] sm:$0xff]
        %v608 = vld [vmem:[%s189 + $0xb80] sm:$0xff]
        %v609 = vld [vmem:[%s189 + $0xb88] sm:$0xff]
        %v610 = vld [vmem:[%s189 + $0xb90] sm:$0xff]
        %v611 = vld [vmem:[%s189 + $0xb98] sm:$0xff]
        %v612 = vld [vmem:[%s189 + $0xba0] sm:$0xff]
        %v613 = vld [vmem:[%s189 + $0xba8] sm:$0xff]
        %v614 = vld [vmem:[%s189 + $0xbb0] sm:$0xff]
        %v615 = vld [vmem:[%s189 + $0xbb8] sm:$0xff]
        %v616 = vld [vmem:[%s189 + $0xbc0] sm:$0xff]
        %v617 = vld [vmem:[%s189 + $0xbc8] sm:$0xff]
        %v618 = vld [vmem:[%s189 + $0xbd0] sm:$0xff]
        %v619 = vld [vmem:[%s189 + $0xbd8] sm:$0xff]
        %v620 = vld [vmem:[%s189 + $0xbe0] sm:$0xff]
        %v621 = vld [vmem:[%s189 + $0xbe8] sm:$0xff]
        %v622 = vld [vmem:[%s189 + $0xbf0] sm:$0xff]
        %v623 = vld [vmem:[%s189 + $0xbf8] sm:$0xff]
        %v624 = vld [vmem:[%s189 + $0xc00] sm:$0xff]
        %v625 = vld [vmem:[%s189 + $0xc08] sm:$0xff]
        %v626 = vld [vmem:[%s189 + $0xc10] sm:$0xff]
        %v627 = vld [vmem:[%s189 + $0xc18] sm:$0xff]
        %v628 = vld [vmem:[%s189 + $0xc20] sm:$0xff]
        %v629 = vld [vmem:[%s189 + $0xc28] sm:$0xff]
        %v630 = vld [vmem:[%s189 + $0xc30] sm:$0xff]
        %v631 = vld [vmem:[%s189 + $0xc38] sm:$0xff]
        %v632 = vld [vmem:[%s189 + $0xc40] sm:$0xff]
        %v633 = vld [vmem:[%s189 + $0xc48] sm:$0xff]
        %v634 = vld [vmem:[%s189 + $0xc50] sm:$0xff]
        %v635 = vld [vmem:[%s189 + $0xc58] sm:$0xff]
        %v636 = vld [vmem:[%s189 + $0xc60] sm:$0xff]
        %v637 = vld [vmem:[%s189 + $0xc68] sm:$0xff]
        %v638 = vld [vmem:[%s189 + $0xc70] sm:$0xff]
        %v639 = vld [vmem:[%s189 + $0xc78] sm:$0xff]
        %v640 = vld [vmem:[%s189 + $0xc80] sm:$0xff]
        %v641 = vld [vmem:[%s189 + $0xc88] sm:$0xff]
        %v642 = vld [vmem:[%s189 + $0xc90] sm:$0xff]
        %v643 = vld [vmem:[%s189 + $0xc98] sm:$0xff]
        %v644 = vld [vmem:[%s189 + $0xca0] sm:$0xff]
        %v645 = vld [vmem:[%s189 + $0xca8] sm:$0xff]
        %v646 = vld [vmem:[%s189 + $0xcb0] sm:$0xff]
        %v647 = vld [vmem:[%s189 + $0xcb8] sm:$0xff]
        %v648 = vld [vmem:[%s189 + $0xcc0] sm:$0xff]
        %v649 = vld [vmem:[%s189 + $0xcc8] sm:$0xff]
        %v650 = vld [vmem:[%s189 + $0xcd0] sm:$0xff]
        %v651 = vld [vmem:[%s189 + $0xcd8] sm:$0xff]
        %v652 = vld [vmem:[%s189 + $0xce0] sm:$0xff]
        %v653 = vld [vmem:[%s189 + $0xce8] sm:$0xff]
        %v654 = vld [vmem:[%s189 + $0xcf0] sm:$0xff]
        %v655 = vld [vmem:[%s189 + $0xcf8] sm:$0xff]
        %v656 = vld [vmem:[%s189 + $0xd00] sm:$0xff]
        %v657 = vld [vmem:[%s189 + $0xd08] sm:$0xff]
        %v658 = vld [vmem:[%s189 + $0xd10] sm:$0xff]
        %v659 = vld [vmem:[%s189 + $0xd18] sm:$0xff]
        %v660 = vld [vmem:[%s189 + $0xd20] sm:$0xff]
        %v661 = vld [vmem:[%s189 + $0xd28] sm:$0xff]
        %v662 = vld [vmem:[%s189 + $0xd30] sm:$0xff]
        %v663 = vld [vmem:[%s189 + $0xd38] sm:$0xff]
        %v664 = vld [vmem:[%s189 + $0xd40] sm:$0xff]
        %v665 = vld [vmem:[%s189 + $0xd48] sm:$0xff]
        %v666 = vld [vmem:[%s189 + $0xd50] sm:$0xff]
        %v667 = vld [vmem:[%s189 + $0xd58] sm:$0xff]
        %v668 = vld [vmem:[%s189 + $0xd60] sm:$0xff]
        %v669 = vld [vmem:[%s189 + $0xd68] sm:$0xff]
        %v670 = vld [vmem:[%s189 + $0xd70] sm:$0xff]
        %v671 = vld [vmem:[%s189 + $0xd78] sm:$0xff]
        %v672 = vld [vmem:[%s189 + $0xd80] sm:$0xff]
        %v673 = vld [vmem:[%s189 + $0xd88] sm:$0xff]
        %v674 = vld [vmem:[%s189 + $0xd90] sm:$0xff]
        %v675 = vld [vmem:[%s189 + $0xd98] sm:$0xff]
        %v676 = vld [vmem:[%s189 + $0xda0] sm:$0xff]
        %v677 = vld [vmem:[%s189 + $0xda8] sm:$0xff]
        %v678 = vld [vmem:[%s189 + $0xdb0] sm:$0xff]
        %v679 = vld [vmem:[%s189 + $0xdb8] sm:$0xff]
        %v680 = vld [vmem:[%s189 + $0xdc0] sm:$0xff]
        %v681 = vld [vmem:[%s189 + $0xdc8] sm:$0xff]
        %v682 = vld [vmem:[%s189 + $0xdd0] sm:$0xff]
        %v683 = vld [vmem:[%s189 + $0xdd8] sm:$0xff]
        %v684 = vld [vmem:[%s189 + $0xde0] sm:$0xff]
        %v685 = vld [vmem:[%s189 + $0xde8] sm:$0xff]
        %v686 = vld [vmem:[%s189 + $0xdf0] sm:$0xff]
        %v687 = vld [vmem:[%s189 + $0xdf8] sm:$0xff]
        %v688 = vld [vmem:[%s189 + $0xe00] sm:$0xff]
        %v689 = vld [vmem:[%s189 + $0xe08] sm:$0xff]
        %v690 = vld [vmem:[%s189 + $0xe10] sm:$0xff]
        %v691 = vld [vmem:[%s189 + $0xe18] sm:$0xff]
        %v692 = vld [vmem:[%s189 + $0xe20] sm:$0xff]
        %v693 = vld [vmem:[%s189 + $0xe28] sm:$0xff]
        %v694 = vld [vmem:[%s189 + $0xe30] sm:$0xff]
        %v695 = vld [vmem:[%s189 + $0xe38] sm:$0xff]
        %v696 = vld [vmem:[%s189 + $0xe40] sm:$0xff]
        %v697 = vld [vmem:[%s189 + $0xe48] sm:$0xff]
        %v698 = vld [vmem:[%s189 + $0xe50] sm:$0xff]
        %v699 = vld [vmem:[%s189 + $0xe58] sm:$0xff]
        %v700 = vld [vmem:[%s189 + $0xe60] sm:$0xff]
        %v701 = vld [vmem:[%s189 + $0xe68] sm:$0xff]
        %v702 = vld [vmem:[%s189 + $0xe70] sm:$0xff]
        %v703 = vld [vmem:[%s189 + $0xe78] sm:$0xff]
        %v704 = vld [vmem:[%s189 + $0xe80] sm:$0xff]
        %v705 = vld [vmem:[%s189 + $0xe88] sm:$0xff]
        %v706 = vld [vmem:[%s189 + $0xe90] sm:$0xff]
        %v707 = vld [vmem:[%s189 + $0xe98] sm:$0xff]
        %v708 = vld [vmem:[%s189 + $0xea0] sm:$0xff]
        %v709 = vld [vmem:[%s189 + $0xea8] sm:$0xff]
        %v710 = vld [vmem:[%s189 + $0xeb0] sm:$0xff]
        %v711 = vld [vmem:[%s189 + $0xeb8] sm:$0xff]
        %v712 = vld [vmem:[%s189 + $0xec0] sm:$0xff]
        %v713 = vld [vmem:[%s189 + $0xec8] sm:$0xff]
        %v714 = vld [vmem:[%s189 + $0xed0] sm:$0xff]
        %v715 = vld [vmem:[%s189 + $0xed8] sm:$0xff]
        %v716 = vld [vmem:[%s189 + $0xee0] sm:$0xff]
        %v717 = vld [vmem:[%s189 + $0xee8] sm:$0xff]
        %v718 = vld [vmem:[%s189 + $0xef0] sm:$0xff]
        %v719 = vld [vmem:[%s189 + $0xef8] sm:$0xff]
        %v720 = vld [vmem:[%s189 + $0xf00] sm:$0xff]
        %v721 = vld [vmem:[%s189 + $0xf08] sm:$0xff]
        %v722 = vld [vmem:[%s189 + $0xf10] sm:$0xff]
        %v723 = vld [vmem:[%s189 + $0xf18] sm:$0xff]
        %v724 = vld [vmem:[%s189 + $0xf20] sm:$0xff]
        %v725 = vld [vmem:[%s189 + $0xf28] sm:$0xff]
        %v726 = vld [vmem:[%s189 + $0xf30] sm:$0xff]
        %v727 = vld [vmem:[%s189 + $0xf38] sm:$0xff]
        %v728 = vld [vmem:[%s189 + $0xf40] sm:$0xff]
        %v729 = vld [vmem:[%s189 + $0xf48] sm:$0xff]
        %v730 = vld [vmem:[%s189 + $0xf50] sm:$0xff]
        %v731 = vld [vmem:[%s189 + $0xf58] sm:$0xff]
        %v732 = vld [vmem:[%s189 + $0xf60] sm:$0xff]
        %v733 = vld [vmem:[%s189 + $0xf68] sm:$0xff]
        %v734 = vld [vmem:[%s189 + $0xf70] sm:$0xff]
        %v735 = vld [vmem:[%s189 + $0xf78] sm:$0xff]
        %v736 = vld [vmem:[%s189 + $0xf80] sm:$0xff]
        %v737 = vld [vmem:[%s189 + $0xf88] sm:$0xff]
        %v738 = vld [vmem:[%s189 + $0xf90] sm:$0xff]
        %v739 = vld [vmem:[%s189 + $0xf98] sm:$0xff]
        %v740 = vld [vmem:[%s189 + $0xfa0] sm:$0xff]
        %v741 = vld [vmem:[%s189 + $0xfa8] sm:$0xff]
        %v742 = vld [vmem:[%s189 + $0xfb0] sm:$0xff]
        %v743 = vld [vmem:[%s189 + $0xfb8] sm:$0xff]
        %v744 = vld [vmem:[%s189 + $0xfc0] sm:$0xff]
        %v745 = vld [vmem:[%s189 + $0xfc8] sm:$0xff]
        %v746 = vld [vmem:[%s189 + $0xfd0] sm:$0xff]
        %v747 = vld [vmem:[%s189 + $0xfd8] sm:$0xff]
        %v748 = vld [vmem:[%s189 + $0xfe0] sm:$0xff]
        %v749 = vld [vmem:[%s189 + $0xfe8] sm:$0xff]
        %v750 = vld [vmem:[%s189 + $0xff0] sm:$0xff]
        %v751 = vld [vmem:[%s189 + $0xff8] sm:$0xff]
        %v752 = vld [vmem:[%s189 + $0x1000] sm:$0xff]
        %v753 = vld [vmem:[%s189 + $0x1008] sm:$0xff]
        %v754 = vld [vmem:[%s189 + $0x1010] sm:$0xff]
        %v755 = vld [vmem:[%s189 + $0x1018] sm:$0xff]
        %v756 = vld [vmem:[%s189 + $0x1020] sm:$0xff]
        %v757 = vld [vmem:[%s189 + $0x1028] sm:$0xff]
        %v758 = vld [vmem:[%s189 + $0x1030] sm:$0xff]
        %v759 = vld [vmem:[%s189 + $0x1038] sm:$0xff]
        %v760 = vld [vmem:[%s189 + $0x1040] sm:$0xff]
        %v761 = vld [vmem:[%s189 + $0x1048] sm:$0xff]
        %v762 = vld [vmem:[%s189 + $0x1050] sm:$0xff]
        %v763 = vld [vmem:[%s189 + $0x1058] sm:$0xff]
        %v764 = vld [vmem:[%s189 + $0x1060] sm:$0xff]
        %v765 = vld [vmem:[%s189 + $0x1068] sm:$0xff]
        %v766 = vld [vmem:[%s189 + $0x1070] sm:$0xff]
        %v767 = vld [vmem:[%s189 + $0x1078] sm:$0xff]
        %v768 = vld [vmem:[%s189 + $0x1080] sm:$0xff]
        %v769 = vld [vmem:[%s189 + $0x1088] sm:$0xff]
        %v770 = vld [vmem:[%s189 + $0x1090] sm:$0xff]
        %v771 = vld [vmem:[%s189 + $0x1098] sm:$0xff]
        %v772 = vld [vmem:[%s189 + $0x10a0] sm:$0xff]
        %v773 = vld [vmem:[%s189 + $0x10a8] sm:$0xff]
        %v774 = vld [vmem:[%s189 + $0x10b0] sm:$0xff]
        %v775 = vld [vmem:[%s189 + $0x10b8] sm:$0xff]
        %v776 = vld [vmem:[%s189 + $0x10c0] sm:$0xff]
        %v777 = vld [vmem:[%s189 + $0x10c8] sm:$0xff]
        %v778 = vld [vmem:[%s189 + $0x10d0] sm:$0xff]
        %v779 = vld [vmem:[%s189 + $0x10d8] sm:$0xff]
        %v780 = vld [vmem:[%s189 + $0x10e0] sm:$0xff]
        %v781 = vld [vmem:[%s189 + $0x10e8] sm:$0xff]
        %v782 = vld [vmem:[%s189 + $0x10f0] sm:$0xff]
        %v783 = vld [vmem:[%s189 + $0x10f8] sm:$0xff]
        %v784 = vld [vmem:[%s189 + $0x1100] sm:$0xff]
        %v785 = vld [vmem:[%s189 + $0x1108] sm:$0xff]
        %v786 = vld [vmem:[%s189 + $0x1110] sm:$0xff]
        %v787 = vld [vmem:[%s189 + $0x1118] sm:$0xff]
        %v788 = vld [vmem:[%s189 + $0x1120] sm:$0xff]
        %v789 = vld [vmem:[%s189 + $0x1128] sm:$0xff]
        %v790 = vld [vmem:[%s189 + $0x1130] sm:$0xff]
        %v791 = vld [vmem:[%s189 + $0x1138] sm:$0xff]
        %v792 = vld [vmem:[%s189 + $0x1140] sm:$0xff]
        %v793 = vld [vmem:[%s189 + $0x1148] sm:$0xff]
        %v794 = vld [vmem:[%s189 + $0x1150] sm:$0xff]
        %v795 = vld [vmem:[%s189 + $0x1158] sm:$0xff]
        %v796 = vld [vmem:[%s189 + $0x1160] sm:$0xff]
        %v797 = vld [vmem:[%s189 + $0x1168] sm:$0xff]
        %v798 = vld [vmem:[%s189 + $0x1170] sm:$0xff]
        %v799 = vld [vmem:[%s189 + $0x1178] sm:$0xff]
        %v800 = vld [vmem:[%s189 + $0x1180] sm:$0xff]
        %v801 = vld [vmem:[%s189 + $0x1188] sm:$0xff]
        %v802 = vld [vmem:[%s189 + $0x1190] sm:$0xff]
        %v803 = vld [vmem:[%s189 + $0x1198] sm:$0xff]
        %v804 = vld [vmem:[%s189 + $0x11a0] sm:$0xff]
        %v805 = vld [vmem:[%s189 + $0x11a8] sm:$0xff]
        %v806 = vld [vmem:[%s189 + $0x11b0] sm:$0xff]
        %v807 = vld [vmem:[%s189 + $0x11b8] sm:$0xff]
        %v808 = vld [vmem:[%s189 + $0x11c0] sm:$0xff]
        %v809 = vld [vmem:[%s189 + $0x11c8] sm:$0xff]
        %v810 = vld [vmem:[%s189 + $0x11d0] sm:$0xff]
        %v811 = vld [vmem:[%s189 + $0x11d8] sm:$0xff]
        %v812 = vld [vmem:[%s189 + $0x11e0] sm:$0xff]
        %v813 = vld [vmem:[%s189 + $0x11e8] sm:$0xff]
        %v814 = vld [vmem:[%s189 + $0x11f0] sm:$0xff]
        %v815 = vld [vmem:[%s189 + $0x11f8] sm:$0xff]
        %v816 = vld [vmem:[%s189 + $0x1200] sm:$0xff]
        %v817 = vld [vmem:[%s189 + $0x1208] sm:$0xff]
        %v818 = vld [vmem:[%s189 + $0x1210] sm:$0xff]
        %v819 = vld [vmem:[%s189 + $0x1218] sm:$0xff]
        %v820 = vld [vmem:[%s189 + $0x1220] sm:$0xff]
        %v821 = vld [vmem:[%s189 + $0x1228] sm:$0xff]
        %v822 = vld [vmem:[%s189 + $0x1230] sm:$0xff]
        %v823 = vld [vmem:[%s189 + $0x1238] sm:$0xff]
        %v824 = vld [vmem:[%s189 + $0x1240] sm:$0xff]
        %v825 = vld [vmem:[%s189 + $0x1248] sm:$0xff]
        %v826 = vld [vmem:[%s189 + $0x1250] sm:$0xff]
        %v827 = vld [vmem:[%s189 + $0x1258] sm:$0xff]
        %v828 = vld [vmem:[%s189 + $0x1260] sm:$0xff]
        %v829 = vld [vmem:[%s189 + $0x1268] sm:$0xff]
        %v830 = vld [vmem:[%s189 + $0x1270] sm:$0xff]
        %v831 = vld [vmem:[%s189 + $0x1278] sm:$0xff]
        %v832 = vld [vmem:[%s189 + $0x1280] sm:$0xff]
        %v833 = vld [vmem:[%s189 + $0x1288] sm:$0xff]
        %v834 = vld [vmem:[%s189 + $0x1290] sm:$0xff]
        %v835 = vld [vmem:[%s189 + $0x1298] sm:$0xff]
        %v836 = vld [vmem:[%s189 + $0x12a0] sm:$0xff]
        %v837 = vld [vmem:[%s189 + $0x12a8] sm:$0xff]
        %v838 = vld [vmem:[%s189 + $0x12b0] sm:$0xff]
        %v839 = vld [vmem:[%s189 + $0x12b8] sm:$0xff]
        %v840 = vld [vmem:[%s189 + $0x12c0] sm:$0xff]
        %v841 = vld [vmem:[%s189 + $0x12c8] sm:$0xff]
        %v842 = vld [vmem:[%s189 + $0x12d0] sm:$0xff]
        %v843 = vld [vmem:[%s189 + $0x12d8] sm:$0xff]
        %v844 = vld [vmem:[%s189 + $0x12e0] sm:$0xff]
        %v845 = vld [vmem:[%s189 + $0x12e8] sm:$0xff]
        %v846 = vld [vmem:[%s189 + $0x12f0] sm:$0xff]
        %v847 = vld [vmem:[%s189 + $0x12f8] sm:$0xff]
        %v848 = vld [vmem:[%s189 + $0x1300] sm:$0xff]
        %v849 = vld [vmem:[%s189 + $0x1308] sm:$0xff]
        %v850 = vld [vmem:[%s189 + $0x1310] sm:$0xff]
        %v851 = vld [vmem:[%s189 + $0x1318] sm:$0xff]
        %v852 = vld [vmem:[%s189 + $0x1320] sm:$0xff]
        %v853 = vld [vmem:[%s189 + $0x1328] sm:$0xff]
        %v854 = vld [vmem:[%s189 + $0x1330] sm:$0xff]
        %v855 = vld [vmem:[%s189 + $0x1338] sm:$0xff]
        %v856 = vld [vmem:[%s189 + $0x1340] sm:$0xff]
        %v857 = vld [vmem:[%s189 + $0x1348] sm:$0xff]
        %v858 = vld [vmem:[%s189 + $0x1350] sm:$0xff]
        %v859 = vld [vmem:[%s189 + $0x1358] sm:$0xff]
        %v860 = vld [vmem:[%s189 + $0x1360] sm:$0xff]
        %v861 = vld [vmem:[%s189 + $0x1368] sm:$0xff]
        %v862 = vld [vmem:[%s189 + $0x1370] sm:$0xff]
        %v863 = vld [vmem:[%s189 + $0x1378] sm:$0xff]
        %v864 = vld [vmem:[%s189 + $0x1380] sm:$0xff]
        %v865 = vld [vmem:[%s189 + $0x1388] sm:$0xff]
        %v866 = vld [vmem:[%s189 + $0x1390] sm:$0xff]
        %v867 = vld [vmem:[%s189 + $0x1398] sm:$0xff]
        %v868 = vld [vmem:[%s189 + $0x13a0] sm:$0xff]
        %v869 = vld [vmem:[%s189 + $0x13a8] sm:$0xff]
        %v870 = vld [vmem:[%s189 + $0x13b0] sm:$0xff]
        %v871 = vld [vmem:[%s189 + $0x13b8] sm:$0xff]
        %v872 = vld [vmem:[%s189 + $0x13c0] sm:$0xff]
        %v873 = vld [vmem:[%s189 + $0x13c8] sm:$0xff]
        %v874 = vld [vmem:[%s189 + $0x13d0] sm:$0xff]
        %v875 = vld [vmem:[%s189 + $0x13d8] sm:$0xff]
        %v876 = vld [vmem:[%s189 + $0x13e0] sm:$0xff]
        %v877 = vld [vmem:[%s189 + $0x13e8] sm:$0xff]
        %v878 = vld [vmem:[%s189 + $0x13f0] sm:$0xff]
        %v879 = vld [vmem:[%s189 + $0x13f8] sm:$0xff]
        %v880 = vld [vmem:[%s189 + $0x1400] sm:$0xff]
        %v881 = vld [vmem:[%s189 + $0x1408] sm:$0xff]
        %v882 = vld [vmem:[%s189 + $0x1410] sm:$0xff]
        %v883 = vld [vmem:[%s189 + $0x1418] sm:$0xff]
        %v884 = vld [vmem:[%s189 + $0x1420] sm:$0xff]
        %v885 = vld [vmem:[%s189 + $0x1428] sm:$0xff]
        %v886 = vld [vmem:[%s189 + $0x1430] sm:$0xff]
        %v887 = vld [vmem:[%s189 + $0x1438] sm:$0xff]
        %v888 = vld [vmem:[%s189 + $0x1440] sm:$0xff]
        %v889 = vld [vmem:[%s189 + $0x1448] sm:$0xff]
        %v890 = vld [vmem:[%s189 + $0x1450] sm:$0xff]
        %v891 = vld [vmem:[%s189 + $0x1458] sm:$0xff]
        %v892 = vld [vmem:[%s189 + $0x1460] sm:$0xff]
        %v893 = vld [vmem:[%s189 + $0x1468] sm:$0xff]
        %v894 = vld [vmem:[%s189 + $0x1470] sm:$0xff]
        %v895 = vld [vmem:[%s189 + $0x1478] sm:$0xff]
        %v896 = vld [vmem:[%s189 + $0x1480] sm:$0xff]
        %v897 = vld [vmem:[%s189 + $0x1488] sm:$0xff]
        %v898 = vld [vmem:[%s189 + $0x1490] sm:$0xff]
        %v899 = vld [vmem:[%s189 + $0x1498] sm:$0xff]
        %v900 = vld [vmem:[%s189 + $0x14a0] sm:$0xff]
        %v901 = vld [vmem:[%s189 + $0x14a8] sm:$0xff]
        %v902 = vld [vmem:[%s189 + $0x14b0] sm:$0xff]
        %v903 = vld [vmem:[%s189 + $0x14b8] sm:$0xff]
        %v904 = vld [vmem:[%s189 + $0x14c0] sm:$0xff]
        %v905 = vld [vmem:[%s189 + $0x14c8] sm:$0xff]
        %v906 = vld [vmem:[%s189 + $0x14d0] sm:$0xff]
        %v907 = vld [vmem:[%s189 + $0x14d8] sm:$0xff]
        %v908 = vld [vmem:[%s189 + $0x14e0] sm:$0xff]
        %v909 = vld [vmem:[%s189 + $0x14e8] sm:$0xff]
        %v910 = vld [vmem:[%s189 + $0x14f0] sm:$0xff]
        %v911 = vld [vmem:[%s189 + $0x14f8] sm:$0xff]
        %v912 = vld [vmem:[%s189 + $0x1500] sm:$0xff]
        %v913 = vld [vmem:[%s189 + $0x1508] sm:$0xff]
        %v914 = vld [vmem:[%s189 + $0x1510] sm:$0xff]
        %v915 = vld [vmem:[%s189 + $0x1518] sm:$0xff]
        %v916 = vld [vmem:[%s189 + $0x1520] sm:$0xff]
        %v917 = vld [vmem:[%s189 + $0x1528] sm:$0xff]
        %v918 = vld [vmem:[%s189 + $0x1530] sm:$0xff]
        %v919 = vld [vmem:[%s189 + $0x1538] sm:$0xff]
        %v920 = vld [vmem:[%s189 + $0x1540] sm:$0xff]
        %v921 = vld [vmem:[%s189 + $0x1548] sm:$0xff]
        %v922 = vld [vmem:[%s189 + $0x1550] sm:$0xff]
        %v923 = vld [vmem:[%s189 + $0x1558] sm:$0xff]
        %v924 = vld [vmem:[%s189 + $0x1560] sm:$0xff]
        %v925 = vld [vmem:[%s189 + $0x1568] sm:$0xff]
        %v926 = vld [vmem:[%s189 + $0x1570] sm:$0xff]
        %v927 = vld [vmem:[%s189 + $0x1578] sm:$0xff]
        %v928 = vld [vmem:[%s189 + $0x1580] sm:$0xff]
        %v929 = vld [vmem:[%s189 + $0x1588] sm:$0xff]
        %v930 = vld [vmem:[%s189 + $0x1590] sm:$0xff]
        %v931 = vld [vmem:[%s189 + $0x1598] sm:$0xff]
        %v932 = vld [vmem:[%s189 + $0x15a0] sm:$0xff]
        %v933 = vld [vmem:[%s189 + $0x15a8] sm:$0xff]
        %v934 = vld [vmem:[%s189 + $0x15b0] sm:$0xff]
        %v935 = vld [vmem:[%s189 + $0x15b8] sm:$0xff]
        %v936 = vld [vmem:[%s189 + $0x15c0] sm:$0xff]
        %v937 = vld [vmem:[%s189 + $0x15c8] sm:$0xff]
        %v938 = vld [vmem:[%s189 + $0x15d0] sm:$0xff]
        %v939 = vld [vmem:[%s189 + $0x15d8] sm:$0xff]
        %v940 = vld [vmem:[%s189 + $0x15e0] sm:$0xff]
        %v941 = vld [vmem:[%s189 + $0x15e8] sm:$0xff]
        %v942 = vld [vmem:[%s189 + $0x15f0] sm:$0xff]
        %v943 = vld [vmem:[%s189 + $0x15f8] sm:$0xff]
        %s944 = sshra.s32 %s217, 7
        %s945 = sand.u32 %s217, 127
        %s946 = scalar_lea.vmem [#allocation7], %s944
        %v947 = vld [vmem:[%s946] sm:$0xf]
        %v949 = vlaneseq
        %v950 = vshrl.u32 %v949, 7
        %v951 = vsub.s32 0, %v950
        %v952 = vrot.slane %v947, %v951
        %v953 = vlaneseq
        %v954 = vshrl.u32 %v953, 7
        %v955 = vsub.s32 1, %v954
        %v956 = vrot.slane %v947, %v955
        %v957 = vlaneseq
        %v958 = vshrl.u32 %v957, 7
        %v959 = vsub.s32 2, %v958
        %v960 = vrot.slane %v947, %v959
        %v961 = vlaneseq
        %v962 = vshrl.u32 %v961, 7
        %v963 = vsub.s32 3, %v962
        %v964 = vrot.slane %v947, %v963
        %v991 = vunpack.c.l.b16 %v218
        %v992 = vunpack.c.h.b16 %v218
        %v993 = vunpack.c.l.b16 %v219
        %v994 = vunpack.c.h.b16 %v219
        %v995 = vunpack.c.l.b16 %v220
        %v996 = vunpack.c.h.b16 %v220
        %v997 = vunpack.c.l.b16 %v221
        %v998 = vunpack.c.h.b16 %v221
        %v999 = vunpack.c.l.b16 %v222
        %v1000 = vunpack.c.h.b16 %v222
        %v1001 = vunpack.c.l.b16 %v223
        %v1002 = vunpack.c.h.b16 %v223
        %v1003 = vunpack.c.l.b16 %v224
        %v1004 = vunpack.c.h.b16 %v224
        %v1005 = vunpack.c.l.b16 %v225
        %v1006 = vunpack.c.h.b16 %v225
        %v1007 = vunpack.c.l.b16 %v226
        %v1008 = vunpack.c.h.b16 %v226
        %v1009 = vunpack.c.l.b16 %v227
        %v1010 = vunpack.c.h.b16 %v227
        %v1011 = vunpack.c.l.b16 %v228
        %v1012 = vunpack.c.h.b16 %v228
        %v1013 = vunpack.c.l.b16 %v229
        %v1014 = vunpack.c.h.b16 %v229
        %v1015 = vunpack.c.l.b16 %v230
        %v1016 = vunpack.c.h.b16 %v230
        %v1017 = vunpack.c.l.b16 %v231
        %v1018 = vunpack.c.h.b16 %v231
        %v1019 = vunpack.c.l.b16 %v232
        %v1020 = vunpack.c.h.b16 %v232
        %v1021 = vunpack.c.l.b16 %v233
        %v1022 = vunpack.c.h.b16 %v233
        %v1023 = vunpack.c.l.b16 %v234
        %v1024 = vunpack.c.h.b16 %v234
        %v1025 = vunpack.c.l.b16 %v235
        %v1026 = vunpack.c.h.b16 %v235
        %v1027 = vunpack.c.l.b16 %v236
        %v1028 = vunpack.c.h.b16 %v236
        %v1029 = vunpack.c.l.b16 %v237
        %v1030 = vunpack.c.h.b16 %v237
        %v1031 = vunpack.c.l.b16 %v238
        %v1032 = vunpack.c.h.b16 %v238
        %v1033 = vunpack.c.l.b16 %v239
        %v1034 = vunpack.c.h.b16 %v239
        %v1035 = vpack.c.b16 %v1013, %v991
        %v1036 = vpack.c.b16 %v1014, %v992
        %v1037 = vpack.c.b16 %v1015, %v993
        %v1038 = vpack.c.b16 %v1016, %v994
        %v1039 = vpack.c.b16 %v1017, %v995
        %v1040 = vpack.c.b16 %v1018, %v996
        %v1041 = vpack.c.b16 %v1019, %v997
        %v1042 = vpack.c.b16 %v1020, %v998
        %v1043 = vpack.c.b16 %v1021, %v999
        %v1044 = vpack.c.b16 %v1022, %v1000
        %v1045 = vpack.c.b16 %v1023, %v1001
        %v1046 = vpack.c.b16 %v1024, %v1002
        %v1047 = vpack.c.b16 %v1025, %v1003
        %v1048 = vpack.c.b16 %v1026, %v1004
        %v1049 = vpack.c.b16 %v1027, %v1005
        %v1050 = vpack.c.b16 %v1028, %v1006
        %v1051 = vpack.c.b16 %v1029, %v1007
        %v1052 = vpack.c.b16 %v1030, %v1008
        %v1053 = vpack.c.b16 %v1031, %v1009
        %v1054 = vpack.c.b16 %v1032, %v1010
        %v1055 = vpack.c.b16 %v1033, %v1011
        %v1056 = vpack.c.b16 %v1034, %v1012
        %v1783 = vunpack.c.l.b16 %v240
        %v1784 = vunpack.c.h.b16 %v240
        %v1785 = vunpack.c.l.b16 %v241
        %v1786 = vunpack.c.h.b16 %v241
        %v1787 = vunpack.c.l.b16 %v242
        %v1788 = vunpack.c.h.b16 %v242
        %v1789 = vunpack.c.l.b16 %v243
        %v1790 = vunpack.c.h.b16 %v243
        %v1791 = vunpack.c.l.b16 %v244
        %v1792 = vunpack.c.h.b16 %v244
        %v1793 = vunpack.c.l.b16 %v245
        %v1794 = vunpack.c.h.b16 %v245
        %v1795 = vunpack.c.l.b16 %v246
        %v1796 = vunpack.c.h.b16 %v246
        %v1797 = vunpack.c.l.b16 %v247
        %v1798 = vunpack.c.h.b16 %v247
        %v1799 = vunpack.c.l.b16 %v248
        %v1800 = vunpack.c.h.b16 %v248
        %v1801 = vunpack.c.l.b16 %v249
        %v1802 = vunpack.c.h.b16 %v249
        %v1803 = vunpack.c.l.b16 %v250
        %v1804 = vunpack.c.h.b16 %v250
        %v1805 = vunpack.c.l.b16 %v251
        %v1806 = vunpack.c.h.b16 %v251
        %v1807 = vunpack.c.l.b16 %v252
        %v1808 = vunpack.c.h.b16 %v252
        %v1809 = vunpack.c.l.b16 %v253
        %v1810 = vunpack.c.h.b16 %v253
        %v1811 = vunpack.c.l.b16 %v254
        %v1812 = vunpack.c.h.b16 %v254
        %v1813 = vunpack.c.l.b16 %v255
        %v1814 = vunpack.c.h.b16 %v255
        %v1815 = vunpack.c.l.b16 %v256
        %v1816 = vunpack.c.h.b16 %v256
        %v1817 = vunpack.c.l.b16 %v257
        %v1818 = vunpack.c.h.b16 %v257
        %v1819 = vunpack.c.l.b16 %v258
        %v1820 = vunpack.c.h.b16 %v258
        %v1821 = vunpack.c.l.b16 %v259
        %v1822 = vunpack.c.h.b16 %v259
        %v1823 = vunpack.c.l.b16 %v260
        %v1824 = vunpack.c.h.b16 %v260
        %v1825 = vunpack.c.l.b16 %v261
        %v1826 = vunpack.c.h.b16 %v261
        %v1827 = vunpack.c.l.b16 %v262
        %v1828 = vunpack.c.h.b16 %v262
        %v1829 = vunpack.c.l.b16 %v263
        %v1830 = vunpack.c.h.b16 %v263
        %v1831 = vunpack.c.l.b16 %v264
        %v1832 = vunpack.c.h.b16 %v264
        %v1833 = vunpack.c.l.b16 %v265
        %v1834 = vunpack.c.h.b16 %v265
        %v1835 = vunpack.c.l.b16 %v266
        %v1836 = vunpack.c.h.b16 %v266
        %v1837 = vunpack.c.l.b16 %v267
        %v1838 = vunpack.c.h.b16 %v267
        %v1839 = vunpack.c.l.b16 %v268
        %v1840 = vunpack.c.h.b16 %v268
        %v1841 = vunpack.c.l.b16 %v269
        %v1842 = vunpack.c.h.b16 %v269
        %v1843 = vunpack.c.l.b16 %v270
        %v1844 = vunpack.c.h.b16 %v270
        %v1845 = vunpack.c.l.b16 %v271
        %v1846 = vunpack.c.h.b16 %v271
        %v1847 = vunpack.c.l.b16 %v272
        %v1848 = vunpack.c.h.b16 %v272
        %v1849 = vunpack.c.l.b16 %v273
        %v1850 = vunpack.c.h.b16 %v273
        %v1851 = vunpack.c.l.b16 %v274
        %v1852 = vunpack.c.h.b16 %v274
        %v1853 = vunpack.c.l.b16 %v275
        %v1854 = vunpack.c.h.b16 %v275
        %v1855 = vunpack.c.l.b16 %v276
        %v1856 = vunpack.c.h.b16 %v276
        %v1857 = vunpack.c.l.b16 %v277
        %v1858 = vunpack.c.h.b16 %v277
        %v1859 = vunpack.c.l.b16 %v278
        %v1860 = vunpack.c.h.b16 %v278
        %v1861 = vunpack.c.l.b16 %v279
        %v1862 = vunpack.c.h.b16 %v279
        %v1863 = vunpack.c.l.b16 %v280
        %v1864 = vunpack.c.h.b16 %v280
        %v1865 = vunpack.c.l.b16 %v281
        %v1866 = vunpack.c.h.b16 %v281
        %v1867 = vunpack.c.l.b16 %v282
        %v1868 = vunpack.c.h.b16 %v282
        %v1869 = vunpack.c.l.b16 %v283
        %v1870 = vunpack.c.h.b16 %v283
        %v1871 = vunpack.c.l.b16 %v284
        %v1872 = vunpack.c.h.b16 %v284
        %v1873 = vunpack.c.l.b16 %v285
        %v1874 = vunpack.c.h.b16 %v285
        %v1875 = vunpack.c.l.b16 %v286
        %v1876 = vunpack.c.h.b16 %v286
        %v1877 = vunpack.c.l.b16 %v287
        %v1878 = vunpack.c.h.b16 %v287
        %v1879 = vunpack.c.l.b16 %v288
        %v1880 = vunpack.c.h.b16 %v288
        %v1881 = vunpack.c.l.b16 %v289
        %v1882 = vunpack.c.h.b16 %v289
        %v1883 = vunpack.c.l.b16 %v290
        %v1884 = vunpack.c.h.b16 %v290
        %v1885 = vunpack.c.l.b16 %v291
        %v1886 = vunpack.c.h.b16 %v291
        %v1887 = vunpack.c.l.b16 %v292
        %v1888 = vunpack.c.h.b16 %v292
        %v1889 = vunpack.c.l.b16 %v293
        %v1890 = vunpack.c.h.b16 %v293
        %v1891 = vunpack.c.l.b16 %v294
        %v1892 = vunpack.c.h.b16 %v294
        %v1893 = vunpack.c.l.b16 %v295
        %v1894 = vunpack.c.h.b16 %v295
        %v1895 = vunpack.c.l.b16 %v296
        %v1896 = vunpack.c.h.b16 %v296
        %v1897 = vunpack.c.l.b16 %v297
        %v1898 = vunpack.c.h.b16 %v297
        %v1899 = vunpack.c.l.b16 %v298
        %v1900 = vunpack.c.h.b16 %v298
        %v1901 = vunpack.c.l.b16 %v299
        %v1902 = vunpack.c.h.b16 %v299
        %v1903 = vunpack.c.l.b16 %v300
        %v1904 = vunpack.c.h.b16 %v300
        %v1905 = vunpack.c.l.b16 %v301
        %v1906 = vunpack.c.h.b16 %v301
        %v1907 = vunpack.c.l.b16 %v302
        %v1908 = vunpack.c.h.b16 %v302
        %v1909 = vunpack.c.l.b16 %v303
        %v1910 = vunpack.c.h.b16 %v303
        %v1911 = vunpack.c.l.b16 %v304
        %v1912 = vunpack.c.h.b16 %v304
        %v1913 = vunpack.c.l.b16 %v305
        %v1914 = vunpack.c.h.b16 %v305
        %v1915 = vunpack.c.l.b16 %v306
        %v1916 = vunpack.c.h.b16 %v306
        %v1917 = vunpack.c.l.b16 %v307
        %v1918 = vunpack.c.h.b16 %v307
        %v1919 = vunpack.c.l.b16 %v308
        %v1920 = vunpack.c.h.b16 %v308
        %v1921 = vunpack.c.l.b16 %v309
        %v1922 = vunpack.c.h.b16 %v309
        %v1923 = vunpack.c.l.b16 %v310
        %v1924 = vunpack.c.h.b16 %v310
        %v1925 = vunpack.c.l.b16 %v311
        %v1926 = vunpack.c.h.b16 %v311
        %v1927 = vunpack.c.l.b16 %v312
        %v1928 = vunpack.c.h.b16 %v312
        %v1929 = vunpack.c.l.b16 %v313
        %v1930 = vunpack.c.h.b16 %v313
        %v1931 = vunpack.c.l.b16 %v314
        %v1932 = vunpack.c.h.b16 %v314
        %v1933 = vunpack.c.l.b16 %v315
        %v1934 = vunpack.c.h.b16 %v315
        %v1935 = vunpack.c.l.b16 %v316
        %v1936 = vunpack.c.h.b16 %v316
        %v1937 = vunpack.c.l.b16 %v317
        %v1938 = vunpack.c.h.b16 %v317
        %v1939 = vunpack.c.l.b16 %v318
        %v1940 = vunpack.c.h.b16 %v318
        %v1941 = vunpack.c.l.b16 %v319
        %v1942 = vunpack.c.h.b16 %v319
        %v1943 = vunpack.c.l.b16 %v320
        %v1944 = vunpack.c.h.b16 %v320
        %v1945 = vunpack.c.l.b16 %v321
        %v1946 = vunpack.c.h.b16 %v321
        %v1947 = vunpack.c.l.b16 %v322
        %v1948 = vunpack.c.h.b16 %v322
        %v1949 = vunpack.c.l.b16 %v323
        %v1950 = vunpack.c.h.b16 %v323
        %v1951 = vunpack.c.l.b16 %v324
        %v1952 = vunpack.c.h.b16 %v324
        %v1953 = vunpack.c.l.b16 %v325
        %v1954 = vunpack.c.h.b16 %v325
        %v1955 = vunpack.c.l.b16 %v326
        %v1956 = vunpack.c.h.b16 %v326
        %v1957 = vunpack.c.l.b16 %v327
        %v1958 = vunpack.c.h.b16 %v327
        %v1959 = vunpack.c.l.b16 %v328
        %v1960 = vunpack.c.h.b16 %v328
        %v1961 = vunpack.c.l.b16 %v329
        %v1962 = vunpack.c.h.b16 %v329
        %v1963 = vunpack.c.l.b16 %v330
        %v1964 = vunpack.c.h.b16 %v330
        %v1965 = vunpack.c.l.b16 %v331
        %v1966 = vunpack.c.h.b16 %v331
        %v1967 = vunpack.c.l.b16 %v332
        %v1968 = vunpack.c.h.b16 %v332
        %v1969 = vunpack.c.l.b16 %v333
        %v1970 = vunpack.c.h.b16 %v333
        %v1971 = vunpack.c.l.b16 %v334
        %v1972 = vunpack.c.h.b16 %v334
        %v1973 = vunpack.c.l.b16 %v335
        %v1974 = vunpack.c.h.b16 %v335
        %v1975 = vunpack.c.l.b16 %v336
        %v1976 = vunpack.c.h.b16 %v336
        %v1977 = vunpack.c.l.b16 %v337
        %v1978 = vunpack.c.h.b16 %v337
        %v1979 = vunpack.c.l.b16 %v338
        %v1980 = vunpack.c.h.b16 %v338
        %v1981 = vunpack.c.l.b16 %v339
        %v1982 = vunpack.c.h.b16 %v339
        %v1983 = vunpack.c.l.b16 %v340
        %v1984 = vunpack.c.h.b16 %v340
        %v1985 = vunpack.c.l.b16 %v341
        %v1986 = vunpack.c.h.b16 %v341
        %v1987 = vunpack.c.l.b16 %v342
        %v1988 = vunpack.c.h.b16 %v342
        %v1989 = vunpack.c.l.b16 %v343
        %v1990 = vunpack.c.h.b16 %v343
        %v1991 = vunpack.c.l.b16 %v344
        %v1992 = vunpack.c.h.b16 %v344
        %v1993 = vunpack.c.l.b16 %v345
        %v1994 = vunpack.c.h.b16 %v345
        %v1995 = vunpack.c.l.b16 %v346
        %v1996 = vunpack.c.h.b16 %v346
        %v1997 = vunpack.c.l.b16 %v347
        %v1998 = vunpack.c.h.b16 %v347
        %v1999 = vunpack.c.l.b16 %v348
        %v2000 = vunpack.c.h.b16 %v348
        %v2001 = vunpack.c.l.b16 %v349
        %v2002 = vunpack.c.h.b16 %v349
        %v2003 = vunpack.c.l.b16 %v350
        %v2004 = vunpack.c.h.b16 %v350
        %v2005 = vunpack.c.l.b16 %v351
        %v2006 = vunpack.c.h.b16 %v351
        %v2007 = vunpack.c.l.b16 %v352
        %v2008 = vunpack.c.h.b16 %v352
        %v2009 = vunpack.c.l.b16 %v353
        %v2010 = vunpack.c.h.b16 %v353
        %v2011 = vunpack.c.l.b16 %v354
        %v2012 = vunpack.c.h.b16 %v354
        %v2013 = vunpack.c.l.b16 %v355
        %v2014 = vunpack.c.h.b16 %v355
        %v2015 = vunpack.c.l.b16 %v356
        %v2016 = vunpack.c.h.b16 %v356
        %v2017 = vunpack.c.l.b16 %v357
        %v2018 = vunpack.c.h.b16 %v357
        %v2019 = vunpack.c.l.b16 %v358
        %v2020 = vunpack.c.h.b16 %v358
        %v2021 = vunpack.c.l.b16 %v359
        %v2022 = vunpack.c.h.b16 %v359
        %v2023 = vunpack.c.l.b16 %v360
        %v2024 = vunpack.c.h.b16 %v360
        %v2025 = vunpack.c.l.b16 %v361
        %v2026 = vunpack.c.h.b16 %v361
        %v2027 = vunpack.c.l.b16 %v362
        %v2028 = vunpack.c.h.b16 %v362
        %v2029 = vunpack.c.l.b16 %v363
        %v2030 = vunpack.c.h.b16 %v363
        %v2031 = vunpack.c.l.b16 %v364
        %v2032 = vunpack.c.h.b16 %v364
        %v2033 = vunpack.c.l.b16 %v365
        %v2034 = vunpack.c.h.b16 %v365
        %v2035 = vunpack.c.l.b16 %v366
        %v2036 = vunpack.c.h.b16 %v366
        %v2037 = vunpack.c.l.b16 %v367
        %v2038 = vunpack.c.h.b16 %v367
        %v2039 = vunpack.c.l.b16 %v368
        %v2040 = vunpack.c.h.b16 %v368
        %v2041 = vunpack.c.l.b16 %v369
        %v2042 = vunpack.c.h.b16 %v369
        %v2043 = vunpack.c.l.b16 %v370
        %v2044 = vunpack.c.h.b16 %v370
        %v2045 = vunpack.c.l.b16 %v371
        %v2046 = vunpack.c.h.b16 %v371
        %v2047 = vunpack.c.l.b16 %v372
        %v2048 = vunpack.c.h.b16 %v372
        %v2049 = vunpack.c.l.b16 %v373
        %v2050 = vunpack.c.h.b16 %v373
        %v2051 = vunpack.c.l.b16 %v374
        %v2052 = vunpack.c.h.b16 %v374
        %v2053 = vunpack.c.l.b16 %v375
        %v2054 = vunpack.c.h.b16 %v375
        %v2055 = vunpack.c.l.b16 %v376
        %v2056 = vunpack.c.h.b16 %v376
        %v2057 = vunpack.c.l.b16 %v377
        %v2058 = vunpack.c.h.b16 %v377
        %v2059 = vunpack.c.l.b16 %v378
        %v2060 = vunpack.c.h.b16 %v378
        %v2061 = vunpack.c.l.b16 %v379
        %v2062 = vunpack.c.h.b16 %v379
        %v2063 = vunpack.c.l.b16 %v380
        %v2064 = vunpack.c.h.b16 %v380
        %v2065 = vunpack.c.l.b16 %v381
        %v2066 = vunpack.c.h.b16 %v381
        %v2067 = vunpack.c.l.b16 %v382
        %v2068 = vunpack.c.h.b16 %v382
        %v2069 = vunpack.c.l.b16 %v383
        %v2070 = vunpack.c.h.b16 %v383
        %v2071 = vunpack.c.l.b16 %v384
        %v2072 = vunpack.c.h.b16 %v384
        %v2073 = vunpack.c.l.b16 %v385
        %v2074 = vunpack.c.h.b16 %v385
        %v2075 = vunpack.c.l.b16 %v386
        %v2076 = vunpack.c.h.b16 %v386
        %v2077 = vunpack.c.l.b16 %v387
        %v2078 = vunpack.c.h.b16 %v387
        %v2079 = vunpack.c.l.b16 %v388
        %v2080 = vunpack.c.h.b16 %v388
        %v2081 = vunpack.c.l.b16 %v389
        %v2082 = vunpack.c.h.b16 %v389
        %v2083 = vunpack.c.l.b16 %v390
        %v2084 = vunpack.c.h.b16 %v390
        %v2085 = vunpack.c.l.b16 %v391
        %v2086 = vunpack.c.h.b16 %v391
        %v2087 = vunpack.c.l.b16 %v392
        %v2088 = vunpack.c.h.b16 %v392
        %v2089 = vunpack.c.l.b16 %v393
        %v2090 = vunpack.c.h.b16 %v393
        %v2091 = vunpack.c.l.b16 %v394
        %v2092 = vunpack.c.h.b16 %v394
        %v2093 = vunpack.c.l.b16 %v395
        %v2094 = vunpack.c.h.b16 %v395
        %v2095 = vunpack.c.l.b16 %v396
        %v2096 = vunpack.c.h.b16 %v396
        %v2097 = vunpack.c.l.b16 %v397
        %v2098 = vunpack.c.h.b16 %v397
        %v2099 = vunpack.c.l.b16 %v398
        %v2100 = vunpack.c.h.b16 %v398
        %v2101 = vunpack.c.l.b16 %v399
        %v2102 = vunpack.c.h.b16 %v399
        %v2103 = vunpack.c.l.b16 %v400
        %v2104 = vunpack.c.h.b16 %v400
        %v2105 = vunpack.c.l.b16 %v401
        %v2106 = vunpack.c.h.b16 %v401
        %v2107 = vunpack.c.l.b16 %v402
        %v2108 = vunpack.c.h.b16 %v402
        %v2109 = vunpack.c.l.b16 %v403
        %v2110 = vunpack.c.h.b16 %v403
        %v2111 = vunpack.c.l.b16 %v404
        %v2112 = vunpack.c.h.b16 %v404
        %v2113 = vunpack.c.l.b16 %v405
        %v2114 = vunpack.c.h.b16 %v405
        %v2115 = vunpack.c.l.b16 %v406
        %v2116 = vunpack.c.h.b16 %v406
        %v2117 = vunpack.c.l.b16 %v407
        %v2118 = vunpack.c.h.b16 %v407
        %v2119 = vunpack.c.l.b16 %v408
        %v2120 = vunpack.c.h.b16 %v408
        %v2121 = vunpack.c.l.b16 %v409
        %v2122 = vunpack.c.h.b16 %v409
        %v2123 = vunpack.c.l.b16 %v410
        %v2124 = vunpack.c.h.b16 %v410
        %v2125 = vunpack.c.l.b16 %v411
        %v2126 = vunpack.c.h.b16 %v411
        %v2127 = vunpack.c.l.b16 %v412
        %v2128 = vunpack.c.h.b16 %v412
        %v2129 = vunpack.c.l.b16 %v413
        %v2130 = vunpack.c.h.b16 %v413
        %v2131 = vunpack.c.l.b16 %v414
        %v2132 = vunpack.c.h.b16 %v414
        %v2133 = vunpack.c.l.b16 %v415
        %v2134 = vunpack.c.h.b16 %v415
        %v2135 = vunpack.c.l.b16 %v416
        %v2136 = vunpack.c.h.b16 %v416
        %v2137 = vunpack.c.l.b16 %v417
        %v2138 = vunpack.c.h.b16 %v417
        %v2139 = vunpack.c.l.b16 %v418
        %v2140 = vunpack.c.h.b16 %v418
        %v2141 = vunpack.c.l.b16 %v419
        %v2142 = vunpack.c.h.b16 %v419
        %v2143 = vunpack.c.l.b16 %v420
        %v2144 = vunpack.c.h.b16 %v420
        %v2145 = vunpack.c.l.b16 %v421
        %v2146 = vunpack.c.h.b16 %v421
        %v2147 = vunpack.c.l.b16 %v422
        %v2148 = vunpack.c.h.b16 %v422
        %v2149 = vunpack.c.l.b16 %v423
        %v2150 = vunpack.c.h.b16 %v423
        %v2151 = vunpack.c.l.b16 %v424
        %v2152 = vunpack.c.h.b16 %v424
        %v2153 = vunpack.c.l.b16 %v425
        %v2154 = vunpack.c.h.b16 %v425
        %v2155 = vunpack.c.l.b16 %v426
        %v2156 = vunpack.c.h.b16 %v426
        %v2157 = vunpack.c.l.b16 %v427
        %v2158 = vunpack.c.h.b16 %v427
        %v2159 = vunpack.c.l.b16 %v428
        %v2160 = vunpack.c.h.b16 %v428
        %v2161 = vunpack.c.l.b16 %v429
        %v2162 = vunpack.c.h.b16 %v429
        %v2163 = vunpack.c.l.b16 %v430
        %v2164 = vunpack.c.h.b16 %v430
        %v2165 = vunpack.c.l.b16 %v431
        %v2166 = vunpack.c.h.b16 %v431
        %v2167 = vunpack.c.l.b16 %v432
        %v2168 = vunpack.c.h.b16 %v432
        %v2169 = vunpack.c.l.b16 %v433
        %v2170 = vunpack.c.h.b16 %v433
        %v2171 = vunpack.c.l.b16 %v434
        %v2172 = vunpack.c.h.b16 %v434
        %v2173 = vunpack.c.l.b16 %v435
        %v2174 = vunpack.c.h.b16 %v435
        %v2175 = vunpack.c.l.b16 %v436
        %v2176 = vunpack.c.h.b16 %v436
        %v2177 = vunpack.c.l.b16 %v437
        %v2178 = vunpack.c.h.b16 %v437
        %v2179 = vunpack.c.l.b16 %v438
        %v2180 = vunpack.c.h.b16 %v438
        %v2181 = vunpack.c.l.b16 %v439
        %v2182 = vunpack.c.h.b16 %v439
        %v2183 = vunpack.c.l.b16 %v440
        %v2184 = vunpack.c.h.b16 %v440
        %v2185 = vunpack.c.l.b16 %v441
        %v2186 = vunpack.c.h.b16 %v441
        %v2187 = vunpack.c.l.b16 %v442
        %v2188 = vunpack.c.h.b16 %v442
        %v2189 = vunpack.c.l.b16 %v443
        %v2190 = vunpack.c.h.b16 %v443
        %v2191 = vunpack.c.l.b16 %v444
        %v2192 = vunpack.c.h.b16 %v444
        %v2193 = vunpack.c.l.b16 %v445
        %v2194 = vunpack.c.h.b16 %v445
        %v2195 = vunpack.c.l.b16 %v446
        %v2196 = vunpack.c.h.b16 %v446
        %v2197 = vunpack.c.l.b16 %v447
        %v2198 = vunpack.c.h.b16 %v447
        %v2199 = vunpack.c.l.b16 %v448
        %v2200 = vunpack.c.h.b16 %v448
        %v2201 = vunpack.c.l.b16 %v449
        %v2202 = vunpack.c.h.b16 %v449
        %v2203 = vunpack.c.l.b16 %v450
        %v2204 = vunpack.c.h.b16 %v450
        %v2205 = vunpack.c.l.b16 %v451
        %v2206 = vunpack.c.h.b16 %v451
        %v2207 = vunpack.c.l.b16 %v452
        %v2208 = vunpack.c.h.b16 %v452
        %v2209 = vunpack.c.l.b16 %v453
        %v2210 = vunpack.c.h.b16 %v453
        %v2211 = vunpack.c.l.b16 %v454
        %v2212 = vunpack.c.h.b16 %v454
        %v2213 = vunpack.c.l.b16 %v455
        %v2214 = vunpack.c.h.b16 %v455
        %v2215 = vunpack.c.l.b16 %v456
        %v2216 = vunpack.c.h.b16 %v456
        %v2217 = vunpack.c.l.b16 %v457
        %v2218 = vunpack.c.h.b16 %v457
        %v2219 = vunpack.c.l.b16 %v458
        %v2220 = vunpack.c.h.b16 %v458
        %v2221 = vunpack.c.l.b16 %v459
        %v2222 = vunpack.c.h.b16 %v459
        %v2223 = vunpack.c.l.b16 %v460
        %v2224 = vunpack.c.h.b16 %v460
        %v2225 = vunpack.c.l.b16 %v461
        %v2226 = vunpack.c.h.b16 %v461
        %v2227 = vunpack.c.l.b16 %v462
        %v2228 = vunpack.c.h.b16 %v462
        %v2229 = vunpack.c.l.b16 %v463
        %v2230 = vunpack.c.h.b16 %v463
        %v2231 = vunpack.c.l.b16 %v464
        %v2232 = vunpack.c.h.b16 %v464
        %v2233 = vunpack.c.l.b16 %v465
        %v2234 = vunpack.c.h.b16 %v465
        %v2235 = vunpack.c.l.b16 %v466
        %v2236 = vunpack.c.h.b16 %v466
        %v2237 = vunpack.c.l.b16 %v467
        %v2238 = vunpack.c.h.b16 %v467
        %v2239 = vunpack.c.l.b16 %v468
        %v2240 = vunpack.c.h.b16 %v468
        %v2241 = vunpack.c.l.b16 %v469
        %v2242 = vunpack.c.h.b16 %v469
        %v2243 = vunpack.c.l.b16 %v470
        %v2244 = vunpack.c.h.b16 %v470
        %v2245 = vunpack.c.l.b16 %v471
        %v2246 = vunpack.c.h.b16 %v471
        %v2247 = vunpack.c.l.b16 %v472
        %v2248 = vunpack.c.h.b16 %v472
        %v2249 = vunpack.c.l.b16 %v473
        %v2250 = vunpack.c.h.b16 %v473
        %v2251 = vunpack.c.l.b16 %v474
        %v2252 = vunpack.c.h.b16 %v474
        %v2253 = vunpack.c.l.b16 %v475
        %v2254 = vunpack.c.h.b16 %v475
        %v2255 = vunpack.c.l.b16 %v476
        %v2256 = vunpack.c.h.b16 %v476
        %v2257 = vunpack.c.l.b16 %v477
        %v2258 = vunpack.c.h.b16 %v477
        %v2259 = vunpack.c.l.b16 %v478
        %v2260 = vunpack.c.h.b16 %v478
        %v2261 = vunpack.c.l.b16 %v479
        %v2262 = vunpack.c.h.b16 %v479
        %v2263 = vunpack.c.l.b16 %v480
        %v2264 = vunpack.c.h.b16 %v480
        %v2265 = vunpack.c.l.b16 %v481
        %v2266 = vunpack.c.h.b16 %v481
        %v2267 = vunpack.c.l.b16 %v482
        %v2268 = vunpack.c.h.b16 %v482
        %v2269 = vunpack.c.l.b16 %v483
        %v2270 = vunpack.c.h.b16 %v483
        %v2271 = vunpack.c.l.b16 %v484
        %v2272 = vunpack.c.h.b16 %v484
        %v2273 = vunpack.c.l.b16 %v485
        %v2274 = vunpack.c.h.b16 %v485
        %v2275 = vunpack.c.l.b16 %v486
        %v2276 = vunpack.c.h.b16 %v486
        %v2277 = vunpack.c.l.b16 %v487
        %v2278 = vunpack.c.h.b16 %v487
        %v2279 = vunpack.c.l.b16 %v488
        %v2280 = vunpack.c.h.b16 %v488
        %v2281 = vunpack.c.l.b16 %v489
        %v2282 = vunpack.c.h.b16 %v489
        %v2283 = vunpack.c.l.b16 %v490
        %v2284 = vunpack.c.h.b16 %v490
        %v2285 = vunpack.c.l.b16 %v491
        %v2286 = vunpack.c.h.b16 %v491
        %v2287 = vunpack.c.l.b16 %v492
        %v2288 = vunpack.c.h.b16 %v492
        %v2289 = vunpack.c.l.b16 %v493
        %v2290 = vunpack.c.h.b16 %v493
        %v2291 = vunpack.c.l.b16 %v494
        %v2292 = vunpack.c.h.b16 %v494
        %v2293 = vunpack.c.l.b16 %v495
        %v2294 = vunpack.c.h.b16 %v495
        %v2295 = vunpack.c.l.b16 %v496
        %v2296 = vunpack.c.h.b16 %v496
        %v2297 = vunpack.c.l.b16 %v497
        %v2298 = vunpack.c.h.b16 %v497
        %v2299 = vunpack.c.l.b16 %v498
        %v2300 = vunpack.c.h.b16 %v498
        %v2301 = vunpack.c.l.b16 %v499
        %v2302 = vunpack.c.h.b16 %v499
        %v2303 = vunpack.c.l.b16 %v500
        %v2304 = vunpack.c.h.b16 %v500
        %v2305 = vunpack.c.l.b16 %v501
        %v2306 = vunpack.c.h.b16 %v501
        %v2307 = vunpack.c.l.b16 %v502
        %v2308 = vunpack.c.h.b16 %v502
        %v2309 = vunpack.c.l.b16 %v503
        %v2310 = vunpack.c.h.b16 %v503
        %v2311 = vunpack.c.l.b16 %v504
        %v2312 = vunpack.c.h.b16 %v504
        %v2313 = vunpack.c.l.b16 %v505
        %v2314 = vunpack.c.h.b16 %v505
        %v2315 = vunpack.c.l.b16 %v506
        %v2316 = vunpack.c.h.b16 %v506
        %v2317 = vunpack.c.l.b16 %v507
        %v2318 = vunpack.c.h.b16 %v507
        %v2319 = vunpack.c.l.b16 %v508
        %v2320 = vunpack.c.h.b16 %v508
        %v2321 = vunpack.c.l.b16 %v509
        %v2322 = vunpack.c.h.b16 %v509
        %v2323 = vunpack.c.l.b16 %v510
        %v2324 = vunpack.c.h.b16 %v510
        %v2325 = vunpack.c.l.b16 %v511
        %v2326 = vunpack.c.h.b16 %v511
        %v2327 = vunpack.c.l.b16 %v512
        %v2328 = vunpack.c.h.b16 %v512
        %v2329 = vunpack.c.l.b16 %v513
        %v2330 = vunpack.c.h.b16 %v513
        %v2331 = vunpack.c.l.b16 %v514
        %v2332 = vunpack.c.h.b16 %v514
        %v2333 = vunpack.c.l.b16 %v515
        %v2334 = vunpack.c.h.b16 %v515
        %v2335 = vunpack.c.l.b16 %v516
        %v2336 = vunpack.c.h.b16 %v516
        %v2337 = vunpack.c.l.b16 %v517
        %v2338 = vunpack.c.h.b16 %v517
        %v2339 = vunpack.c.l.b16 %v518
        %v2340 = vunpack.c.h.b16 %v518
        %v2341 = vunpack.c.l.b16 %v519
        %v2342 = vunpack.c.h.b16 %v519
        %v2343 = vunpack.c.l.b16 %v520
        %v2344 = vunpack.c.h.b16 %v520
        %v2345 = vunpack.c.l.b16 %v521
        %v2346 = vunpack.c.h.b16 %v521
        %v2347 = vunpack.c.l.b16 %v522
        %v2348 = vunpack.c.h.b16 %v522
        %v2349 = vunpack.c.l.b16 %v523
        %v2350 = vunpack.c.h.b16 %v523
        %v2351 = vunpack.c.l.b16 %v524
        %v2352 = vunpack.c.h.b16 %v524
        %v2353 = vunpack.c.l.b16 %v525
        %v2354 = vunpack.c.h.b16 %v525
        %v2355 = vunpack.c.l.b16 %v526
        %v2356 = vunpack.c.h.b16 %v526
        %v2357 = vunpack.c.l.b16 %v527
        %v2358 = vunpack.c.h.b16 %v527
        %v2359 = vunpack.c.l.b16 %v528
        %v2360 = vunpack.c.h.b16 %v528
        %v2361 = vunpack.c.l.b16 %v529
        %v2362 = vunpack.c.h.b16 %v529
        %v2363 = vunpack.c.l.b16 %v530
        %v2364 = vunpack.c.h.b16 %v530
        %v2365 = vunpack.c.l.b16 %v531
        %v2366 = vunpack.c.h.b16 %v531
        %v2367 = vunpack.c.l.b16 %v532
        %v2368 = vunpack.c.h.b16 %v532
        %v2369 = vunpack.c.l.b16 %v533
        %v2370 = vunpack.c.h.b16 %v533
        %v2371 = vunpack.c.l.b16 %v534
        %v2372 = vunpack.c.h.b16 %v534
        %v2373 = vunpack.c.l.b16 %v535
        %v2374 = vunpack.c.h.b16 %v535
        %v2375 = vunpack.c.l.b16 %v536
        %v2376 = vunpack.c.h.b16 %v536
        %v2377 = vunpack.c.l.b16 %v537
        %v2378 = vunpack.c.h.b16 %v537
        %v2379 = vunpack.c.l.b16 %v538
        %v2380 = vunpack.c.h.b16 %v538
        %v2381 = vunpack.c.l.b16 %v539
        %v2382 = vunpack.c.h.b16 %v539
        %v2383 = vunpack.c.l.b16 %v540
        %v2384 = vunpack.c.h.b16 %v540
        %v2385 = vunpack.c.l.b16 %v541
        %v2386 = vunpack.c.h.b16 %v541
        %v2387 = vunpack.c.l.b16 %v542
        %v2388 = vunpack.c.h.b16 %v542
        %v2389 = vunpack.c.l.b16 %v543
        %v2390 = vunpack.c.h.b16 %v543
        %v2391 = vunpack.c.l.b16 %v544
        %v2392 = vunpack.c.h.b16 %v544
        %v2393 = vunpack.c.l.b16 %v545
        %v2394 = vunpack.c.h.b16 %v545
        %v2395 = vunpack.c.l.b16 %v546
        %v2396 = vunpack.c.h.b16 %v546
        %v2397 = vunpack.c.l.b16 %v547
        %v2398 = vunpack.c.h.b16 %v547
        %v2399 = vunpack.c.l.b16 %v548
        %v2400 = vunpack.c.h.b16 %v548
        %v2401 = vunpack.c.l.b16 %v549
        %v2402 = vunpack.c.h.b16 %v549
        %v2403 = vunpack.c.l.b16 %v550
        %v2404 = vunpack.c.h.b16 %v550
        %v2405 = vunpack.c.l.b16 %v551
        %v2406 = vunpack.c.h.b16 %v551
        %v2407 = vunpack.c.l.b16 %v552
        %v2408 = vunpack.c.h.b16 %v552
        %v2409 = vunpack.c.l.b16 %v553
        %v2410 = vunpack.c.h.b16 %v553
        %v2411 = vunpack.c.l.b16 %v554
        %v2412 = vunpack.c.h.b16 %v554
        %v2413 = vunpack.c.l.b16 %v555
        %v2414 = vunpack.c.h.b16 %v555
        %v2415 = vunpack.c.l.b16 %v556
        %v2416 = vunpack.c.h.b16 %v556
        %v2417 = vunpack.c.l.b16 %v557
        %v2418 = vunpack.c.h.b16 %v557
        %v2419 = vunpack.c.l.b16 %v558
        %v2420 = vunpack.c.h.b16 %v558
        %v2421 = vunpack.c.l.b16 %v559
        %v2422 = vunpack.c.h.b16 %v559
        %v2423 = vunpack.c.l.b16 %v560
        %v2424 = vunpack.c.h.b16 %v560
        %v2425 = vunpack.c.l.b16 %v561
        %v2426 = vunpack.c.h.b16 %v561
        %v2427 = vunpack.c.l.b16 %v562
        %v2428 = vunpack.c.h.b16 %v562
        %v2429 = vunpack.c.l.b16 %v563
        %v2430 = vunpack.c.h.b16 %v563
        %v2431 = vunpack.c.l.b16 %v564
        %v2432 = vunpack.c.h.b16 %v564
        %v2433 = vunpack.c.l.b16 %v565
        %v2434 = vunpack.c.h.b16 %v565
        %v2435 = vunpack.c.l.b16 %v566
        %v2436 = vunpack.c.h.b16 %v566
        %v2437 = vunpack.c.l.b16 %v567
        %v2438 = vunpack.c.h.b16 %v567
        %v2439 = vunpack.c.l.b16 %v568
        %v2440 = vunpack.c.h.b16 %v568
        %v2441 = vunpack.c.l.b16 %v569
        %v2442 = vunpack.c.h.b16 %v569
        %v2443 = vunpack.c.l.b16 %v570
        %v2444 = vunpack.c.h.b16 %v570
        %v2445 = vunpack.c.l.b16 %v571
        %v2446 = vunpack.c.h.b16 %v571
        %v2447 = vunpack.c.l.b16 %v572
        %v2448 = vunpack.c.h.b16 %v572
        %v2449 = vunpack.c.l.b16 %v573
        %v2450 = vunpack.c.h.b16 %v573
        %v2451 = vunpack.c.l.b16 %v574
        %v2452 = vunpack.c.h.b16 %v574
        %v2453 = vunpack.c.l.b16 %v575
        %v2454 = vunpack.c.h.b16 %v575
        %v2455 = vunpack.c.l.b16 %v576
        %v2456 = vunpack.c.h.b16 %v576
        %v2457 = vunpack.c.l.b16 %v577
        %v2458 = vunpack.c.h.b16 %v577
        %v2459 = vunpack.c.l.b16 %v578
        %v2460 = vunpack.c.h.b16 %v578
        %v2461 = vunpack.c.l.b16 %v579
        %v2462 = vunpack.c.h.b16 %v579
        %v2463 = vunpack.c.l.b16 %v580
        %v2464 = vunpack.c.h.b16 %v580
        %v2465 = vunpack.c.l.b16 %v581
        %v2466 = vunpack.c.h.b16 %v581
        %v2467 = vunpack.c.l.b16 %v582
        %v2468 = vunpack.c.h.b16 %v582
        %v2469 = vunpack.c.l.b16 %v583
        %v2470 = vunpack.c.h.b16 %v583
        %v2471 = vunpack.c.l.b16 %v584
        %v2472 = vunpack.c.h.b16 %v584
        %v2473 = vunpack.c.l.b16 %v585
        %v2474 = vunpack.c.h.b16 %v585
        %v2475 = vunpack.c.l.b16 %v586
        %v2476 = vunpack.c.h.b16 %v586
        %v2477 = vunpack.c.l.b16 %v587
        %v2478 = vunpack.c.h.b16 %v587
        %v2479 = vunpack.c.l.b16 %v588
        %v2480 = vunpack.c.h.b16 %v588
        %v2481 = vunpack.c.l.b16 %v589
        %v2482 = vunpack.c.h.b16 %v589
        %v2483 = vunpack.c.l.b16 %v590
        %v2484 = vunpack.c.h.b16 %v590
        %v2485 = vunpack.c.l.b16 %v591
        %v2486 = vunpack.c.h.b16 %v591
        %v2487 = vunpack.c.l.b16 %v592
        %v2488 = vunpack.c.h.b16 %v592
        %v2489 = vunpack.c.l.b16 %v593
        %v2490 = vunpack.c.h.b16 %v593
        %v2491 = vunpack.c.l.b16 %v594
        %v2492 = vunpack.c.h.b16 %v594
        %v2493 = vunpack.c.l.b16 %v595
        %v2494 = vunpack.c.h.b16 %v595
        %v2495 = vunpack.c.l.b16 %v596
        %v2496 = vunpack.c.h.b16 %v596
        %v2497 = vunpack.c.l.b16 %v597
        %v2498 = vunpack.c.h.b16 %v597
        %v2499 = vunpack.c.l.b16 %v598
        %v2500 = vunpack.c.h.b16 %v598
        %v2501 = vunpack.c.l.b16 %v599
        %v2502 = vunpack.c.h.b16 %v599
        %v2503 = vunpack.c.l.b16 %v600
        %v2504 = vunpack.c.h.b16 %v600
        %v2505 = vunpack.c.l.b16 %v601
        %v2506 = vunpack.c.h.b16 %v601
        %v2507 = vunpack.c.l.b16 %v602
        %v2508 = vunpack.c.h.b16 %v602
        %v2509 = vunpack.c.l.b16 %v603
        %v2510 = vunpack.c.h.b16 %v603
        %v2511 = vunpack.c.l.b16 %v604
        %v2512 = vunpack.c.h.b16 %v604
        %v2513 = vunpack.c.l.b16 %v605
        %v2514 = vunpack.c.h.b16 %v605
        %v2515 = vunpack.c.l.b16 %v606
        %v2516 = vunpack.c.h.b16 %v606
        %v2517 = vunpack.c.l.b16 %v607
        %v2518 = vunpack.c.h.b16 %v607
        %v2519 = vunpack.c.l.b16 %v608
        %v2520 = vunpack.c.h.b16 %v608
        %v2521 = vunpack.c.l.b16 %v609
        %v2522 = vunpack.c.h.b16 %v609
        %v2523 = vunpack.c.l.b16 %v610
        %v2524 = vunpack.c.h.b16 %v610
        %v2525 = vunpack.c.l.b16 %v611
        %v2526 = vunpack.c.h.b16 %v611
        %v2527 = vunpack.c.l.b16 %v612
        %v2528 = vunpack.c.h.b16 %v612
        %v2529 = vunpack.c.l.b16 %v613
        %v2530 = vunpack.c.h.b16 %v613
        %v2531 = vunpack.c.l.b16 %v614
        %v2532 = vunpack.c.h.b16 %v614
        %v2533 = vunpack.c.l.b16 %v615
        %v2534 = vunpack.c.h.b16 %v615
        %v2535 = vunpack.c.l.b16 %v616
        %v2536 = vunpack.c.h.b16 %v616
        %v2537 = vunpack.c.l.b16 %v617
        %v2538 = vunpack.c.h.b16 %v617
        %v2539 = vunpack.c.l.b16 %v618
        %v2540 = vunpack.c.h.b16 %v618
        %v2541 = vunpack.c.l.b16 %v619
        %v2542 = vunpack.c.h.b16 %v619
        %v2543 = vunpack.c.l.b16 %v620
        %v2544 = vunpack.c.h.b16 %v620
        %v2545 = vunpack.c.l.b16 %v621
        %v2546 = vunpack.c.h.b16 %v621
        %v2547 = vunpack.c.l.b16 %v622
        %v2548 = vunpack.c.h.b16 %v622
        %v2549 = vunpack.c.l.b16 %v623
        %v2550 = vunpack.c.h.b16 %v623
        %v2551 = vunpack.c.l.b16 %v624
        %v2552 = vunpack.c.h.b16 %v624
        %v2553 = vunpack.c.l.b16 %v625
        %v2554 = vunpack.c.h.b16 %v625
        %v2555 = vunpack.c.l.b16 %v626
        %v2556 = vunpack.c.h.b16 %v626
        %v2557 = vunpack.c.l.b16 %v627
        %v2558 = vunpack.c.h.b16 %v627
        %v2559 = vunpack.c.l.b16 %v628
        %v2560 = vunpack.c.h.b16 %v628
        %v2561 = vunpack.c.l.b16 %v629
        %v2562 = vunpack.c.h.b16 %v629
        %v2563 = vunpack.c.l.b16 %v630
        %v2564 = vunpack.c.h.b16 %v630
        %v2565 = vunpack.c.l.b16 %v631
        %v2566 = vunpack.c.h.b16 %v631
        %v2567 = vunpack.c.l.b16 %v632
        %v2568 = vunpack.c.h.b16 %v632
        %v2569 = vunpack.c.l.b16 %v633
        %v2570 = vunpack.c.h.b16 %v633
        %v2571 = vunpack.c.l.b16 %v634
        %v2572 = vunpack.c.h.b16 %v634
        %v2573 = vunpack.c.l.b16 %v635
        %v2574 = vunpack.c.h.b16 %v635
        %v2575 = vunpack.c.l.b16 %v636
        %v2576 = vunpack.c.h.b16 %v636
        %v2577 = vunpack.c.l.b16 %v637
        %v2578 = vunpack.c.h.b16 %v637
        %v2579 = vunpack.c.l.b16 %v638
        %v2580 = vunpack.c.h.b16 %v638
        %v2581 = vunpack.c.l.b16 %v639
        %v2582 = vunpack.c.h.b16 %v639
        %v2583 = vunpack.c.l.b16 %v640
        %v2584 = vunpack.c.h.b16 %v640
        %v2585 = vunpack.c.l.b16 %v641
        %v2586 = vunpack.c.h.b16 %v641
        %v2587 = vunpack.c.l.b16 %v642
        %v2588 = vunpack.c.h.b16 %v642
        %v2589 = vunpack.c.l.b16 %v643
        %v2590 = vunpack.c.h.b16 %v643
        %v2591 = vunpack.c.l.b16 %v644
        %v2592 = vunpack.c.h.b16 %v644
        %v2593 = vunpack.c.l.b16 %v645
        %v2594 = vunpack.c.h.b16 %v645
        %v2595 = vunpack.c.l.b16 %v646
        %v2596 = vunpack.c.h.b16 %v646
        %v2597 = vunpack.c.l.b16 %v647
        %v2598 = vunpack.c.h.b16 %v647
        %v2599 = vunpack.c.l.b16 %v648
        %v2600 = vunpack.c.h.b16 %v648
        %v2601 = vunpack.c.l.b16 %v649
        %v2602 = vunpack.c.h.b16 %v649
        %v2603 = vunpack.c.l.b16 %v650
        %v2604 = vunpack.c.h.b16 %v650
        %v2605 = vunpack.c.l.b16 %v651
        %v2606 = vunpack.c.h.b16 %v651
        %v2607 = vunpack.c.l.b16 %v652
        %v2608 = vunpack.c.h.b16 %v652
        %v2609 = vunpack.c.l.b16 %v653
        %v2610 = vunpack.c.h.b16 %v653
        %v2611 = vunpack.c.l.b16 %v654
        %v2612 = vunpack.c.h.b16 %v654
        %v2613 = vunpack.c.l.b16 %v655
        %v2614 = vunpack.c.h.b16 %v655
        %v2615 = vunpack.c.l.b16 %v656
        %v2616 = vunpack.c.h.b16 %v656
        %v2617 = vunpack.c.l.b16 %v657
        %v2618 = vunpack.c.h.b16 %v657
        %v2619 = vunpack.c.l.b16 %v658
        %v2620 = vunpack.c.h.b16 %v658
        %v2621 = vunpack.c.l.b16 %v659
        %v2622 = vunpack.c.h.b16 %v659
        %v2623 = vunpack.c.l.b16 %v660
        %v2624 = vunpack.c.h.b16 %v660
        %v2625 = vunpack.c.l.b16 %v661
        %v2626 = vunpack.c.h.b16 %v661
        %v2627 = vunpack.c.l.b16 %v662
        %v2628 = vunpack.c.h.b16 %v662
        %v2629 = vunpack.c.l.b16 %v663
        %v2630 = vunpack.c.h.b16 %v663
        %v2631 = vunpack.c.l.b16 %v664
        %v2632 = vunpack.c.h.b16 %v664
        %v2633 = vunpack.c.l.b16 %v665
        %v2634 = vunpack.c.h.b16 %v665
        %v2635 = vunpack.c.l.b16 %v666
        %v2636 = vunpack.c.h.b16 %v666
        %v2637 = vunpack.c.l.b16 %v667
        %v2638 = vunpack.c.h.b16 %v667
        %v2639 = vunpack.c.l.b16 %v668
        %v2640 = vunpack.c.h.b16 %v668
        %v2641 = vunpack.c.l.b16 %v669
        %v2642 = vunpack.c.h.b16 %v669
        %v2643 = vunpack.c.l.b16 %v670
        %v2644 = vunpack.c.h.b16 %v670
        %v2645 = vunpack.c.l.b16 %v671
        %v2646 = vunpack.c.h.b16 %v671
        %v2647 = vunpack.c.l.b16 %v672
        %v2648 = vunpack.c.h.b16 %v672
        %v2649 = vunpack.c.l.b16 %v673
        %v2650 = vunpack.c.h.b16 %v673
        %v2651 = vunpack.c.l.b16 %v674
        %v2652 = vunpack.c.h.b16 %v674
        %v2653 = vunpack.c.l.b16 %v675
        %v2654 = vunpack.c.h.b16 %v675
        %v2655 = vunpack.c.l.b16 %v676
        %v2656 = vunpack.c.h.b16 %v676
        %v2657 = vunpack.c.l.b16 %v677
        %v2658 = vunpack.c.h.b16 %v677
        %v2659 = vunpack.c.l.b16 %v678
        %v2660 = vunpack.c.h.b16 %v678
        %v2661 = vunpack.c.l.b16 %v679
        %v2662 = vunpack.c.h.b16 %v679
        %v2663 = vunpack.c.l.b16 %v680
        %v2664 = vunpack.c.h.b16 %v680
        %v2665 = vunpack.c.l.b16 %v681
        %v2666 = vunpack.c.h.b16 %v681
        %v2667 = vunpack.c.l.b16 %v682
        %v2668 = vunpack.c.h.b16 %v682
        %v2669 = vunpack.c.l.b16 %v683
        %v2670 = vunpack.c.h.b16 %v683
        %v2671 = vunpack.c.l.b16 %v684
        %v2672 = vunpack.c.h.b16 %v684
        %v2673 = vunpack.c.l.b16 %v685
        %v2674 = vunpack.c.h.b16 %v685
        %v2675 = vunpack.c.l.b16 %v686
        %v2676 = vunpack.c.h.b16 %v686
        %v2677 = vunpack.c.l.b16 %v687
        %v2678 = vunpack.c.h.b16 %v687
        %v2679 = vunpack.c.l.b16 %v688
        %v2680 = vunpack.c.h.b16 %v688
        %v2681 = vunpack.c.l.b16 %v689
        %v2682 = vunpack.c.h.b16 %v689
        %v2683 = vunpack.c.l.b16 %v690
        %v2684 = vunpack.c.h.b16 %v690
        %v2685 = vunpack.c.l.b16 %v691
        %v2686 = vunpack.c.h.b16 %v691
        %v2687 = vunpack.c.l.b16 %v692
        %v2688 = vunpack.c.h.b16 %v692
        %v2689 = vunpack.c.l.b16 %v693
        %v2690 = vunpack.c.h.b16 %v693
        %v2691 = vunpack.c.l.b16 %v694
        %v2692 = vunpack.c.h.b16 %v694
        %v2693 = vunpack.c.l.b16 %v695
        %v2694 = vunpack.c.h.b16 %v695
        %v2695 = vunpack.c.l.b16 %v696
        %v2696 = vunpack.c.h.b16 %v696
        %v2697 = vunpack.c.l.b16 %v697
        %v2698 = vunpack.c.h.b16 %v697
        %v2699 = vunpack.c.l.b16 %v698
        %v2700 = vunpack.c.h.b16 %v698
        %v2701 = vunpack.c.l.b16 %v699
        %v2702 = vunpack.c.h.b16 %v699
        %v2703 = vunpack.c.l.b16 %v700
        %v2704 = vunpack.c.h.b16 %v700
        %v2705 = vunpack.c.l.b16 %v701
        %v2706 = vunpack.c.h.b16 %v701
        %v2707 = vunpack.c.l.b16 %v702
        %v2708 = vunpack.c.h.b16 %v702
        %v2709 = vunpack.c.l.b16 %v703
        %v2710 = vunpack.c.h.b16 %v703
        %v2711 = vunpack.c.l.b16 %v704
        %v2712 = vunpack.c.h.b16 %v704
        %v2713 = vunpack.c.l.b16 %v705
        %v2714 = vunpack.c.h.b16 %v705
        %v2715 = vunpack.c.l.b16 %v706
        %v2716 = vunpack.c.h.b16 %v706
        %v2717 = vunpack.c.l.b16 %v707
        %v2718 = vunpack.c.h.b16 %v707
        %v2719 = vunpack.c.l.b16 %v708
        %v2720 = vunpack.c.h.b16 %v708
        %v2721 = vunpack.c.l.b16 %v709
        %v2722 = vunpack.c.h.b16 %v709
        %v2723 = vunpack.c.l.b16 %v710
        %v2724 = vunpack.c.h.b16 %v710
        %v2725 = vunpack.c.l.b16 %v711
        %v2726 = vunpack.c.h.b16 %v711
        %v2727 = vunpack.c.l.b16 %v712
        %v2728 = vunpack.c.h.b16 %v712
        %v2729 = vunpack.c.l.b16 %v713
        %v2730 = vunpack.c.h.b16 %v713
        %v2731 = vunpack.c.l.b16 %v714
        %v2732 = vunpack.c.h.b16 %v714
        %v2733 = vunpack.c.l.b16 %v715
        %v2734 = vunpack.c.h.b16 %v715
        %v2735 = vunpack.c.l.b16 %v716
        %v2736 = vunpack.c.h.b16 %v716
        %v2737 = vunpack.c.l.b16 %v717
        %v2738 = vunpack.c.h.b16 %v717
        %v2739 = vunpack.c.l.b16 %v718
        %v2740 = vunpack.c.h.b16 %v718
        %v2741 = vunpack.c.l.b16 %v719
        %v2742 = vunpack.c.h.b16 %v719
        %v2743 = vunpack.c.l.b16 %v720
        %v2744 = vunpack.c.h.b16 %v720
        %v2745 = vunpack.c.l.b16 %v721
        %v2746 = vunpack.c.h.b16 %v721
        %v2747 = vunpack.c.l.b16 %v722
        %v2748 = vunpack.c.h.b16 %v722
        %v2749 = vunpack.c.l.b16 %v723
        %v2750 = vunpack.c.h.b16 %v723
        %v2751 = vunpack.c.l.b16 %v724
        %v2752 = vunpack.c.h.b16 %v724
        %v2753 = vunpack.c.l.b16 %v725
        %v2754 = vunpack.c.h.b16 %v725
        %v2755 = vunpack.c.l.b16 %v726
        %v2756 = vunpack.c.h.b16 %v726
        %v2757 = vunpack.c.l.b16 %v727
        %v2758 = vunpack.c.h.b16 %v727
        %v2759 = vunpack.c.l.b16 %v728
        %v2760 = vunpack.c.h.b16 %v728
        %v2761 = vunpack.c.l.b16 %v729
        %v2762 = vunpack.c.h.b16 %v729
        %v2763 = vunpack.c.l.b16 %v730
        %v2764 = vunpack.c.h.b16 %v730
        %v2765 = vunpack.c.l.b16 %v731
        %v2766 = vunpack.c.h.b16 %v731
        %v2767 = vunpack.c.l.b16 %v732
        %v2768 = vunpack.c.h.b16 %v732
        %v2769 = vunpack.c.l.b16 %v733
        %v2770 = vunpack.c.h.b16 %v733
        %v2771 = vunpack.c.l.b16 %v734
        %v2772 = vunpack.c.h.b16 %v734
        %v2773 = vunpack.c.l.b16 %v735
        %v2774 = vunpack.c.h.b16 %v735
        %v2775 = vunpack.c.l.b16 %v736
        %v2776 = vunpack.c.h.b16 %v736
        %v2777 = vunpack.c.l.b16 %v737
        %v2778 = vunpack.c.h.b16 %v737
        %v2779 = vunpack.c.l.b16 %v738
        %v2780 = vunpack.c.h.b16 %v738
        %v2781 = vunpack.c.l.b16 %v739
        %v2782 = vunpack.c.h.b16 %v739
        %v2783 = vunpack.c.l.b16 %v740
        %v2784 = vunpack.c.h.b16 %v740
        %v2785 = vunpack.c.l.b16 %v741
        %v2786 = vunpack.c.h.b16 %v741
        %v2787 = vunpack.c.l.b16 %v742
        %v2788 = vunpack.c.h.b16 %v742
        %v2789 = vunpack.c.l.b16 %v743
        %v2790 = vunpack.c.h.b16 %v743
        %v2791 = vunpack.c.l.b16 %v744
        %v2792 = vunpack.c.h.b16 %v744
        %v2793 = vunpack.c.l.b16 %v745
        %v2794 = vunpack.c.h.b16 %v745
        %v2795 = vunpack.c.l.b16 %v746
        %v2796 = vunpack.c.h.b16 %v746
        %v2797 = vunpack.c.l.b16 %v747
        %v2798 = vunpack.c.h.b16 %v747
        %v2799 = vunpack.c.l.b16 %v748
        %v2800 = vunpack.c.h.b16 %v748
        %v2801 = vunpack.c.l.b16 %v749
        %v2802 = vunpack.c.h.b16 %v749
        %v2803 = vunpack.c.l.b16 %v750
        %v2804 = vunpack.c.h.b16 %v750
        %v2805 = vunpack.c.l.b16 %v751
        %v2806 = vunpack.c.h.b16 %v751
        %v2807 = vunpack.c.l.b16 %v752
        %v2808 = vunpack.c.h.b16 %v752
        %v2809 = vunpack.c.l.b16 %v753
        %v2810 = vunpack.c.h.b16 %v753
        %v2811 = vunpack.c.l.b16 %v754
        %v2812 = vunpack.c.h.b16 %v754
        %v2813 = vunpack.c.l.b16 %v755
        %v2814 = vunpack.c.h.b16 %v755
        %v2815 = vunpack.c.l.b16 %v756
        %v2816 = vunpack.c.h.b16 %v756
        %v2817 = vunpack.c.l.b16 %v757
        %v2818 = vunpack.c.h.b16 %v757
        %v2819 = vunpack.c.l.b16 %v758
        %v2820 = vunpack.c.h.b16 %v758
        %v2821 = vunpack.c.l.b16 %v759
        %v2822 = vunpack.c.h.b16 %v759
        %v2823 = vunpack.c.l.b16 %v760
        %v2824 = vunpack.c.h.b16 %v760
        %v2825 = vunpack.c.l.b16 %v761
        %v2826 = vunpack.c.h.b16 %v761
        %v2827 = vunpack.c.l.b16 %v762
        %v2828 = vunpack.c.h.b16 %v762
        %v2829 = vunpack.c.l.b16 %v763
        %v2830 = vunpack.c.h.b16 %v763
        %v2831 = vunpack.c.l.b16 %v764
        %v2832 = vunpack.c.h.b16 %v764
        %v2833 = vunpack.c.l.b16 %v765
        %v2834 = vunpack.c.h.b16 %v765
        %v2835 = vunpack.c.l.b16 %v766
        %v2836 = vunpack.c.h.b16 %v766
        %v2837 = vunpack.c.l.b16 %v767
        %v2838 = vunpack.c.h.b16 %v767
        %v2839 = vunpack.c.l.b16 %v768
        %v2840 = vunpack.c.h.b16 %v768
        %v2841 = vunpack.c.l.b16 %v769
        %v2842 = vunpack.c.h.b16 %v769
        %v2843 = vunpack.c.l.b16 %v770
        %v2844 = vunpack.c.h.b16 %v770
        %v2845 = vunpack.c.l.b16 %v771
        %v2846 = vunpack.c.h.b16 %v771
        %v2847 = vunpack.c.l.b16 %v772
        %v2848 = vunpack.c.h.b16 %v772
        %v2849 = vunpack.c.l.b16 %v773
        %v2850 = vunpack.c.h.b16 %v773
        %v2851 = vunpack.c.l.b16 %v774
        %v2852 = vunpack.c.h.b16 %v774
        %v2853 = vunpack.c.l.b16 %v775
        %v2854 = vunpack.c.h.b16 %v775
        %v2855 = vunpack.c.l.b16 %v776
        %v2856 = vunpack.c.h.b16 %v776
        %v2857 = vunpack.c.l.b16 %v777
        %v2858 = vunpack.c.h.b16 %v777
        %v2859 = vunpack.c.l.b16 %v778
        %v2860 = vunpack.c.h.b16 %v778
        %v2861 = vunpack.c.l.b16 %v779
        %v2862 = vunpack.c.h.b16 %v779
        %v2863 = vunpack.c.l.b16 %v780
        %v2864 = vunpack.c.h.b16 %v780
        %v2865 = vunpack.c.l.b16 %v781
        %v2866 = vunpack.c.h.b16 %v781
        %v2867 = vunpack.c.l.b16 %v782
        %v2868 = vunpack.c.h.b16 %v782
        %v2869 = vunpack.c.l.b16 %v783
        %v2870 = vunpack.c.h.b16 %v783
        %v2871 = vunpack.c.l.b16 %v784
        %v2872 = vunpack.c.h.b16 %v784
        %v2873 = vunpack.c.l.b16 %v785
        %v2874 = vunpack.c.h.b16 %v785
        %v2875 = vunpack.c.l.b16 %v786
        %v2876 = vunpack.c.h.b16 %v786
        %v2877 = vunpack.c.l.b16 %v787
        %v2878 = vunpack.c.h.b16 %v787
        %v2879 = vunpack.c.l.b16 %v788
        %v2880 = vunpack.c.h.b16 %v788
        %v2881 = vunpack.c.l.b16 %v789
        %v2882 = vunpack.c.h.b16 %v789
        %v2883 = vunpack.c.l.b16 %v790
        %v2884 = vunpack.c.h.b16 %v790
        %v2885 = vunpack.c.l.b16 %v791
        %v2886 = vunpack.c.h.b16 %v791
        %v2887 = vunpack.c.l.b16 %v792
        %v2888 = vunpack.c.h.b16 %v792
        %v2889 = vunpack.c.l.b16 %v793
        %v2890 = vunpack.c.h.b16 %v793
        %v2891 = vunpack.c.l.b16 %v794
        %v2892 = vunpack.c.h.b16 %v794
        %v2893 = vunpack.c.l.b16 %v795
        %v2894 = vunpack.c.h.b16 %v795
        %v2895 = vunpack.c.l.b16 %v796
        %v2896 = vunpack.c.h.b16 %v796
        %v2897 = vunpack.c.l.b16 %v797
        %v2898 = vunpack.c.h.b16 %v797
        %v2899 = vunpack.c.l.b16 %v798
        %v2900 = vunpack.c.h.b16 %v798
        %v2901 = vunpack.c.l.b16 %v799
        %v2902 = vunpack.c.h.b16 %v799
        %v2903 = vunpack.c.l.b16 %v800
        %v2904 = vunpack.c.h.b16 %v800
        %v2905 = vunpack.c.l.b16 %v801
        %v2906 = vunpack.c.h.b16 %v801
        %v2907 = vunpack.c.l.b16 %v802
        %v2908 = vunpack.c.h.b16 %v802
        %v2909 = vunpack.c.l.b16 %v803
        %v2910 = vunpack.c.h.b16 %v803
        %v2911 = vunpack.c.l.b16 %v804
        %v2912 = vunpack.c.h.b16 %v804
        %v2913 = vunpack.c.l.b16 %v805
        %v2914 = vunpack.c.h.b16 %v805
        %v2915 = vunpack.c.l.b16 %v806
        %v2916 = vunpack.c.h.b16 %v806
        %v2917 = vunpack.c.l.b16 %v807
        %v2918 = vunpack.c.h.b16 %v807
        %v2919 = vunpack.c.l.b16 %v808
        %v2920 = vunpack.c.h.b16 %v808
        %v2921 = vunpack.c.l.b16 %v809
        %v2922 = vunpack.c.h.b16 %v809
        %v2923 = vunpack.c.l.b16 %v810
        %v2924 = vunpack.c.h.b16 %v810
        %v2925 = vunpack.c.l.b16 %v811
        %v2926 = vunpack.c.h.b16 %v811
        %v2927 = vunpack.c.l.b16 %v812
        %v2928 = vunpack.c.h.b16 %v812
        %v2929 = vunpack.c.l.b16 %v813
        %v2930 = vunpack.c.h.b16 %v813
        %v2931 = vunpack.c.l.b16 %v814
        %v2932 = vunpack.c.h.b16 %v814
        %v2933 = vunpack.c.l.b16 %v815
        %v2934 = vunpack.c.h.b16 %v815
        %v2935 = vunpack.c.l.b16 %v816
        %v2936 = vunpack.c.h.b16 %v816
        %v2937 = vunpack.c.l.b16 %v817
        %v2938 = vunpack.c.h.b16 %v817
        %v2939 = vunpack.c.l.b16 %v818
        %v2940 = vunpack.c.h.b16 %v818
        %v2941 = vunpack.c.l.b16 %v819
        %v2942 = vunpack.c.h.b16 %v819
        %v2943 = vunpack.c.l.b16 %v820
        %v2944 = vunpack.c.h.b16 %v820
        %v2945 = vunpack.c.l.b16 %v821
        %v2946 = vunpack.c.h.b16 %v821
        %v2947 = vunpack.c.l.b16 %v822
        %v2948 = vunpack.c.h.b16 %v822
        %v2949 = vunpack.c.l.b16 %v823
        %v2950 = vunpack.c.h.b16 %v823
        %v2951 = vunpack.c.l.b16 %v824
        %v2952 = vunpack.c.h.b16 %v824
        %v2953 = vunpack.c.l.b16 %v825
        %v2954 = vunpack.c.h.b16 %v825
        %v2955 = vunpack.c.l.b16 %v826
        %v2956 = vunpack.c.h.b16 %v826
        %v2957 = vunpack.c.l.b16 %v827
        %v2958 = vunpack.c.h.b16 %v827
        %v2959 = vunpack.c.l.b16 %v828
        %v2960 = vunpack.c.h.b16 %v828
        %v2961 = vunpack.c.l.b16 %v829
        %v2962 = vunpack.c.h.b16 %v829
        %v2963 = vunpack.c.l.b16 %v830
        %v2964 = vunpack.c.h.b16 %v830
        %v2965 = vunpack.c.l.b16 %v831
        %v2966 = vunpack.c.h.b16 %v831
        %v2967 = vunpack.c.l.b16 %v832
        %v2968 = vunpack.c.h.b16 %v832
        %v2969 = vunpack.c.l.b16 %v833
        %v2970 = vunpack.c.h.b16 %v833
        %v2971 = vunpack.c.l.b16 %v834
        %v2972 = vunpack.c.h.b16 %v834
        %v2973 = vunpack.c.l.b16 %v835
        %v2974 = vunpack.c.h.b16 %v835
        %v2975 = vunpack.c.l.b16 %v836
        %v2976 = vunpack.c.h.b16 %v836
        %v2977 = vunpack.c.l.b16 %v837
        %v2978 = vunpack.c.h.b16 %v837
        %v2979 = vunpack.c.l.b16 %v838
        %v2980 = vunpack.c.h.b16 %v838
        %v2981 = vunpack.c.l.b16 %v839
        %v2982 = vunpack.c.h.b16 %v839
        %v2983 = vunpack.c.l.b16 %v840
        %v2984 = vunpack.c.h.b16 %v840
        %v2985 = vunpack.c.l.b16 %v841
        %v2986 = vunpack.c.h.b16 %v841
        %v2987 = vunpack.c.l.b16 %v842
        %v2988 = vunpack.c.h.b16 %v842
        %v2989 = vunpack.c.l.b16 %v843
        %v2990 = vunpack.c.h.b16 %v843
        %v2991 = vunpack.c.l.b16 %v844
        %v2992 = vunpack.c.h.b16 %v844
        %v2993 = vunpack.c.l.b16 %v845
        %v2994 = vunpack.c.h.b16 %v845
        %v2995 = vunpack.c.l.b16 %v846
        %v2996 = vunpack.c.h.b16 %v846
        %v2997 = vunpack.c.l.b16 %v847
        %v2998 = vunpack.c.h.b16 %v847
        %v2999 = vunpack.c.l.b16 %v848
        %v3000 = vunpack.c.h.b16 %v848
        %v3001 = vunpack.c.l.b16 %v849
        %v3002 = vunpack.c.h.b16 %v849
        %v3003 = vunpack.c.l.b16 %v850
        %v3004 = vunpack.c.h.b16 %v850
        %v3005 = vunpack.c.l.b16 %v851
        %v3006 = vunpack.c.h.b16 %v851
        %v3007 = vunpack.c.l.b16 %v852
        %v3008 = vunpack.c.h.b16 %v852
        %v3009 = vunpack.c.l.b16 %v853
        %v3010 = vunpack.c.h.b16 %v853
        %v3011 = vunpack.c.l.b16 %v854
        %v3012 = vunpack.c.h.b16 %v854
        %v3013 = vunpack.c.l.b16 %v855
        %v3014 = vunpack.c.h.b16 %v855
        %v3015 = vunpack.c.l.b16 %v856
        %v3016 = vunpack.c.h.b16 %v856
        %v3017 = vunpack.c.l.b16 %v857
        %v3018 = vunpack.c.h.b16 %v857
        %v3019 = vunpack.c.l.b16 %v858
        %v3020 = vunpack.c.h.b16 %v858
        %v3021 = vunpack.c.l.b16 %v859
        %v3022 = vunpack.c.h.b16 %v859
        %v3023 = vunpack.c.l.b16 %v860
        %v3024 = vunpack.c.h.b16 %v860
        %v3025 = vunpack.c.l.b16 %v861
        %v3026 = vunpack.c.h.b16 %v861
        %v3027 = vunpack.c.l.b16 %v862
        %v3028 = vunpack.c.h.b16 %v862
        %v3029 = vunpack.c.l.b16 %v863
        %v3030 = vunpack.c.h.b16 %v863
        %v3031 = vunpack.c.l.b16 %v864
        %v3032 = vunpack.c.h.b16 %v864
        %v3033 = vunpack.c.l.b16 %v865
        %v3034 = vunpack.c.h.b16 %v865
        %v3035 = vunpack.c.l.b16 %v866
        %v3036 = vunpack.c.h.b16 %v866
        %v3037 = vunpack.c.l.b16 %v867
        %v3038 = vunpack.c.h.b16 %v867
        %v3039 = vunpack.c.l.b16 %v868
        %v3040 = vunpack.c.h.b16 %v868
        %v3041 = vunpack.c.l.b16 %v869
        %v3042 = vunpack.c.h.b16 %v869
        %v3043 = vunpack.c.l.b16 %v870
        %v3044 = vunpack.c.h.b16 %v870
        %v3045 = vunpack.c.l.b16 %v871
        %v3046 = vunpack.c.h.b16 %v871
        %v3047 = vunpack.c.l.b16 %v872
        %v3048 = vunpack.c.h.b16 %v872
        %v3049 = vunpack.c.l.b16 %v873
        %v3050 = vunpack.c.h.b16 %v873
        %v3051 = vunpack.c.l.b16 %v874
        %v3052 = vunpack.c.h.b16 %v874
        %v3053 = vunpack.c.l.b16 %v875
        %v3054 = vunpack.c.h.b16 %v875
        %v3055 = vunpack.c.l.b16 %v876
        %v3056 = vunpack.c.h.b16 %v876
        %v3057 = vunpack.c.l.b16 %v877
        %v3058 = vunpack.c.h.b16 %v877
        %v3059 = vunpack.c.l.b16 %v878
        %v3060 = vunpack.c.h.b16 %v878
        %v3061 = vunpack.c.l.b16 %v879
        %v3062 = vunpack.c.h.b16 %v879
        %v3063 = vunpack.c.l.b16 %v880
        %v3064 = vunpack.c.h.b16 %v880
        %v3065 = vunpack.c.l.b16 %v881
        %v3066 = vunpack.c.h.b16 %v881
        %v3067 = vunpack.c.l.b16 %v882
        %v3068 = vunpack.c.h.b16 %v882
        %v3069 = vunpack.c.l.b16 %v883
        %v3070 = vunpack.c.h.b16 %v883
        %v3071 = vunpack.c.l.b16 %v884
        %v3072 = vunpack.c.h.b16 %v884
        %v3073 = vunpack.c.l.b16 %v885
        %v3074 = vunpack.c.h.b16 %v885
        %v3075 = vunpack.c.l.b16 %v886
        %v3076 = vunpack.c.h.b16 %v886
        %v3077 = vunpack.c.l.b16 %v887
        %v3078 = vunpack.c.h.b16 %v887
        %v3079 = vunpack.c.l.b16 %v888
        %v3080 = vunpack.c.h.b16 %v888
        %v3081 = vunpack.c.l.b16 %v889
        %v3082 = vunpack.c.h.b16 %v889
        %v3083 = vunpack.c.l.b16 %v890
        %v3084 = vunpack.c.h.b16 %v890
        %v3085 = vunpack.c.l.b16 %v891
        %v3086 = vunpack.c.h.b16 %v891
        %v3087 = vunpack.c.l.b16 %v892
        %v3088 = vunpack.c.h.b16 %v892
        %v3089 = vunpack.c.l.b16 %v893
        %v3090 = vunpack.c.h.b16 %v893
        %v3091 = vunpack.c.l.b16 %v894
        %v3092 = vunpack.c.h.b16 %v894
        %v3093 = vunpack.c.l.b16 %v895
        %v3094 = vunpack.c.h.b16 %v895
        %v3095 = vunpack.c.l.b16 %v896
        %v3096 = vunpack.c.h.b16 %v896
        %v3097 = vunpack.c.l.b16 %v897
        %v3098 = vunpack.c.h.b16 %v897
        %v3099 = vunpack.c.l.b16 %v898
        %v3100 = vunpack.c.h.b16 %v898
        %v3101 = vunpack.c.l.b16 %v899
        %v3102 = vunpack.c.h.b16 %v899
        %v3103 = vunpack.c.l.b16 %v900
        %v3104 = vunpack.c.h.b16 %v900
        %v3105 = vunpack.c.l.b16 %v901
        %v3106 = vunpack.c.h.b16 %v901
        %v3107 = vunpack.c.l.b16 %v902
        %v3108 = vunpack.c.h.b16 %v902
        %v3109 = vunpack.c.l.b16 %v903
        %v3110 = vunpack.c.h.b16 %v903
        %v3111 = vunpack.c.l.b16 %v904
        %v3112 = vunpack.c.h.b16 %v904
        %v3113 = vunpack.c.l.b16 %v905
        %v3114 = vunpack.c.h.b16 %v905
        %v3115 = vunpack.c.l.b16 %v906
        %v3116 = vunpack.c.h.b16 %v906
        %v3117 = vunpack.c.l.b16 %v907
        %v3118 = vunpack.c.h.b16 %v907
        %v3119 = vunpack.c.l.b16 %v908
        %v3120 = vunpack.c.h.b16 %v908
        %v3121 = vunpack.c.l.b16 %v909
        %v3122 = vunpack.c.h.b16 %v909
        %v3123 = vunpack.c.l.b16 %v910
        %v3124 = vunpack.c.h.b16 %v910
        %v3125 = vunpack.c.l.b16 %v911
        %v3126 = vunpack.c.h.b16 %v911
        %v3127 = vunpack.c.l.b16 %v912
        %v3128 = vunpack.c.h.b16 %v912
        %v3129 = vunpack.c.l.b16 %v913
        %v3130 = vunpack.c.h.b16 %v913
        %v3131 = vunpack.c.l.b16 %v914
        %v3132 = vunpack.c.h.b16 %v914
        %v3133 = vunpack.c.l.b16 %v915
        %v3134 = vunpack.c.h.b16 %v915
        %v3135 = vunpack.c.l.b16 %v916
        %v3136 = vunpack.c.h.b16 %v916
        %v3137 = vunpack.c.l.b16 %v917
        %v3138 = vunpack.c.h.b16 %v917
        %v3139 = vunpack.c.l.b16 %v918
        %v3140 = vunpack.c.h.b16 %v918
        %v3141 = vunpack.c.l.b16 %v919
        %v3142 = vunpack.c.h.b16 %v919
        %v3143 = vunpack.c.l.b16 %v920
        %v3144 = vunpack.c.h.b16 %v920
        %v3145 = vunpack.c.l.b16 %v921
        %v3146 = vunpack.c.h.b16 %v921
        %v3147 = vunpack.c.l.b16 %v922
        %v3148 = vunpack.c.h.b16 %v922
        %v3149 = vunpack.c.l.b16 %v923
        %v3150 = vunpack.c.h.b16 %v923
        %v3151 = vunpack.c.l.b16 %v924
        %v3152 = vunpack.c.h.b16 %v924
        %v3153 = vunpack.c.l.b16 %v925
        %v3154 = vunpack.c.h.b16 %v925
        %v3155 = vunpack.c.l.b16 %v926
        %v3156 = vunpack.c.h.b16 %v926
        %v3157 = vunpack.c.l.b16 %v927
        %v3158 = vunpack.c.h.b16 %v927
        %v3159 = vunpack.c.l.b16 %v928
        %v3160 = vunpack.c.h.b16 %v928
        %v3161 = vunpack.c.l.b16 %v929
        %v3162 = vunpack.c.h.b16 %v929
        %v3163 = vunpack.c.l.b16 %v930
        %v3164 = vunpack.c.h.b16 %v930
        %v3165 = vunpack.c.l.b16 %v931
        %v3166 = vunpack.c.h.b16 %v931
        %v3167 = vunpack.c.l.b16 %v932
        %v3168 = vunpack.c.h.b16 %v932
        %v3169 = vunpack.c.l.b16 %v933
        %v3170 = vunpack.c.h.b16 %v933
        %v3171 = vunpack.c.l.b16 %v934
        %v3172 = vunpack.c.h.b16 %v934
        %v3173 = vunpack.c.l.b16 %v935
        %v3174 = vunpack.c.h.b16 %v935
        %v3175 = vunpack.c.l.b16 %v936
        %v3176 = vunpack.c.h.b16 %v936
        %v3177 = vunpack.c.l.b16 %v937
        %v3178 = vunpack.c.h.b16 %v937
        %v3179 = vunpack.c.l.b16 %v938
        %v3180 = vunpack.c.h.b16 %v938
        %v3181 = vunpack.c.l.b16 %v939
        %v3182 = vunpack.c.h.b16 %v939
        %v3183 = vunpack.c.l.b16 %v940
        %v3184 = vunpack.c.h.b16 %v940
        %v3185 = vunpack.c.l.b16 %v941
        %v3186 = vunpack.c.h.b16 %v941
        %v3187 = vunpack.c.l.b16 %v942
        %v3188 = vunpack.c.h.b16 %v942
        %v3189 = vunpack.c.l.b16 %v943
        %v3190 = vunpack.c.h.b16 %v943
        %v3191 = vpack.c.b16 %v1787, %v1783
        %v3192 = vpack.c.b16 %v1788, %v1784
        %v3193 = vpack.c.b16 %v1789, %v1785
        %v3194 = vpack.c.b16 %v1790, %v1786
        %v3195 = vpack.c.b16 %v1795, %v1791
        %v3196 = vpack.c.b16 %v1796, %v1792
        %v3197 = vpack.c.b16 %v1797, %v1793
        %v3198 = vpack.c.b16 %v1798, %v1794
        %v3199 = vpack.c.b16 %v1803, %v1799
        %v3200 = vpack.c.b16 %v1804, %v1800
        %v3201 = vpack.c.b16 %v1805, %v1801
        %v3202 = vpack.c.b16 %v1806, %v1802
        %v3203 = vpack.c.b16 %v1811, %v1807
        %v3204 = vpack.c.b16 %v1812, %v1808
        %v3205 = vpack.c.b16 %v1813, %v1809
        %v3206 = vpack.c.b16 %v1814, %v1810
        %v3207 = vpack.c.b16 %v1819, %v1815
        %v3208 = vpack.c.b16 %v1820, %v1816
        %v3209 = vpack.c.b16 %v1821, %v1817
        %v3210 = vpack.c.b16 %v1822, %v1818
        %v3211 = vpack.c.b16 %v1827, %v1823
        %v3212 = vpack.c.b16 %v1828, %v1824
        %v3213 = vpack.c.b16 %v1829, %v1825
        %v3214 = vpack.c.b16 %v1830, %v1826
        %v3215 = vpack.c.b16 %v1835, %v1831
        %v3216 = vpack.c.b16 %v1836, %v1832
        %v3217 = vpack.c.b16 %v1837, %v1833
        %v3218 = vpack.c.b16 %v1838, %v1834
        %v3219 = vpack.c.b16 %v1843, %v1839
        %v3220 = vpack.c.b16 %v1844, %v1840
        %v3221 = vpack.c.b16 %v1845, %v1841
        %v3222 = vpack.c.b16 %v1846, %v1842
        %v3223 = vpack.c.b16 %v1851, %v1847
        %v3224 = vpack.c.b16 %v1852, %v1848
        %v3225 = vpack.c.b16 %v1853, %v1849
        %v3226 = vpack.c.b16 %v1854, %v1850
        %v3227 = vpack.c.b16 %v1859, %v1855
        %v3228 = vpack.c.b16 %v1860, %v1856
        %v3229 = vpack.c.b16 %v1861, %v1857
        %v3230 = vpack.c.b16 %v1862, %v1858
        %v3231 = vpack.c.b16 %v1867, %v1863
        %v3232 = vpack.c.b16 %v1868, %v1864
        %v3233 = vpack.c.b16 %v1869, %v1865
        %v3234 = vpack.c.b16 %v1870, %v1866
        %v3235 = vpack.c.b16 %v1875, %v1871
        %v3236 = vpack.c.b16 %v1876, %v1872
        %v3237 = vpack.c.b16 %v1877, %v1873
        %v3238 = vpack.c.b16 %v1878, %v1874
        %v3239 = vpack.c.b16 %v1883, %v1879
        %v3240 = vpack.c.b16 %v1884, %v1880
        %v3241 = vpack.c.b16 %v1885, %v1881
        %v3242 = vpack.c.b16 %v1886, %v1882
        %v3243 = vpack.c.b16 %v1891, %v1887
        %v3244 = vpack.c.b16 %v1892, %v1888
        %v3245 = vpack.c.b16 %v1893, %v1889
        %v3246 = vpack.c.b16 %v1894, %v1890
        %v3247 = vpack.c.b16 %v1899, %v1895
        %v3248 = vpack.c.b16 %v1900, %v1896
        %v3249 = vpack.c.b16 %v1901, %v1897
        %v3250 = vpack.c.b16 %v1902, %v1898
        %v3251 = vpack.c.b16 %v1907, %v1903
        %v3252 = vpack.c.b16 %v1908, %v1904
        %v3253 = vpack.c.b16 %v1909, %v1905
        %v3254 = vpack.c.b16 %v1910, %v1906
        %v3255 = vpack.c.b16 %v1915, %v1911
        %v3256 = vpack.c.b16 %v1916, %v1912
        %v3257 = vpack.c.b16 %v1917, %v1913
        %v3258 = vpack.c.b16 %v1918, %v1914
        %v3259 = vpack.c.b16 %v1923, %v1919
        %v3260 = vpack.c.b16 %v1924, %v1920
        %v3261 = vpack.c.b16 %v1925, %v1921
        %v3262 = vpack.c.b16 %v1926, %v1922
        %v3263 = vpack.c.b16 %v1931, %v1927
        %v3264 = vpack.c.b16 %v1932, %v1928
        %v3265 = vpack.c.b16 %v1933, %v1929
        %v3266 = vpack.c.b16 %v1934, %v1930
        %v3267 = vpack.c.b16 %v1939, %v1935
        %v3268 = vpack.c.b16 %v1940, %v1936
        %v3269 = vpack.c.b16 %v1941, %v1937
        %v3270 = vpack.c.b16 %v1942, %v1938
        %v3271 = vpack.c.b16 %v1947, %v1943
        %v3272 = vpack.c.b16 %v1948, %v1944
        %v3273 = vpack.c.b16 %v1949, %v1945
        %v3274 = vpack.c.b16 %v1950, %v1946
        %v3275 = vpack.c.b16 %v1955, %v1951
        %v3276 = vpack.c.b16 %v1956, %v1952
        %v3277 = vpack.c.b16 %v1957, %v1953
        %v3278 = vpack.c.b16 %v1958, %v1954
        %v3279 = vpack.c.b16 %v1963, %v1959
        %v3280 = vpack.c.b16 %v1964, %v1960
        %v3281 = vpack.c.b16 %v1965, %v1961
        %v3282 = vpack.c.b16 %v1966, %v1962
        %v3283 = vpack.c.b16 %v1971, %v1967
        %v3284 = vpack.c.b16 %v1972, %v1968
        %v3285 = vpack.c.b16 %v1973, %v1969
        %v3286 = vpack.c.b16 %v1974, %v1970
        %v3287 = vpack.c.b16 %v1979, %v1975
        %v3288 = vpack.c.b16 %v1980, %v1976
        %v3289 = vpack.c.b16 %v1981, %v1977
        %v3290 = vpack.c.b16 %v1982, %v1978
        %v3291 = vpack.c.b16 %v1987, %v1983
        %v3292 = vpack.c.b16 %v1988, %v1984
        %v3293 = vpack.c.b16 %v1989, %v1985
        %v3294 = vpack.c.b16 %v1990, %v1986
        %v3295 = vpack.c.b16 %v1995, %v1991
        %v3296 = vpack.c.b16 %v1996, %v1992
        %v3297 = vpack.c.b16 %v1997, %v1993
        %v3298 = vpack.c.b16 %v1998, %v1994
        %v3299 = vpack.c.b16 %v2003, %v1999
        %v3300 = vpack.c.b16 %v2004, %v2000
        %v3301 = vpack.c.b16 %v2005, %v2001
        %v3302 = vpack.c.b16 %v2006, %v2002
        %v3303 = vpack.c.b16 %v2011, %v2007
        %v3304 = vpack.c.b16 %v2012, %v2008
        %v3305 = vpack.c.b16 %v2013, %v2009
        %v3306 = vpack.c.b16 %v2014, %v2010
        %v3307 = vpack.c.b16 %v2019, %v2015
        %v3308 = vpack.c.b16 %v2020, %v2016
        %v3309 = vpack.c.b16 %v2021, %v2017
        %v3310 = vpack.c.b16 %v2022, %v2018
        %v3311 = vpack.c.b16 %v2027, %v2023
        %v3312 = vpack.c.b16 %v2028, %v2024
        %v3313 = vpack.c.b16 %v2029, %v2025
        %v3314 = vpack.c.b16 %v2030, %v2026
        %v3315 = vpack.c.b16 %v2035, %v2031
        %v3316 = vpack.c.b16 %v2036, %v2032
        %v3317 = vpack.c.b16 %v2037, %v2033
        %v3318 = vpack.c.b16 %v2038, %v2034
        %v3319 = vpack.c.b16 %v2043, %v2039
        %v3320 = vpack.c.b16 %v2044, %v2040
        %v3321 = vpack.c.b16 %v2045, %v2041
        %v3322 = vpack.c.b16 %v2046, %v2042
        %v3323 = vpack.c.b16 %v2051, %v2047
        %v3324 = vpack.c.b16 %v2052, %v2048
        %v3325 = vpack.c.b16 %v2053, %v2049
        %v3326 = vpack.c.b16 %v2054, %v2050
        %v3327 = vpack.c.b16 %v2059, %v2055
        %v3328 = vpack.c.b16 %v2060, %v2056
        %v3329 = vpack.c.b16 %v2061, %v2057
        %v3330 = vpack.c.b16 %v2062, %v2058
        %v3331 = vpack.c.b16 %v2067, %v2063
        %v3332 = vpack.c.b16 %v2068, %v2064
        %v3333 = vpack.c.b16 %v2069, %v2065
        %v3334 = vpack.c.b16 %v2070, %v2066
        %v3335 = vpack.c.b16 %v2075, %v2071
        %v3336 = vpack.c.b16 %v2076, %v2072
        %v3337 = vpack.c.b16 %v2077, %v2073
        %v3338 = vpack.c.b16 %v2078, %v2074
        %v3339 = vpack.c.b16 %v2083, %v2079
        %v3340 = vpack.c.b16 %v2084, %v2080
        %v3341 = vpack.c.b16 %v2085, %v2081
        %v3342 = vpack.c.b16 %v2086, %v2082
        %v3343 = vpack.c.b16 %v2091, %v2087
        %v3344 = vpack.c.b16 %v2092, %v2088
        %v3345 = vpack.c.b16 %v2093, %v2089
        %v3346 = vpack.c.b16 %v2094, %v2090
        %v3347 = vpack.c.b16 %v2099, %v2095
        %v3348 = vpack.c.b16 %v2100, %v2096
        %v3349 = vpack.c.b16 %v2101, %v2097
        %v3350 = vpack.c.b16 %v2102, %v2098
        %v3351 = vpack.c.b16 %v2107, %v2103
        %v3352 = vpack.c.b16 %v2108, %v2104
        %v3353 = vpack.c.b16 %v2109, %v2105
        %v3354 = vpack.c.b16 %v2110, %v2106
        %v3355 = vpack.c.b16 %v2115, %v2111
        %v3356 = vpack.c.b16 %v2116, %v2112
        %v3357 = vpack.c.b16 %v2117, %v2113
        %v3358 = vpack.c.b16 %v2118, %v2114
        %v3359 = vpack.c.b16 %v2123, %v2119
        %v3360 = vpack.c.b16 %v2124, %v2120
        %v3361 = vpack.c.b16 %v2125, %v2121
        %v3362 = vpack.c.b16 %v2126, %v2122
        %v3363 = vpack.c.b16 %v2131, %v2127
        %v3364 = vpack.c.b16 %v2132, %v2128
        %v3365 = vpack.c.b16 %v2133, %v2129
        %v3366 = vpack.c.b16 %v2134, %v2130
        %v3367 = vpack.c.b16 %v2139, %v2135
        %v3368 = vpack.c.b16 %v2140, %v2136
        %v3369 = vpack.c.b16 %v2141, %v2137
        %v3370 = vpack.c.b16 %v2142, %v2138
        %v3371 = vpack.c.b16 %v2147, %v2143
        %v3372 = vpack.c.b16 %v2148, %v2144
        %v3373 = vpack.c.b16 %v2149, %v2145
        %v3374 = vpack.c.b16 %v2150, %v2146
        %v3375 = vpack.c.b16 %v2155, %v2151
        %v3376 = vpack.c.b16 %v2156, %v2152
        %v3377 = vpack.c.b16 %v2157, %v2153
        %v3378 = vpack.c.b16 %v2158, %v2154
        %v3379 = vpack.c.b16 %v2163, %v2159
        %v3380 = vpack.c.b16 %v2164, %v2160
        %v3381 = vpack.c.b16 %v2165, %v2161
        %v3382 = vpack.c.b16 %v2166, %v2162
        %v3383 = vpack.c.b16 %v2171, %v2167
        %v3384 = vpack.c.b16 %v2172, %v2168
        %v3385 = vpack.c.b16 %v2173, %v2169
        %v3386 = vpack.c.b16 %v2174, %v2170
        %v3387 = vpack.c.b16 %v2179, %v2175
        %v3388 = vpack.c.b16 %v2180, %v2176
        %v3389 = vpack.c.b16 %v2181, %v2177
        %v3390 = vpack.c.b16 %v2182, %v2178
        %v3391 = vpack.c.b16 %v2187, %v2183
        %v3392 = vpack.c.b16 %v2188, %v2184
        %v3393 = vpack.c.b16 %v2189, %v2185
        %v3394 = vpack.c.b16 %v2190, %v2186
        %v3395 = vpack.c.b16 %v2195, %v2191
        %v3396 = vpack.c.b16 %v2196, %v2192
        %v3397 = vpack.c.b16 %v2197, %v2193
        %v3398 = vpack.c.b16 %v2198, %v2194
        %v3399 = vpack.c.b16 %v2203, %v2199
        %v3400 = vpack.c.b16 %v2204, %v2200
        %v3401 = vpack.c.b16 %v2205, %v2201
        %v3402 = vpack.c.b16 %v2206, %v2202
        %v3403 = vpack.c.b16 %v2211, %v2207
        %v3404 = vpack.c.b16 %v2212, %v2208
        %v3405 = vpack.c.b16 %v2213, %v2209
        %v3406 = vpack.c.b16 %v2214, %v2210
        %v3407 = vpack.c.b16 %v2219, %v2215
        %v3408 = vpack.c.b16 %v2220, %v2216
        %v3409 = vpack.c.b16 %v2221, %v2217
        %v3410 = vpack.c.b16 %v2222, %v2218
        %v3411 = vpack.c.b16 %v2227, %v2223
        %v3412 = vpack.c.b16 %v2228, %v2224
        %v3413 = vpack.c.b16 %v2229, %v2225
        %v3414 = vpack.c.b16 %v2230, %v2226
        %v3415 = vpack.c.b16 %v2235, %v2231
        %v3416 = vpack.c.b16 %v2236, %v2232
        %v3417 = vpack.c.b16 %v2237, %v2233
        %v3418 = vpack.c.b16 %v2238, %v2234
        %v3419 = vpack.c.b16 %v2243, %v2239
        %v3420 = vpack.c.b16 %v2244, %v2240
        %v3421 = vpack.c.b16 %v2245, %v2241
        %v3422 = vpack.c.b16 %v2246, %v2242
        %v3423 = vpack.c.b16 %v2251, %v2247
        %v3424 = vpack.c.b16 %v2252, %v2248
        %v3425 = vpack.c.b16 %v2253, %v2249
        %v3426 = vpack.c.b16 %v2254, %v2250
        %v3427 = vpack.c.b16 %v2259, %v2255
        %v3428 = vpack.c.b16 %v2260, %v2256
        %v3429 = vpack.c.b16 %v2261, %v2257
        %v3430 = vpack.c.b16 %v2262, %v2258
        %v3431 = vpack.c.b16 %v2267, %v2263
        %v3432 = vpack.c.b16 %v2268, %v2264
        %v3433 = vpack.c.b16 %v2269, %v2265
        %v3434 = vpack.c.b16 %v2270, %v2266
        %v3435 = vpack.c.b16 %v2275, %v2271
        %v3436 = vpack.c.b16 %v2276, %v2272
        %v3437 = vpack.c.b16 %v2277, %v2273
        %v3438 = vpack.c.b16 %v2278, %v2274
        %v3439 = vpack.c.b16 %v2283, %v2279
        %v3440 = vpack.c.b16 %v2284, %v2280
        %v3441 = vpack.c.b16 %v2285, %v2281
        %v3442 = vpack.c.b16 %v2286, %v2282
        %v3443 = vpack.c.b16 %v2291, %v2287
        %v3444 = vpack.c.b16 %v2292, %v2288
        %v3445 = vpack.c.b16 %v2293, %v2289
        %v3446 = vpack.c.b16 %v2294, %v2290
        %v3447 = vpack.c.b16 %v2299, %v2295
        %v3448 = vpack.c.b16 %v2300, %v2296
        %v3449 = vpack.c.b16 %v2301, %v2297
        %v3450 = vpack.c.b16 %v2302, %v2298
        %v3451 = vpack.c.b16 %v2307, %v2303
        %v3452 = vpack.c.b16 %v2308, %v2304
        %v3453 = vpack.c.b16 %v2309, %v2305
        %v3454 = vpack.c.b16 %v2310, %v2306
        %v3455 = vpack.c.b16 %v2315, %v2311
        %v3456 = vpack.c.b16 %v2316, %v2312
        %v3457 = vpack.c.b16 %v2317, %v2313
        %v3458 = vpack.c.b16 %v2318, %v2314
        %v3459 = vpack.c.b16 %v2323, %v2319
        %v3460 = vpack.c.b16 %v2324, %v2320
        %v3461 = vpack.c.b16 %v2325, %v2321
        %v3462 = vpack.c.b16 %v2326, %v2322
        %v3463 = vpack.c.b16 %v2331, %v2327
        %v3464 = vpack.c.b16 %v2332, %v2328
        %v3465 = vpack.c.b16 %v2333, %v2329
        %v3466 = vpack.c.b16 %v2334, %v2330
        %v3467 = vpack.c.b16 %v2339, %v2335
        %v3468 = vpack.c.b16 %v2340, %v2336
        %v3469 = vpack.c.b16 %v2341, %v2337
        %v3470 = vpack.c.b16 %v2342, %v2338
        %v3471 = vpack.c.b16 %v2347, %v2343
        %v3472 = vpack.c.b16 %v2348, %v2344
        %v3473 = vpack.c.b16 %v2349, %v2345
        %v3474 = vpack.c.b16 %v2350, %v2346
        %v3475 = vpack.c.b16 %v2355, %v2351
        %v3476 = vpack.c.b16 %v2356, %v2352
        %v3477 = vpack.c.b16 %v2357, %v2353
        %v3478 = vpack.c.b16 %v2358, %v2354
        %v3479 = vpack.c.b16 %v2363, %v2359
        %v3480 = vpack.c.b16 %v2364, %v2360
        %v3481 = vpack.c.b16 %v2365, %v2361
        %v3482 = vpack.c.b16 %v2366, %v2362
        %v3483 = vpack.c.b16 %v2371, %v2367
        %v3484 = vpack.c.b16 %v2372, %v2368
        %v3485 = vpack.c.b16 %v2373, %v2369
        %v3486 = vpack.c.b16 %v2374, %v2370
        %v3487 = vpack.c.b16 %v2379, %v2375
        %v3488 = vpack.c.b16 %v2380, %v2376
        %v3489 = vpack.c.b16 %v2381, %v2377
        %v3490 = vpack.c.b16 %v2382, %v2378
        %v3491 = vpack.c.b16 %v2387, %v2383
        %v3492 = vpack.c.b16 %v2388, %v2384
        %v3493 = vpack.c.b16 %v2389, %v2385
        %v3494 = vpack.c.b16 %v2390, %v2386
        %v3495 = vpack.c.b16 %v2395, %v2391
        %v3496 = vpack.c.b16 %v2396, %v2392
        %v3497 = vpack.c.b16 %v2397, %v2393
        %v3498 = vpack.c.b16 %v2398, %v2394
        %v3499 = vpack.c.b16 %v2403, %v2399
        %v3500 = vpack.c.b16 %v2404, %v2400
        %v3501 = vpack.c.b16 %v2405, %v2401
        %v3502 = vpack.c.b16 %v2406, %v2402
        %v3503 = vpack.c.b16 %v2411, %v2407
        %v3504 = vpack.c.b16 %v2412, %v2408
        %v3505 = vpack.c.b16 %v2413, %v2409
        %v3506 = vpack.c.b16 %v2414, %v2410
        %v3507 = vpack.c.b16 %v2419, %v2415
        %v3508 = vpack.c.b16 %v2420, %v2416
        %v3509 = vpack.c.b16 %v2421, %v2417
        %v3510 = vpack.c.b16 %v2422, %v2418
        %v3511 = vpack.c.b16 %v2427, %v2423
        %v3512 = vpack.c.b16 %v2428, %v2424
        %v3513 = vpack.c.b16 %v2429, %v2425
        %v3514 = vpack.c.b16 %v2430, %v2426
        %v3515 = vpack.c.b16 %v2435, %v2431
        %v3516 = vpack.c.b16 %v2436, %v2432
        %v3517 = vpack.c.b16 %v2437, %v2433
        %v3518 = vpack.c.b16 %v2438, %v2434
        %v3519 = vpack.c.b16 %v2443, %v2439
        %v3520 = vpack.c.b16 %v2444, %v2440
        %v3521 = vpack.c.b16 %v2445, %v2441
        %v3522 = vpack.c.b16 %v2446, %v2442
        %v3523 = vpack.c.b16 %v2451, %v2447
        %v3524 = vpack.c.b16 %v2452, %v2448
        %v3525 = vpack.c.b16 %v2453, %v2449
        %v3526 = vpack.c.b16 %v2454, %v2450
        %v3527 = vpack.c.b16 %v2459, %v2455
        %v3528 = vpack.c.b16 %v2460, %v2456
        %v3529 = vpack.c.b16 %v2461, %v2457
        %v3530 = vpack.c.b16 %v2462, %v2458
        %v3531 = vpack.c.b16 %v2467, %v2463
        %v3532 = vpack.c.b16 %v2468, %v2464
        %v3533 = vpack.c.b16 %v2469, %v2465
        %v3534 = vpack.c.b16 %v2470, %v2466
        %v3535 = vpack.c.b16 %v2475, %v2471
        %v3536 = vpack.c.b16 %v2476, %v2472
        %v3537 = vpack.c.b16 %v2477, %v2473
        %v3538 = vpack.c.b16 %v2478, %v2474
        %v3539 = vpack.c.b16 %v2483, %v2479
        %v3540 = vpack.c.b16 %v2484, %v2480
        %v3541 = vpack.c.b16 %v2485, %v2481
        %v3542 = vpack.c.b16 %v2486, %v2482
        %v3543 = vpack.c.b16 %v2491, %v2487
        %v3544 = vpack.c.b16 %v2492, %v2488
        %v3545 = vpack.c.b16 %v2493, %v2489
        %v3546 = vpack.c.b16 %v2494, %v2490
        %v3547 = vpack.c.b16 %v2499, %v2495
        %v3548 = vpack.c.b16 %v2500, %v2496
        %v3549 = vpack.c.b16 %v2501, %v2497
        %v3550 = vpack.c.b16 %v2502, %v2498
        %v3551 = vpack.c.b16 %v2507, %v2503
        %v3552 = vpack.c.b16 %v2508, %v2504
        %v3553 = vpack.c.b16 %v2509, %v2505
        %v3554 = vpack.c.b16 %v2510, %v2506
        %v3555 = vpack.c.b16 %v2515, %v2511
        %v3556 = vpack.c.b16 %v2516, %v2512
        %v3557 = vpack.c.b16 %v2517, %v2513
        %v3558 = vpack.c.b16 %v2518, %v2514
        %v3559 = vpack.c.b16 %v2523, %v2519
        %v3560 = vpack.c.b16 %v2524, %v2520
        %v3561 = vpack.c.b16 %v2525, %v2521
        %v3562 = vpack.c.b16 %v2526, %v2522
        %v3563 = vpack.c.b16 %v2531, %v2527
        %v3564 = vpack.c.b16 %v2532, %v2528
        %v3565 = vpack.c.b16 %v2533, %v2529
        %v3566 = vpack.c.b16 %v2534, %v2530
        %v3567 = vpack.c.b16 %v2539, %v2535
        %v3568 = vpack.c.b16 %v2540, %v2536
        %v3569 = vpack.c.b16 %v2541, %v2537
        %v3570 = vpack.c.b16 %v2542, %v2538
        %v3571 = vpack.c.b16 %v2547, %v2543
        %v3572 = vpack.c.b16 %v2548, %v2544
        %v3573 = vpack.c.b16 %v2549, %v2545
        %v3574 = vpack.c.b16 %v2550, %v2546
        %v3575 = vpack.c.b16 %v2555, %v2551
        %v3576 = vpack.c.b16 %v2556, %v2552
        %v3577 = vpack.c.b16 %v2557, %v2553
        %v3578 = vpack.c.b16 %v2558, %v2554
        %v3579 = vpack.c.b16 %v2563, %v2559
        %v3580 = vpack.c.b16 %v2564, %v2560
        %v3581 = vpack.c.b16 %v2565, %v2561
        %v3582 = vpack.c.b16 %v2566, %v2562
        %v3583 = vpack.c.b16 %v2571, %v2567
        %v3584 = vpack.c.b16 %v2572, %v2568
        %v3585 = vpack.c.b16 %v2573, %v2569
        %v3586 = vpack.c.b16 %v2574, %v2570
        %v3587 = vpack.c.b16 %v2579, %v2575
        %v3588 = vpack.c.b16 %v2580, %v2576
        %v3589 = vpack.c.b16 %v2581, %v2577
        %v3590 = vpack.c.b16 %v2582, %v2578
        %v3591 = vpack.c.b16 %v2587, %v2583
        %v3592 = vpack.c.b16 %v2588, %v2584
        %v3593 = vpack.c.b16 %v2589, %v2585
        %v3594 = vpack.c.b16 %v2590, %v2586
        %v3595 = vpack.c.b16 %v2595, %v2591
        %v3596 = vpack.c.b16 %v2596, %v2592
        %v3597 = vpack.c.b16 %v2597, %v2593
        %v3598 = vpack.c.b16 %v2598, %v2594
        %v3599 = vpack.c.b16 %v2603, %v2599
        %v3600 = vpack.c.b16 %v2604, %v2600
        %v3601 = vpack.c.b16 %v2605, %v2601
        %v3602 = vpack.c.b16 %v2606, %v2602
        %v3603 = vpack.c.b16 %v2611, %v2607
        %v3604 = vpack.c.b16 %v2612, %v2608
        %v3605 = vpack.c.b16 %v2613, %v2609
        %v3606 = vpack.c.b16 %v2614, %v2610
        %v3607 = vpack.c.b16 %v2619, %v2615
        %v3608 = vpack.c.b16 %v2620, %v2616
        %v3609 = vpack.c.b16 %v2621, %v2617
        %v3610 = vpack.c.b16 %v2622, %v2618
        %v3611 = vpack.c.b16 %v2627, %v2623
        %v3612 = vpack.c.b16 %v2628, %v2624
        %v3613 = vpack.c.b16 %v2629, %v2625
        %v3614 = vpack.c.b16 %v2630, %v2626
        %v3615 = vpack.c.b16 %v2635, %v2631
        %v3616 = vpack.c.b16 %v2636, %v2632
        %v3617 = vpack.c.b16 %v2637, %v2633
        %v3618 = vpack.c.b16 %v2638, %v2634
        %v3619 = vpack.c.b16 %v2643, %v2639
        %v3620 = vpack.c.b16 %v2644, %v2640
        %v3621 = vpack.c.b16 %v2645, %v2641
        %v3622 = vpack.c.b16 %v2646, %v2642
        %v3623 = vpack.c.b16 %v2651, %v2647
        %v3624 = vpack.c.b16 %v2652, %v2648
        %v3625 = vpack.c.b16 %v2653, %v2649
        %v3626 = vpack.c.b16 %v2654, %v2650
        %v3627 = vpack.c.b16 %v2659, %v2655
        %v3628 = vpack.c.b16 %v2660, %v2656
        %v3629 = vpack.c.b16 %v2661, %v2657
        %v3630 = vpack.c.b16 %v2662, %v2658
        %v3631 = vpack.c.b16 %v2667, %v2663
        %v3632 = vpack.c.b16 %v2668, %v2664
        %v3633 = vpack.c.b16 %v2669, %v2665
        %v3634 = vpack.c.b16 %v2670, %v2666
        %v3635 = vpack.c.b16 %v2675, %v2671
        %v3636 = vpack.c.b16 %v2676, %v2672
        %v3637 = vpack.c.b16 %v2677, %v2673
        %v3638 = vpack.c.b16 %v2678, %v2674
        %v3639 = vpack.c.b16 %v2683, %v2679
        %v3640 = vpack.c.b16 %v2684, %v2680
        %v3641 = vpack.c.b16 %v2685, %v2681
        %v3642 = vpack.c.b16 %v2686, %v2682
        %v3643 = vpack.c.b16 %v2691, %v2687
        %v3644 = vpack.c.b16 %v2692, %v2688
        %v3645 = vpack.c.b16 %v2693, %v2689
        %v3646 = vpack.c.b16 %v2694, %v2690
        %v3647 = vpack.c.b16 %v2699, %v2695
        %v3648 = vpack.c.b16 %v2700, %v2696
        %v3649 = vpack.c.b16 %v2701, %v2697
        %v3650 = vpack.c.b16 %v2702, %v2698
        %v3651 = vpack.c.b16 %v2707, %v2703
        %v3652 = vpack.c.b16 %v2708, %v2704
        %v3653 = vpack.c.b16 %v2709, %v2705
        %v3654 = vpack.c.b16 %v2710, %v2706
        %v3655 = vpack.c.b16 %v2715, %v2711
        %v3656 = vpack.c.b16 %v2716, %v2712
        %v3657 = vpack.c.b16 %v2717, %v2713
        %v3658 = vpack.c.b16 %v2718, %v2714
        %v3659 = vpack.c.b16 %v2723, %v2719
        %v3660 = vpack.c.b16 %v2724, %v2720
        %v3661 = vpack.c.b16 %v2725, %v2721
        %v3662 = vpack.c.b16 %v2726, %v2722
        %v3663 = vpack.c.b16 %v2731, %v2727
        %v3664 = vpack.c.b16 %v2732, %v2728
        %v3665 = vpack.c.b16 %v2733, %v2729
        %v3666 = vpack.c.b16 %v2734, %v2730
        %v3667 = vpack.c.b16 %v2739, %v2735
        %v3668 = vpack.c.b16 %v2740, %v2736
        %v3669 = vpack.c.b16 %v2741, %v2737
        %v3670 = vpack.c.b16 %v2742, %v2738
        %v3671 = vpack.c.b16 %v2747, %v2743
        %v3672 = vpack.c.b16 %v2748, %v2744
        %v3673 = vpack.c.b16 %v2749, %v2745
        %v3674 = vpack.c.b16 %v2750, %v2746
        %v3675 = vpack.c.b16 %v2755, %v2751
        %v3676 = vpack.c.b16 %v2756, %v2752
        %v3677 = vpack.c.b16 %v2757, %v2753
        %v3678 = vpack.c.b16 %v2758, %v2754
        %v3679 = vpack.c.b16 %v2763, %v2759
        %v3680 = vpack.c.b16 %v2764, %v2760
        %v3681 = vpack.c.b16 %v2765, %v2761
        %v3682 = vpack.c.b16 %v2766, %v2762
        %v3683 = vpack.c.b16 %v2771, %v2767
        %v3684 = vpack.c.b16 %v2772, %v2768
        %v3685 = vpack.c.b16 %v2773, %v2769
        %v3686 = vpack.c.b16 %v2774, %v2770
        %v3687 = vpack.c.b16 %v2779, %v2775
        %v3688 = vpack.c.b16 %v2780, %v2776
        %v3689 = vpack.c.b16 %v2781, %v2777
        %v3690 = vpack.c.b16 %v2782, %v2778
        %v3691 = vpack.c.b16 %v2787, %v2783
        %v3692 = vpack.c.b16 %v2788, %v2784
        %v3693 = vpack.c.b16 %v2789, %v2785
        %v3694 = vpack.c.b16 %v2790, %v2786
        %v3695 = vpack.c.b16 %v2795, %v2791
        %v3696 = vpack.c.b16 %v2796, %v2792
        %v3697 = vpack.c.b16 %v2797, %v2793
        %v3698 = vpack.c.b16 %v2798, %v2794
        %v3699 = vpack.c.b16 %v2803, %v2799
        %v3700 = vpack.c.b16 %v2804, %v2800
        %v3701 = vpack.c.b16 %v2805, %v2801
        %v3702 = vpack.c.b16 %v2806, %v2802
        %v3703 = vpack.c.b16 %v2811, %v2807
        %v3704 = vpack.c.b16 %v2812, %v2808
        %v3705 = vpack.c.b16 %v2813, %v2809
        %v3706 = vpack.c.b16 %v2814, %v2810
        %v3707 = vpack.c.b16 %v2819, %v2815
        %v3708 = vpack.c.b16 %v2820, %v2816
        %v3709 = vpack.c.b16 %v2821, %v2817
        %v3710 = vpack.c.b16 %v2822, %v2818
        %v3711 = vpack.c.b16 %v2827, %v2823
        %v3712 = vpack.c.b16 %v2828, %v2824
        %v3713 = vpack.c.b16 %v2829, %v2825
        %v3714 = vpack.c.b16 %v2830, %v2826
        %v3715 = vpack.c.b16 %v2835, %v2831
        %v3716 = vpack.c.b16 %v2836, %v2832
        %v3717 = vpack.c.b16 %v2837, %v2833
        %v3718 = vpack.c.b16 %v2838, %v2834
        %v3719 = vpack.c.b16 %v2843, %v2839
        %v3720 = vpack.c.b16 %v2844, %v2840
        %v3721 = vpack.c.b16 %v2845, %v2841
        %v3722 = vpack.c.b16 %v2846, %v2842
        %v3723 = vpack.c.b16 %v2851, %v2847
        %v3724 = vpack.c.b16 %v2852, %v2848
        %v3725 = vpack.c.b16 %v2853, %v2849
        %v3726 = vpack.c.b16 %v2854, %v2850
        %v3727 = vpack.c.b16 %v2859, %v2855
        %v3728 = vpack.c.b16 %v2860, %v2856
        %v3729 = vpack.c.b16 %v2861, %v2857
        %v3730 = vpack.c.b16 %v2862, %v2858
        %v3731 = vpack.c.b16 %v2867, %v2863
        %v3732 = vpack.c.b16 %v2868, %v2864
        %v3733 = vpack.c.b16 %v2869, %v2865
        %v3734 = vpack.c.b16 %v2870, %v2866
        %v3735 = vpack.c.b16 %v2875, %v2871
        %v3736 = vpack.c.b16 %v2876, %v2872
        %v3737 = vpack.c.b16 %v2877, %v2873
        %v3738 = vpack.c.b16 %v2878, %v2874
        %v3739 = vpack.c.b16 %v2883, %v2879
        %v3740 = vpack.c.b16 %v2884, %v2880
        %v3741 = vpack.c.b16 %v2885, %v2881
        %v3742 = vpack.c.b16 %v2886, %v2882
        %v3743 = vpack.c.b16 %v2891, %v2887
        %v3744 = vpack.c.b16 %v2892, %v2888
        %v3745 = vpack.c.b16 %v2893, %v2889
        %v3746 = vpack.c.b16 %v2894, %v2890
        %v3747 = vpack.c.b16 %v2899, %v2895
        %v3748 = vpack.c.b16 %v2900, %v2896
        %v3749 = vpack.c.b16 %v2901, %v2897
        %v3750 = vpack.c.b16 %v2902, %v2898
        %v3751 = vpack.c.b16 %v2907, %v2903
        %v3752 = vpack.c.b16 %v2908, %v2904
        %v3753 = vpack.c.b16 %v2909, %v2905
        %v3754 = vpack.c.b16 %v2910, %v2906
        %v3755 = vpack.c.b16 %v2915, %v2911
        %v3756 = vpack.c.b16 %v2916, %v2912
        %v3757 = vpack.c.b16 %v2917, %v2913
        %v3758 = vpack.c.b16 %v2918, %v2914
        %v3759 = vpack.c.b16 %v2923, %v2919
        %v3760 = vpack.c.b16 %v2924, %v2920
        %v3761 = vpack.c.b16 %v2925, %v2921
        %v3762 = vpack.c.b16 %v2926, %v2922
        %v3763 = vpack.c.b16 %v2931, %v2927
        %v3764 = vpack.c.b16 %v2932, %v2928
        %v3765 = vpack.c.b16 %v2933, %v2929
        %v3766 = vpack.c.b16 %v2934, %v2930
        %v3767 = vpack.c.b16 %v2939, %v2935
        %v3768 = vpack.c.b16 %v2940, %v2936
        %v3769 = vpack.c.b16 %v2941, %v2937
        %v3770 = vpack.c.b16 %v2942, %v2938
        %v3771 = vpack.c.b16 %v2947, %v2943
        %v3772 = vpack.c.b16 %v2948, %v2944
        %v3773 = vpack.c.b16 %v2949, %v2945
        %v3774 = vpack.c.b16 %v2950, %v2946
        %v3775 = vpack.c.b16 %v2955, %v2951
        %v3776 = vpack.c.b16 %v2956, %v2952
        %v3777 = vpack.c.b16 %v2957, %v2953
        %v3778 = vpack.c.b16 %v2958, %v2954
        %v3779 = vpack.c.b16 %v2963, %v2959
        %v3780 = vpack.c.b16 %v2964, %v2960
        %v3781 = vpack.c.b16 %v2965, %v2961
        %v3782 = vpack.c.b16 %v2966, %v2962
        %v3783 = vpack.c.b16 %v2971, %v2967
        %v3784 = vpack.c.b16 %v2972, %v2968
        %v3785 = vpack.c.b16 %v2973, %v2969
        %v3786 = vpack.c.b16 %v2974, %v2970
        %v3787 = vpack.c.b16 %v2979, %v2975
        %v3788 = vpack.c.b16 %v2980, %v2976
        %v3789 = vpack.c.b16 %v2981, %v2977
        %v3790 = vpack.c.b16 %v2982, %v2978
        %v3791 = vpack.c.b16 %v2987, %v2983
        %v3792 = vpack.c.b16 %v2988, %v2984
        %v3793 = vpack.c.b16 %v2989, %v2985
        %v3794 = vpack.c.b16 %v2990, %v2986
        %v3795 = vpack.c.b16 %v2995, %v2991
        %v3796 = vpack.c.b16 %v2996, %v2992
        %v3797 = vpack.c.b16 %v2997, %v2993
        %v3798 = vpack.c.b16 %v2998, %v2994
        %v3799 = vpack.c.b16 %v3003, %v2999
        %v3800 = vpack.c.b16 %v3004, %v3000
        %v3801 = vpack.c.b16 %v3005, %v3001
        %v3802 = vpack.c.b16 %v3006, %v3002
        %v3803 = vpack.c.b16 %v3011, %v3007
        %v3804 = vpack.c.b16 %v3012, %v3008
        %v3805 = vpack.c.b16 %v3013, %v3009
        %v3806 = vpack.c.b16 %v3014, %v3010
        %v3807 = vpack.c.b16 %v3019, %v3015
        %v3808 = vpack.c.b16 %v3020, %v3016
        %v3809 = vpack.c.b16 %v3021, %v3017
        %v3810 = vpack.c.b16 %v3022, %v3018
        %v3811 = vpack.c.b16 %v3027, %v3023
        %v3812 = vpack.c.b16 %v3028, %v3024
        %v3813 = vpack.c.b16 %v3029, %v3025
        %v3814 = vpack.c.b16 %v3030, %v3026
        %v3815 = vpack.c.b16 %v3035, %v3031
        %v3816 = vpack.c.b16 %v3036, %v3032
        %v3817 = vpack.c.b16 %v3037, %v3033
        %v3818 = vpack.c.b16 %v3038, %v3034
        %v3819 = vpack.c.b16 %v3043, %v3039
        %v3820 = vpack.c.b16 %v3044, %v3040
        %v3821 = vpack.c.b16 %v3045, %v3041
        %v3822 = vpack.c.b16 %v3046, %v3042
        %v3823 = vpack.c.b16 %v3051, %v3047
        %v3824 = vpack.c.b16 %v3052, %v3048
        %v3825 = vpack.c.b16 %v3053, %v3049
        %v3826 = vpack.c.b16 %v3054, %v3050
        %v3827 = vpack.c.b16 %v3059, %v3055
        %v3828 = vpack.c.b16 %v3060, %v3056
        %v3829 = vpack.c.b16 %v3061, %v3057
        %v3830 = vpack.c.b16 %v3062, %v3058
        %v3831 = vpack.c.b16 %v3067, %v3063
        %v3832 = vpack.c.b16 %v3068, %v3064
        %v3833 = vpack.c.b16 %v3069, %v3065
        %v3834 = vpack.c.b16 %v3070, %v3066
        %v3835 = vpack.c.b16 %v3075, %v3071
        %v3836 = vpack.c.b16 %v3076, %v3072
        %v3837 = vpack.c.b16 %v3077, %v3073
        %v3838 = vpack.c.b16 %v3078, %v3074
        %v3839 = vpack.c.b16 %v3083, %v3079
        %v3840 = vpack.c.b16 %v3084, %v3080
        %v3841 = vpack.c.b16 %v3085, %v3081
        %v3842 = vpack.c.b16 %v3086, %v3082
        %v3843 = vpack.c.b16 %v3091, %v3087
        %v3844 = vpack.c.b16 %v3092, %v3088
        %v3845 = vpack.c.b16 %v3093, %v3089
        %v3846 = vpack.c.b16 %v3094, %v3090
        %v3847 = vpack.c.b16 %v3099, %v3095
        %v3848 = vpack.c.b16 %v3100, %v3096
        %v3849 = vpack.c.b16 %v3101, %v3097
        %v3850 = vpack.c.b16 %v3102, %v3098
        %v3851 = vpack.c.b16 %v3107, %v3103
        %v3852 = vpack.c.b16 %v3108, %v3104
        %v3853 = vpack.c.b16 %v3109, %v3105
        %v3854 = vpack.c.b16 %v3110, %v3106
        %v3855 = vpack.c.b16 %v3115, %v3111
        %v3856 = vpack.c.b16 %v3116, %v3112
        %v3857 = vpack.c.b16 %v3117, %v3113
        %v3858 = vpack.c.b16 %v3118, %v3114
        %v3859 = vpack.c.b16 %v3123, %v3119
        %v3860 = vpack.c.b16 %v3124, %v3120
        %v3861 = vpack.c.b16 %v3125, %v3121
        %v3862 = vpack.c.b16 %v3126, %v3122
        %v3863 = vpack.c.b16 %v3131, %v3127
        %v3864 = vpack.c.b16 %v3132, %v3128
        %v3865 = vpack.c.b16 %v3133, %v3129
        %v3866 = vpack.c.b16 %v3134, %v3130
        %v3867 = vpack.c.b16 %v3139, %v3135
        %v3868 = vpack.c.b16 %v3140, %v3136
        %v3869 = vpack.c.b16 %v3141, %v3137
        %v3870 = vpack.c.b16 %v3142, %v3138
        %v3871 = vpack.c.b16 %v3147, %v3143
        %v3872 = vpack.c.b16 %v3148, %v3144
        %v3873 = vpack.c.b16 %v3149, %v3145
        %v3874 = vpack.c.b16 %v3150, %v3146
        %v3875 = vpack.c.b16 %v3155, %v3151
        %v3876 = vpack.c.b16 %v3156, %v3152
        %v3877 = vpack.c.b16 %v3157, %v3153
        %v3878 = vpack.c.b16 %v3158, %v3154
        %v3879 = vpack.c.b16 %v3163, %v3159
        %v3880 = vpack.c.b16 %v3164, %v3160
        %v3881 = vpack.c.b16 %v3165, %v3161
        %v3882 = vpack.c.b16 %v3166, %v3162
        %v3883 = vpack.c.b16 %v3171, %v3167
        %v3884 = vpack.c.b16 %v3172, %v3168
        %v3885 = vpack.c.b16 %v3173, %v3169
        %v3886 = vpack.c.b16 %v3174, %v3170
        %v3887 = vpack.c.b16 %v3179, %v3175
        %v3888 = vpack.c.b16 %v3180, %v3176
        %v3889 = vpack.c.b16 %v3181, %v3177
        %v3890 = vpack.c.b16 %v3182, %v3178
        %v3891 = vpack.c.b16 %v3187, %v3183
        %v3892 = vpack.c.b16 %v3188, %v3184
        %v3893 = vpack.c.b16 %v3189, %v3185
        %v3894 = vpack.c.b16 %v3190, %v3186
        %4599 = vmatprep.subr.bf16.mxu0 %v3192
        %4600 = vmatpush1.bf16.msra.mxu0 %v3191
        %4601 = vmatprep.subr.bf16.mxu0 %v3196
        %4602 = vmatpush1.bf16.msra.mxu0 %v3195
        %4603 = vmatprep.subr.bf16.mxu0 %v3200
        %4604 = vmatpush1.bf16.msra.mxu0 %v3199
        %4605 = vmatprep.subr.bf16.mxu0 %v3204
        %4606 = vmatpush1.bf16.msra.mxu0 %v3203
        %4607 = vmatprep.subr.bf16.mxu0 %v3208
        %4608 = vmatpush1.bf16.msra.mxu0 %v3207
        %4609 = vmatprep.subr.bf16.mxu0 %v3212
        %4610 = vmatpush1.bf16.msra.mxu0 %v3211
        %4611 = vmatprep.subr.bf16.mxu0 %v3216
        %4612 = vmatpush1.bf16.msra.mxu0 %v3215
        %4613 = vmatprep.subr.bf16.mxu0 %v3220
        %4614 = vmatpush1.bf16.msra.mxu0 %v3219
        %4615 = vmatprep.subr.bf16.mxu0 %v3224
        %4616 = vmatpush1.bf16.msra.mxu0 %v3223
        %4617 = vmatprep.subr.bf16.mxu0 %v3228
        %4618 = vmatpush1.bf16.msra.mxu0 %v3227
        %4619 = vmatprep.subr.bf16.mxu0 %v3232
        %4620 = vmatpush1.bf16.msra.mxu0 %v3231
        %4621 = vmatprep.subr.bf16.mxu0 %v3236
        %4622 = vmatpush1.bf16.msra.mxu0 %v3235
        %4623 = vmatprep.subr.bf16.mxu0 %v3240
        %4624 = vmatpush1.bf16.msra.mxu0 %v3239
        %4625 = vmatprep.subr.bf16.mxu0 %v3244
        %4626 = vmatpush1.bf16.msra.mxu0 %v3243
        %4627 = vmatprep.subr.bf16.mxu0 %v3248
        %4628 = vmatpush1.bf16.msra.mxu0 %v3247
        %4629 = vmatprep.subr.bf16.mxu0 %v3252
        %4630 = vmatpush1.bf16.msra.mxu0 %v3251
        %4631 = vmatprep.mubr.bf16.mxu0 %v1036
        %4632 = vmatmul.mubr.bf16.gmra.mrb[0].mxu0 %v1035
        %v4633 = vpop.f32.mrb[0].mxu0
        %v4634 = vadd.f32 %v952, %v4633
        %v4635 = vpop.f32.mrb[0].mxu0
        %v4636 = vadd.f32 %v956, %v4635
        %v4637 = vpop.f32.mrb[0].mxu0
        %v4638 = vadd.f32 %v952, %v4637
        %v4639 = vpop.f32.mrb[0].mxu0
        %v4640 = vadd.f32 %v956, %v4639
        %4641 = vdwg.mxu0
        %4642 = vmatprep.subr.bf16.mxu0 %v3256
        %4643 = vmatpush1.bf16.msra.mxu0 %v3255
        %4644 = vmatprep.subr.bf16.mxu0 %v3260
        %4645 = vmatpush1.bf16.msra.mxu0 %v3259
        %4646 = vmatprep.subr.bf16.mxu0 %v3264
        %4647 = vmatpush1.bf16.msra.mxu0 %v3263
        %4648 = vmatprep.subr.bf16.mxu0 %v3268
        %4649 = vmatpush1.bf16.msra.mxu0 %v3267
        %4650 = vmatprep.subr.bf16.mxu0 %v3272
        %4651 = vmatpush1.bf16.msra.mxu0 %v3271
        %4652 = vmatprep.subr.bf16.mxu0 %v3276
        %4653 = vmatpush1.bf16.msra.mxu0 %v3275
        %4654 = vmatprep.subr.bf16.mxu0 %v3280
        %4655 = vmatpush1.bf16.msra.mxu0 %v3279
        %4656 = vmatprep.subr.bf16.mxu0 %v3284
        %4657 = vmatpush1.bf16.msra.mxu0 %v3283
        %4658 = vmatprep.subr.bf16.mxu0 %v3288
        %4659 = vmatpush1.bf16.msra.mxu0 %v3287
        %4660 = vmatprep.subr.bf16.mxu0 %v3292
        %4661 = vmatpush1.bf16.msra.mxu0 %v3291
        %4662 = vmatprep.subr.bf16.mxu0 %v3296
        %4663 = vmatpush1.bf16.msra.mxu0 %v3295
        %4664 = vmatprep.subr.bf16.mxu0 %v3300
        %4665 = vmatpush1.bf16.msra.mxu0 %v3299
        %4666 = vmatprep.subr.bf16.mxu0 %v3304
        %4667 = vmatpush1.bf16.msra.mxu0 %v3303
        %4668 = vmatprep.subr.bf16.mxu0 %v3308
        %4669 = vmatpush1.bf16.msra.mxu0 %v3307
        %4670 = vmatprep.subr.bf16.mxu0 %v3312
        %4671 = vmatpush1.bf16.msra.mxu0 %v3311
        %4672 = vmatprep.subr.bf16.mxu0 %v3316
        %4673 = vmatpush1.bf16.msra.mxu0 %v3315
        %4674 = vmatprep.mubr.bf16.mxu0 %v1038
        %4675 = vmatmul.mubr.bf16.gmra.mrb[0].mxu0 %v1037
        %v4676 = vpop.f32.mrb[0].mxu0
        %v4677 = vadd.f32 %v4634, %v4676
        %v4678 = vpop.f32.mrb[0].mxu0
        %v4679 = vadd.f32 %v4636, %v4678
        %v4680 = vpop.f32.mrb[0].mxu0
        %v4681 = vadd.f32 %v4638, %v4680
        %v4682 = vpop.f32.mrb[0].mxu0
        %v4683 = vadd.f32 %v4640, %v4682
        %4684 = vdwg.mxu0
        %4685 = vmatprep.subr.bf16.mxu0 %v3320
        %4686 = vmatpush1.bf16.msra.mxu0 %v3319
        %4687 = vmatprep.subr.bf16.mxu0 %v3324
        %4688 = vmatpush1.bf16.msra.mxu0 %v3323
        %4689 = vmatprep.subr.bf16.mxu0 %v3328
        %4690 = vmatpush1.bf16.msra.mxu0 %v3327
        %4691 = vmatprep.subr.bf16.mxu0 %v3332
        %4692 = vmatpush1.bf16.msra.mxu0 %v3331
        %4693 = vmatprep.subr.bf16.mxu0 %v3336
        %4694 = vmatpush1.bf16.msra.mxu0 %v3335
        %4695 = vmatprep.subr.bf16.mxu0 %v3340
        %4696 = vmatpush1.bf16.msra.mxu0 %v3339
        %4697 = vmatprep.subr.bf16.mxu0 %v3344
        %4698 = vmatpush1.bf16.msra.mxu0 %v3343
        %4699 = vmatprep.subr.bf16.mxu0 %v3348
        %4700 = vmatpush1.bf16.msra.mxu0 %v3347
        %4701 = vmatprep.subr.bf16.mxu0 %v3352
        %4702 = vmatpush1.bf16.msra.mxu0 %v3351
        %4703 = vmatprep.subr.bf16.mxu0 %v3356
        %4704 = vmatpush1.bf16.msra.mxu0 %v3355
        %4705 = vmatprep.subr.bf16.mxu0 %v3360
        %4706 = vmatpush1.bf16.msra.mxu0 %v3359
        %4707 = vmatprep.subr.bf16.mxu0 %v3364
        %4708 = vmatpush1.bf16.msra.mxu0 %v3363
        %4709 = vmatprep.subr.bf16.mxu0 %v3368
        %4710 = vmatpush1.bf16.msra.mxu0 %v3367
        %4711 = vmatprep.subr.bf16.mxu0 %v3372
        %4712 = vmatpush1.bf16.msra.mxu0 %v3371
        %4713 = vmatprep.subr.bf16.mxu0 %v3376
        %4714 = vmatpush1.bf16.msra.mxu0 %v3375
        %4715 = vmatprep.subr.bf16.mxu0 %v3380
        %4716 = vmatpush1.bf16.msra.mxu0 %v3379
        %4717 = vmatprep.mubr.bf16.mxu0 %v1040
        %4718 = vmatmul.mubr.bf16.gmra.mrb[0].mxu0 %v1039
        %v4719 = vpop.f32.mrb[0].mxu0
        %v4720 = vadd.f32 %v4677, %v4719
        %v4721 = vpop.f32.mrb[0].mxu0
        %v4722 = vadd.f32 %v4679, %v4721
        %v4723 = vpop.f32.mrb[0].mxu0
        %v4724 = vadd.f32 %v4681, %v4723
        %v4725 = vpop.f32.mrb[0].mxu0
        %v4726 = vadd.f32 %v4683, %v4725
        %4727 = vdwg.mxu0
        %4728 = vmatprep.subr.bf16.mxu0 %v3384
        %4729 = vmatpush1.bf16.msra.mxu0 %v3383
        %4730 = vmatprep.subr.bf16.mxu0 %v3388
        %4731 = vmatpush1.bf16.msra.mxu0 %v3387
        %4732 = vmatprep.subr.bf16.mxu0 %v3392
        %4733 = vmatpush1.bf16.msra.mxu0 %v3391
        %4734 = vmatprep.subr.bf16.mxu0 %v3396
        %4735 = vmatpush1.bf16.msra.mxu0 %v3395
        %4736 = vmatprep.subr.bf16.mxu0 %v3400
        %4737 = vmatpush1.bf16.msra.mxu0 %v3399
        %4738 = vmatprep.subr.bf16.mxu0 %v3404
        %4739 = vmatpush1.bf16.msra.mxu0 %v3403
        %4740 = vmatprep.subr.bf16.mxu0 %v3408
        %4741 = vmatpush1.bf16.msra.mxu0 %v3407
        %4742 = vmatprep.subr.bf16.mxu0 %v3412
        %4743 = vmatpush1.bf16.msra.mxu0 %v3411
        %4744 = vmatprep.subr.bf16.mxu0 %v3416
        %4745 = vmatpush1.bf16.msra.mxu0 %v3415
        %4746 = vmatprep.subr.bf16.mxu0 %v3420
        %4747 = vmatpush1.bf16.msra.mxu0 %v3419
        %4748 = vmatprep.subr.bf16.mxu0 %v3424
        %4749 = vmatpush1.bf16.msra.mxu0 %v3423
        %4750 = vmatprep.subr.bf16.mxu0 %v3428
        %4751 = vmatpush1.bf16.msra.mxu0 %v3427
        %4752 = vmatprep.subr.bf16.mxu0 %v3432
        %4753 = vmatpush1.bf16.msra.mxu0 %v3431
        %4754 = vmatprep.subr.bf16.mxu0 %v3436
        %4755 = vmatpush1.bf16.msra.mxu0 %v3435
        %4756 = vmatprep.subr.bf16.mxu0 %v3440
        %4757 = vmatpush1.bf16.msra.mxu0 %v3439
        %4758 = vmatprep.subr.bf16.mxu0 %v3444
        %4759 = vmatpush1.bf16.msra.mxu0 %v3443
        %4760 = vmatprep.mubr.bf16.mxu0 %v1042
        %4761 = vmatmul.mubr.bf16.gmra.mrb[0].mxu0 %v1041
        %v4762 = vpop.f32.mrb[0].mxu0
        %v4763 = vadd.f32 %v4720, %v4762
        %v4764 = vpop.f32.mrb[0].mxu0
        %v4765 = vadd.f32 %v4722, %v4764
        %v4766 = vpop.f32.mrb[0].mxu0
        %v4767 = vadd.f32 %v4724, %v4766
        %v4768 = vpop.f32.mrb[0].mxu0
        %v4769 = vadd.f32 %v4726, %v4768
        %4770 = vdwg.mxu0
        %4771 = vmatprep.subr.bf16.mxu0 %v3448
        %4772 = vmatpush1.bf16.msra.mxu0 %v3447
        %4773 = vmatprep.subr.bf16.mxu0 %v3452
        %4774 = vmatpush1.bf16.msra.mxu0 %v3451
        %4775 = vmatprep.subr.bf16.mxu0 %v3456
        %4776 = vmatpush1.bf16.msra.mxu0 %v3455
        %4777 = vmatprep.subr.bf16.mxu0 %v3460
        %4778 = vmatpush1.bf16.msra.mxu0 %v3459
        %4779 = vmatprep.subr.bf16.mxu0 %v3464
        %4780 = vmatpush1.bf16.msra.mxu0 %v3463
        %4781 = vmatprep.subr.bf16.mxu0 %v3468
        %4782 = vmatpush1.bf16.msra.mxu0 %v3467
        %4783 = vmatprep.subr.bf16.mxu0 %v3472
        %4784 = vmatpush1.bf16.msra.mxu0 %v3471
        %4785 = vmatprep.subr.bf16.mxu0 %v3476
        %4786 = vmatpush1.bf16.msra.mxu0 %v3475
        %4787 = vmatprep.subr.bf16.mxu0 %v3480
        %4788 = vmatpush1.bf16.msra.mxu0 %v3479
        %4789 = vmatprep.subr.bf16.mxu0 %v3484
        %4790 = vmatpush1.bf16.msra.mxu0 %v3483
        %4791 = vmatprep.subr.bf16.mxu0 %v3488
        %4792 = vmatpush1.bf16.msra.mxu0 %v3487
        %4793 = vmatprep.subr.bf16.mxu0 %v3492
        %4794 = vmatpush1.bf16.msra.mxu0 %v3491
        %4795 = vmatprep.subr.bf16.mxu0 %v3496
        %4796 = vmatpush1.bf16.msra.mxu0 %v3495
        %4797 = vmatprep.subr.bf16.mxu0 %v3500
        %4798 = vmatpush1.bf16.msra.mxu0 %v3499
        %4799 = vmatprep.subr.bf16.mxu0 %v3504
        %4800 = vmatpush1.bf16.msra.mxu0 %v3503
        %4801 = vmatprep.subr.bf16.mxu0 %v3508
        %4802 = vmatpush1.bf16.msra.mxu0 %v3507
        %4803 = vmatprep.mubr.bf16.mxu0 %v1044
        %4804 = vmatmul.mubr.bf16.gmra.mrb[0].mxu0 %v1043
        %v4805 = vpop.f32.mrb[0].mxu0
        %v4806 = vadd.f32 %v4763, %v4805
        %v4807 = vpop.f32.mrb[0].mxu0
        %v4808 = vadd.f32 %v4765, %v4807
        %v4809 = vpop.f32.mrb[0].mxu0
        %v4810 = vadd.f32 %v4767, %v4809
        %v4811 = vpop.f32.mrb[0].mxu0
        %v4812 = vadd.f32 %v4769, %v4811
        %4813 = vdwg.mxu0
        %4814 = vmatprep.subr.bf16.mxu0 %v3512
        %4815 = vmatpush1.bf16.msra.mxu0 %v3511
        %4816 = vmatprep.subr.bf16.mxu0 %v3516
        %4817 = vmatpush1.bf16.msra.mxu0 %v3515
        %4818 = vmatprep.subr.bf16.mxu0 %v3520
        %4819 = vmatpush1.bf16.msra.mxu0 %v3519
        %4820 = vmatprep.subr.bf16.mxu0 %v3524
        %4821 = vmatpush1.bf16.msra.mxu0 %v3523
        %4822 = vmatprep.subr.bf16.mxu0 %v3528
        %4823 = vmatpush1.bf16.msra.mxu0 %v3527
        %4824 = vmatprep.subr.bf16.mxu0 %v3532
        %4825 = vmatpush1.bf16.msra.mxu0 %v3531
        %4826 = vmatprep.subr.bf16.mxu0 %v3536
        %4827 = vmatpush1.bf16.msra.mxu0 %v3535
        %4828 = vmatprep.subr.bf16.mxu0 %v3540
        %4829 = vmatpush1.bf16.msra.mxu0 %v3539
        %4830 = vmatprep.subr.bf16.mxu0 %v3544
        %4831 = vmatpush1.bf16.msra.mxu0 %v3543
        %4832 = vmatprep.subr.bf16.mxu0 %v3548
        %4833 = vmatpush1.bf16.msra.mxu0 %v3547
        %4834 = vmatprep.subr.bf16.mxu0 %v3552
        %4835 = vmatpush1.bf16.msra.mxu0 %v3551
        %4836 = vmatprep.subr.bf16.mxu0 %v3556
        %4837 = vmatpush1.bf16.msra.mxu0 %v3555
        %4838 = vmatprep.subr.bf16.mxu0 %v3560
        %4839 = vmatpush1.bf16.msra.mxu0 %v3559
        %4840 = vmatprep.subr.bf16.mxu0 %v3564
        %4841 = vmatpush1.bf16.msra.mxu0 %v3563
        %4842 = vmatprep.subr.bf16.mxu0 %v3568
        %4843 = vmatpush1.bf16.msra.mxu0 %v3567
        %4844 = vmatprep.subr.bf16.mxu0 %v3572
        %4845 = vmatpush1.bf16.msra.mxu0 %v3571
        %4846 = vmatprep.mubr.bf16.mxu0 %v1046
        %4847 = vmatmul.mubr.bf16.gmra.mrb[0].mxu0 %v1045
        %v4848 = vpop.f32.mrb[0].mxu0
        %v4849 = vadd.f32 %v4806, %v4848
        %v4850 = vpop.f32.mrb[0].mxu0
        %v4851 = vadd.f32 %v4808, %v4850
        %v4852 = vpop.f32.mrb[0].mxu0
        %v4853 = vadd.f32 %v4810, %v4852
        %v4854 = vpop.f32.mrb[0].mxu0
        %v4855 = vadd.f32 %v4812, %v4854
        %4856 = vdwg.mxu0
        %4857 = vmatprep.subr.bf16.mxu0 %v3576
        %4858 = vmatpush1.bf16.msra.mxu0 %v3575
        %4859 = vmatprep.subr.bf16.mxu0 %v3580
        %4860 = vmatpush1.bf16.msra.mxu0 %v3579
        %4861 = vmatprep.subr.bf16.mxu0 %v3584
        %4862 = vmatpush1.bf16.msra.mxu0 %v3583
        %4863 = vmatprep.subr.bf16.mxu0 %v3588
        %4864 = vmatpush1.bf16.msra.mxu0 %v3587
        %4865 = vmatprep.subr.bf16.mxu0 %v3592
        %4866 = vmatpush1.bf16.msra.mxu0 %v3591
        %4867 = vmatprep.subr.bf16.mxu0 %v3596
        %4868 = vmatpush1.bf16.msra.mxu0 %v3595
        %4869 = vmatprep.subr.bf16.mxu0 %v3600
        %4870 = vmatpush1.bf16.msra.mxu0 %v3599
        %4871 = vmatprep.subr.bf16.mxu0 %v3604
        %4872 = vmatpush1.bf16.msra.mxu0 %v3603
        %4873 = vmatprep.subr.bf16.mxu0 %v3608
        %4874 = vmatpush1.bf16.msra.mxu0 %v3607
        %4875 = vmatprep.subr.bf16.mxu0 %v3612
        %4876 = vmatpush1.bf16.msra.mxu0 %v3611
        %4877 = vmatprep.subr.bf16.mxu0 %v3616
        %4878 = vmatpush1.bf16.msra.mxu0 %v3615
        %4879 = vmatprep.subr.bf16.mxu0 %v3620
        %4880 = vmatpush1.bf16.msra.mxu0 %v3619
        %4881 = vmatprep.subr.bf16.mxu0 %v3624
        %4882 = vmatpush1.bf16.msra.mxu0 %v3623
        %4883 = vmatprep.subr.bf16.mxu0 %v3628
        %4884 = vmatpush1.bf16.msra.mxu0 %v3627
        %4885 = vmatprep.subr.bf16.mxu0 %v3632
        %4886 = vmatpush1.bf16.msra.mxu0 %v3631
        %4887 = vmatprep.subr.bf16.mxu0 %v3636
        %4888 = vmatpush1.bf16.msra.mxu0 %v3635
        %4889 = vmatprep.mubr.bf16.mxu0 %v1048
        %4890 = vmatmul.mubr.bf16.gmra.mrb[0].mxu0 %v1047
        %v4891 = vpop.f32.mrb[0].mxu0
        %v4892 = vadd.f32 %v4849, %v4891
        %v4893 = vpop.f32.mrb[0].mxu0
        %v4894 = vadd.f32 %v4851, %v4893
        %v4895 = vpop.f32.mrb[0].mxu0
        %v4896 = vadd.f32 %v4853, %v4895
        %v4897 = vpop.f32.mrb[0].mxu0
        %v4898 = vadd.f32 %v4855, %v4897
        %4899 = vdwg.mxu0
        %4900 = vmatprep.subr.bf16.mxu0 %v3640
        %4901 = vmatpush1.bf16.msra.mxu0 %v3639
        %4902 = vmatprep.subr.bf16.mxu0 %v3644
        %4903 = vmatpush1.bf16.msra.mxu0 %v3643
        %4904 = vmatprep.subr.bf16.mxu0 %v3648
        %4905 = vmatpush1.bf16.msra.mxu0 %v3647
        %4906 = vmatprep.subr.bf16.mxu0 %v3652
        %4907 = vmatpush1.bf16.msra.mxu0 %v3651
        %4908 = vmatprep.subr.bf16.mxu0 %v3656
        %4909 = vmatpush1.bf16.msra.mxu0 %v3655
        %4910 = vmatprep.subr.bf16.mxu0 %v3660
        %4911 = vmatpush1.bf16.msra.mxu0 %v3659
        %4912 = vmatprep.subr.bf16.mxu0 %v3664
        %4913 = vmatpush1.bf16.msra.mxu0 %v3663
        %4914 = vmatprep.subr.bf16.mxu0 %v3668
        %4915 = vmatpush1.bf16.msra.mxu0 %v3667
        %4916 = vmatprep.subr.bf16.mxu0 %v3672
        %4917 = vmatpush1.bf16.msra.mxu0 %v3671
        %4918 = vmatprep.subr.bf16.mxu0 %v3676
        %4919 = vmatpush1.bf16.msra.mxu0 %v3675
        %4920 = vmatprep.subr.bf16.mxu0 %v3680
        %4921 = vmatpush1.bf16.msra.mxu0 %v3679
        %4922 = vmatprep.subr.bf16.mxu0 %v3684
        %4923 = vmatpush1.bf16.msra.mxu0 %v3683
        %4924 = vmatprep.subr.bf16.mxu0 %v3688
        %4925 = vmatpush1.bf16.msra.mxu0 %v3687
        %4926 = vmatprep.subr.bf16.mxu0 %v3692
        %4927 = vmatpush1.bf16.msra.mxu0 %v3691
        %4928 = vmatprep.subr.bf16.mxu0 %v3696
        %4929 = vmatpush1.bf16.msra.mxu0 %v3695
        %4930 = vmatprep.subr.bf16.mxu0 %v3700
        %4931 = vmatpush1.bf16.msra.mxu0 %v3699
        %4932 = vmatprep.mubr.bf16.mxu0 %v1050
        %4933 = vmatmul.mubr.bf16.gmra.mrb[0].mxu0 %v1049
        %v4934 = vpop.f32.mrb[0].mxu0
        %v4935 = vadd.f32 %v4892, %v4934
        %v4936 = vpop.f32.mrb[0].mxu0
        %v4937 = vadd.f32 %v4894, %v4936
        %v4938 = vpop.f32.mrb[0].mxu0
        %v4939 = vadd.f32 %v4896, %v4938
        %v4940 = vpop.f32.mrb[0].mxu0
        %v4941 = vadd.f32 %v4898, %v4940
        %4942 = vdwg.mxu0
        %4943 = vmatprep.subr.bf16.mxu0 %v3704
        %4944 = vmatpush1.bf16.msra.mxu0 %v3703
        %4945 = vmatprep.subr.bf16.mxu0 %v3708
        %4946 = vmatpush1.bf16.msra.mxu0 %v3707
        %4947 = vmatprep.subr.bf16.mxu0 %v3712
        %4948 = vmatpush1.bf16.msra.mxu0 %v3711
        %4949 = vmatprep.subr.bf16.mxu0 %v3716
        %4950 = vmatpush1.bf16.msra.mxu0 %v3715
        %4951 = vmatprep.subr.bf16.mxu0 %v3720
        %4952 = vmatpush1.bf16.msra.mxu0 %v3719
        %4953 = vmatprep.subr.bf16.mxu0 %v3724
        %4954 = vmatpush1.bf16.msra.mxu0 %v3723
        %4955 = vmatprep.subr.bf16.mxu0 %v3728
        %4956 = vmatpush1.bf16.msra.mxu0 %v3727
        %4957 = vmatprep.subr.bf16.mxu0 %v3732
        %4958 = vmatpush1.bf16.msra.mxu0 %v3731
        %4959 = vmatprep.subr.bf16.mxu0 %v3736
        %4960 = vmatpush1.bf16.msra.mxu0 %v3735
        %4961 = vmatprep.subr.bf16.mxu0 %v3740
        %4962 = vmatpush1.bf16.msra.mxu0 %v3739
        %4963 = vmatprep.subr.bf16.mxu0 %v3744
        %4964 = vmatpush1.bf16.msra.mxu0 %v3743
        %4965 = vmatprep.subr.bf16.mxu0 %v3748
        %4966 = vmatpush1.bf16.msra.mxu0 %v3747
        %4967 = vmatprep.subr.bf16.mxu0 %v3752
        %4968 = vmatpush1.bf16.msra.mxu0 %v3751
        %4969 = vmatprep.subr.bf16.mxu0 %v3756
        %4970 = vmatpush1.bf16.msra.mxu0 %v3755
        %4971 = vmatprep.subr.bf16.mxu0 %v3760
        %4972 = vmatpush1.bf16.msra.mxu0 %v3759
        %4973 = vmatprep.subr.bf16.mxu0 %v3764
        %4974 = vmatpush1.bf16.msra.mxu0 %v3763
        %4975 = vmatprep.mubr.bf16.mxu0 %v1052
        %4976 = vmatmul.mubr.bf16.gmra.mrb[0].mxu0 %v1051
        %v4977 = vpop.f32.mrb[0].mxu0
        %v4978 = vadd.f32 %v4935, %v4977
        %v4979 = vpop.f32.mrb[0].mxu0
        %v4980 = vadd.f32 %v4937, %v4979
        %v4981 = vpop.f32.mrb[0].mxu0
        %v4982 = vadd.f32 %v4939, %v4981
        %v4983 = vpop.f32.mrb[0].mxu0
        %v4984 = vadd.f32 %v4941, %v4983
        %4985 = vdwg.mxu0
        %4986 = vmatprep.subr.bf16.mxu0 %v3768
        %4987 = vmatpush1.bf16.msra.mxu0 %v3767
        %4988 = vmatprep.subr.bf16.mxu0 %v3772
        %4989 = vmatpush1.bf16.msra.mxu0 %v3771
        %4990 = vmatprep.subr.bf16.mxu0 %v3776
        %4991 = vmatpush1.bf16.msra.mxu0 %v3775
        %4992 = vmatprep.subr.bf16.mxu0 %v3780
        %4993 = vmatpush1.bf16.msra.mxu0 %v3779
        %4994 = vmatprep.subr.bf16.mxu0 %v3784
        %4995 = vmatpush1.bf16.msra.mxu0 %v3783
        %4996 = vmatprep.subr.bf16.mxu0 %v3788
        %4997 = vmatpush1.bf16.msra.mxu0 %v3787
        %4998 = vmatprep.subr.bf16.mxu0 %v3792
        %4999 = vmatpush1.bf16.msra.mxu0 %v3791
        %5000 = vmatprep.subr.bf16.mxu0 %v3796
        %5001 = vmatpush1.bf16.msra.mxu0 %v3795
        %5002 = vmatprep.subr.bf16.mxu0 %v3800
        %5003 = vmatpush1.bf16.msra.mxu0 %v3799
        %5004 = vmatprep.subr.bf16.mxu0 %v3804
        %5005 = vmatpush1.bf16.msra.mxu0 %v3803
        %5006 = vmatprep.subr.bf16.mxu0 %v3808
        %5007 = vmatpush1.bf16.msra.mxu0 %v3807
        %5008 = vmatprep.subr.bf16.mxu0 %v3812
        %5009 = vmatpush1.bf16.msra.mxu0 %v3811
        %5010 = vmatprep.subr.bf16.mxu0 %v3816
        %5011 = vmatpush1.bf16.msra.mxu0 %v3815
        %5012 = vmatprep.subr.bf16.mxu0 %v3820
        %5013 = vmatpush1.bf16.msra.mxu0 %v3819
        %5014 = vmatprep.subr.bf16.mxu0 %v3824
        %5015 = vmatpush1.bf16.msra.mxu0 %v3823
        %5016 = vmatprep.subr.bf16.mxu0 %v3828
        %5017 = vmatpush1.bf16.msra.mxu0 %v3827
        %5018 = vmatprep.mubr.bf16.mxu0 %v1054
        %5019 = vmatmul.mubr.bf16.gmra.mrb[0].mxu0 %v1053
        %v5020 = vpop.f32.mrb[0].mxu0
        %v5021 = vadd.f32 %v4978, %v5020
        %v5022 = vpop.f32.mrb[0].mxu0
        %v5023 = vadd.f32 %v4980, %v5022
        %v5024 = vpop.f32.mrb[0].mxu0
        %v5025 = vadd.f32 %v4982, %v5024
        %v5026 = vpop.f32.mrb[0].mxu0
        %v5027 = vadd.f32 %v4984, %v5026
        %5028 = vdwg.mxu0
        %5029 = vmatprep.subr.bf16.mxu0 %v3832
        %5030 = vmatpush1.bf16.msra.mxu0 %v3831
        %5031 = vmatprep.subr.bf16.mxu0 %v3836
        %5032 = vmatpush1.bf16.msra.mxu0 %v3835
        %5033 = vmatprep.subr.bf16.mxu0 %v3840
        %5034 = vmatpush1.bf16.msra.mxu0 %v3839
        %5035 = vmatprep.subr.bf16.mxu0 %v3844
        %5036 = vmatpush1.bf16.msra.mxu0 %v3843
        %5037 = vmatprep.subr.bf16.mxu0 %v3848
        %5038 = vmatpush1.bf16.msra.mxu0 %v3847
        %5039 = vmatprep.subr.bf16.mxu0 %v3852
        %5040 = vmatpush1.bf16.msra.mxu0 %v3851
        %5041 = vmatprep.subr.bf16.mxu0 %v3856
        %5042 = vmatpush1.bf16.msra.mxu0 %v3855
        %5043 = vmatprep.subr.bf16.mxu0 %v3860
        %5044 = vmatpush1.bf16.msra.mxu0 %v3859
        %5045 = vmatprep.subr.bf16.mxu0 %v3864
        %5046 = vmatpush1.bf16.msra.mxu0 %v3863
        %5047 = vmatprep.subr.bf16.mxu0 %v3868
        %5048 = vmatpush1.bf16.msra.mxu0 %v3867
        %5049 = vmatprep.subr.bf16.mxu0 %v3872
        %5050 = vmatpush1.bf16.msra.mxu0 %v3871
        %5051 = vmatprep.subr.bf16.mxu0 %v3876
        %5052 = vmatpush1.bf16.msra.mxu0 %v3875
        %5053 = vmatprep.subr.bf16.mxu0 %v3880
        %5054 = vmatpush1.bf16.msra.mxu0 %v3879
        %5055 = vmatprep.subr.bf16.mxu0 %v3884
        %5056 = vmatpush1.bf16.msra.mxu0 %v3883
        %5057 = vmatprep.subr.bf16.mxu0 %v3888
        %5058 = vmatpush1.bf16.msra.mxu0 %v3887
        %5059 = vmatprep.subr.bf16.mxu0 %v3892
        %5060 = vmatpush1.bf16.msra.mxu0 %v3891
        %5061 = vmatprep.mubr.bf16.mxu0 %v1056
        %5062 = vmatmul.mubr.bf16.gmra.mrb[0].mxu0 %v1055
        %v5063 = vpop.f32.mrb[0].mxu0
        %v5064 = vadd.f32 %v5021, %v5063
        %v5065 = vpop.f32.mrb[0].mxu0
        %v5066 = vadd.f32 %v5023, %v5065
        %v5067 = vpop.f32.mrb[0].mxu0
        %v5068 = vadd.f32 %v5025, %v5067
        %v5069 = vpop.f32.mrb[0].mxu0
        %v5070 = vadd.f32 %v5027, %v5069
        %5071 = vdwg.mxu0
        %5072 = vmatprep.subr.bf16.mxu0 %v3194
        %5073 = vmatpush1.bf16.msra.mxu0 %v3193
        %5074 = vmatprep.subr.bf16.mxu0 %v3198
        %5075 = vmatpush1.bf16.msra.mxu0 %v3197
        %5076 = vmatprep.subr.bf16.mxu0 %v3202
        %5077 = vmatpush1.bf16.msra.mxu0 %v3201
        %5078 = vmatprep.subr.bf16.mxu0 %v3206
        %5079 = vmatpush1.bf16.msra.mxu0 %v3205
        %5080 = vmatprep.subr.bf16.mxu0 %v3210
        %5081 = vmatpush1.bf16.msra.mxu0 %v3209
        %5082 = vmatprep.subr.bf16.mxu0 %v3214
        %5083 = vmatpush1.bf16.msra.mxu0 %v3213
        %5084 = vmatprep.subr.bf16.mxu0 %v3218
        %5085 = vmatpush1.bf16.msra.mxu0 %v3217
        %5086 = vmatprep.subr.bf16.mxu0 %v3222
        %5087 = vmatpush1.bf16.msra.mxu0 %v3221
        %5088 = vmatprep.subr.bf16.mxu0 %v3226
        %5089 = vmatpush1.bf16.msra.mxu0 %v3225
        %5090 = vmatprep.subr.bf16.mxu0 %v3230
        %5091 = vmatpush1.bf16.msra.mxu0 %v3229
        %5092 = vmatprep.subr.bf16.mxu0 %v3234
        %5093 = vmatpush1.bf16.msra.mxu0 %v3233
        %5094 = vmatprep.subr.bf16.mxu0 %v3238
        %5095 = vmatpush1.bf16.msra.mxu0 %v3237
        %5096 = vmatprep.subr.bf16.mxu0 %v3242
        %5097 = vmatpush1.bf16.msra.mxu0 %v3241
        %5098 = vmatprep.subr.bf16.mxu0 %v3246
        %5099 = vmatpush1.bf16.msra.mxu0 %v3245
        %5100 = vmatprep.subr.bf16.mxu0 %v3250
        %5101 = vmatpush1.bf16.msra.mxu0 %v3249
        %5102 = vmatprep.subr.bf16.mxu0 %v3254
        %5103 = vmatpush1.bf16.msra.mxu0 %v3253
        %5104 = vmatprep.mubr.bf16.mxu0 %v1036
        %5105 = vmatmul.mubr.bf16.gmra.mrb[0].mxu0 %v1035
        %v5106 = vpop.f32.mrb[0].mxu0
        %v5107 = vadd.f32 %v960, %v5106
        %v5108 = vpop.f32.mrb[0].mxu0
        %v5109 = vadd.f32 %v964, %v5108
        %v5110 = vpop.f32.mrb[0].mxu0
        %v5111 = vadd.f32 %v960, %v5110
        %v5112 = vpop.f32.mrb[0].mxu0
        %v5113 = vadd.f32 %v964, %v5112
        %5114 = vdwg.mxu0
        %5115 = vmatprep.subr.bf16.mxu0 %v3258
        %5116 = vmatpush1.bf16.msra.mxu0 %v3257
        %5117 = vmatprep.subr.bf16.mxu0 %v3262
        %5118 = vmatpush1.bf16.msra.mxu0 %v3261
        %5119 = vmatprep.subr.bf16.mxu0 %v3266
        %5120 = vmatpush1.bf16.msra.mxu0 %v3265
        %5121 = vmatprep.subr.bf16.mxu0 %v3270
        %5122 = vmatpush1.bf16.msra.mxu0 %v3269
        %5123 = vmatprep.subr.bf16.mxu0 %v3274
        %5124 = vmatpush1.bf16.msra.mxu0 %v3273
        %5125 = vmatprep.subr.bf16.mxu0 %v3278
        %5126 = vmatpush1.bf16.msra.mxu0 %v3277
        %5127 = vmatprep.subr.bf16.mxu0 %v3282
        %5128 = vmatpush1.bf16.msra.mxu0 %v3281
        %5129 = vmatprep.subr.bf16.mxu0 %v3286
        %5130 = vmatpush1.bf16.msra.mxu0 %v3285
        %5131 = vmatprep.subr.bf16.mxu0 %v3290
        %5132 = vmatpush1.bf16.msra.mxu0 %v3289
        %5133 = vmatprep.subr.bf16.mxu0 %v3294
        %5134 = vmatpush1.bf16.msra.mxu0 %v3293
        %5135 = vmatprep.subr.bf16.mxu0 %v3298
        %5136 = vmatpush1.bf16.msra.mxu0 %v3297
        %5137 = vmatprep.subr.bf16.mxu0 %v3302
        %5138 = vmatpush1.bf16.msra.mxu0 %v3301
        %5139 = vmatprep.subr.bf16.mxu0 %v3306
        %5140 = vmatpush1.bf16.msra.mxu0 %v3305
        %5141 = vmatprep.subr.bf16.mxu0 %v3310
        %5142 = vmatpush1.bf16.msra.mxu0 %v3309
        %5143 = vmatprep.subr.bf16.mxu0 %v3314
        %5144 = vmatpush1.bf16.msra.mxu0 %v3313
        %5145 = vmatprep.subr.bf16.mxu0 %v3318
        %5146 = vmatpush1.bf16.msra.mxu0 %v3317
        %5147 = vmatprep.mubr.bf16.mxu0 %v1038
        %5148 = vmatmul.mubr.bf16.gmra.mrb[0].mxu0 %v1037
        %v5149 = vpop.f32.mrb[0].mxu0
        %v5150 = vadd.f32 %v5107, %v5149
        %v5151 = vpop.f32.mrb[0].mxu0
        %v5152 = vadd.f32 %v5109, %v5151
        %v5153 = vpop.f32.mrb[0].mxu0
        %v5154 = vadd.f32 %v5111, %v5153
        %v5155 = vpop.f32.mrb[0].mxu0
        %v5156 = vadd.f32 %v5113, %v5155
        %5157 = vdwg.mxu0
        %5158 = vmatprep.subr.bf16.mxu0 %v3322
        %5159 = vmatpush1.bf16.msra.mxu0 %v3321
        %5160 = vmatprep.subr.bf16.mxu0 %v3326
        %5161 = vmatpush1.bf16.msra.mxu0 %v3325
        %5162 = vmatprep.subr.bf16.mxu0 %v3330
        %5163 = vmatpush1.bf16.msra.mxu0 %v3329
        %5164 = vmatprep.subr.bf16.mxu0 %v3334
        %5165 = vmatpush1.bf16.msra.mxu0 %v3333
        %5166 = vmatprep.subr.bf16.mxu0 %v3338
        %5167 = vmatpush1.bf16.msra.mxu0 %v3337
        %5168 = vmatprep.subr.bf16.mxu0 %v3342
        %5169 = vmatpush1.bf16.msra.mxu0 %v3341
        %5170 = vmatprep.subr.bf16.mxu0 %v3346
        %5171 = vmatpush1.bf16.msra.mxu0 %v3345
        %5172 = vmatprep.subr.bf16.mxu0 %v3350
        %5173 = vmatpush1.bf16.msra.mxu0 %v3349
        %5174 = vmatprep.subr.bf16.mxu0 %v3354
        %5175 = vmatpush1.bf16.msra.mxu0 %v3353
        %5176 = vmatprep.subr.bf16.mxu0 %v3358
        %5177 = vmatpush1.bf16.msra.mxu0 %v3357
        %5178 = vmatprep.subr.bf16.mxu0 %v3362
        %5179 = vmatpush1.bf16.msra.mxu0 %v3361
        %5180 = vmatprep.subr.bf16.mxu0 %v3366
        %5181 = vmatpush1.bf16.msra.mxu0 %v3365
        %5182 = vmatprep.subr.bf16.mxu0 %v3370
        %5183 = vmatpush1.bf16.msra.mxu0 %v3369
        %5184 = vmatprep.subr.bf16.mxu0 %v3374
        %5185 = vmatpush1.bf16.msra.mxu0 %v3373
        %5186 = vmatprep.subr.bf16.mxu0 %v3378
        %5187 = vmatpush1.bf16.msra.mxu0 %v3377
        %5188 = vmatprep.subr.bf16.mxu0 %v3382
        %5189 = vmatpush1.bf16.msra.mxu0 %v3381
        %5190 = vmatprep.mubr.bf16.mxu0 %v1040
        %5191 = vmatmul.mubr.bf16.gmra.mrb[0].mxu0 %v1039
        %v5192 = vpop.f32.mrb[0].mxu0
        %v5193 = vadd.f32 %v5150, %v5192
        %v5194 = vpop.f32.mrb[0].mxu0
        %v5195 = vadd.f32 %v5152, %v5194
        %v5196 = vpop.f32.mrb[0].mxu0
        %v5197 = vadd.f32 %v5154, %v5196
        %v5198 = vpop.f32.mrb[0].mxu0
        %v5199 = vadd.f32 %v5156, %v5198
        %5200 = vdwg.mxu0
        %5201 = vmatprep.subr.bf16.mxu0 %v3386
        %5202 = vmatpush1.bf16.msra.mxu0 %v3385
        %5203 = vmatprep.subr.bf16.mxu0 %v3390
        %5204 = vmatpush1.bf16.msra.mxu0 %v3389
        %5205 = vmatprep.subr.bf16.mxu0 %v3394
        %5206 = vmatpush1.bf16.msra.mxu0 %v3393
        %5207 = vmatprep.subr.bf16.mxu0 %v3398
        %5208 = vmatpush1.bf16.msra.mxu0 %v3397
        %5209 = vmatprep.subr.bf16.mxu0 %v3402
        %5210 = vmatpush1.bf16.msra.mxu0 %v3401
        %5211 = vmatprep.subr.bf16.mxu0 %v3406
        %5212 = vmatpush1.bf16.msra.mxu0 %v3405
        %5213 = vmatprep.subr.bf16.mxu0 %v3410
        %5214 = vmatpush1.bf16.msra.mxu0 %v3409
        %5215 = vmatprep.subr.bf16.mxu0 %v3414
        %5216 = vmatpush1.bf16.msra.mxu0 %v3413
        %5217 = vmatprep.subr.bf16.mxu0 %v3418
        %5218 = vmatpush1.bf16.msra.mxu0 %v3417
        %5219 = vmatprep.subr.bf16.mxu0 %v3422
        %5220 = vmatpush1.bf16.msra.mxu0 %v3421
        %5221 = vmatprep.subr.bf16.mxu0 %v3426
        %5222 = vmatpush1.bf16.msra.mxu0 %v3425
        %5223 = vmatprep.subr.bf16.mxu0 %v3430
        %5224 = vmatpush1.bf16.msra.mxu0 %v3429
        %5225 = vmatprep.subr.bf16.mxu0 %v3434
        %5226 = vmatpush1.bf16.msra.mxu0 %v3433
        %5227 = vmatprep.subr.bf16.mxu0 %v3438
        %5228 = vmatpush1.bf16.msra.mxu0 %v3437
        %5229 = vmatprep.subr.bf16.mxu0 %v3442
        %5230 = vmatpush1.bf16.msra.mxu0 %v3441
        %5231 = vmatprep.subr.bf16.mxu0 %v3446
        %5232 = vmatpush1.bf16.msra.mxu0 %v3445
        %5233 = vmatprep.mubr.bf16.mxu0 %v1042
        %5234 = vmatmul.mubr.bf16.gmra.mrb[0].mxu0 %v1041
        %v5235 = vpop.f32.mrb[0].mxu0
        %v5236 = vadd.f32 %v5193, %v5235
        %v5237 = vpop.f32.mrb[0].mxu0
        %v5238 = vadd.f32 %v5195, %v5237
        %v5239 = vpop.f32.mrb[0].mxu0
        %v5240 = vadd.f32 %v5197, %v5239
        %v5241 = vpop.f32.mrb[0].mxu0
        %v5242 = vadd.f32 %v5199, %v5241
        %5243 = vdwg.mxu0
        %5244 = vmatprep.subr.bf16.mxu0 %v3450
        %5245 = vmatpush1.bf16.msra.mxu0 %v3449
        %5246 = vmatprep.subr.bf16.mxu0 %v3454
        %5247 = vmatpush1.bf16.msra.mxu0 %v3453
        %5248 = vmatprep.subr.bf16.mxu0 %v3458
        %5249 = vmatpush1.bf16.msra.mxu0 %v3457
        %5250 = vmatprep.subr.bf16.mxu0 %v3462
        %5251 = vmatpush1.bf16.msra.mxu0 %v3461
        %5252 = vmatprep.subr.bf16.mxu0 %v3466
        %5253 = vmatpush1.bf16.msra.mxu0 %v3465
        %5254 = vmatprep.subr.bf16.mxu0 %v3470
        %5255 = vmatpush1.bf16.msra.mxu0 %v3469
        %5256 = vmatprep.subr.bf16.mxu0 %v3474
        %5257 = vmatpush1.bf16.msra.mxu0 %v3473
        %5258 = vmatprep.subr.bf16.mxu0 %v3478
        %5259 = vmatpush1.bf16.msra.mxu0 %v3477
        %5260 = vmatprep.subr.bf16.mxu0 %v3482
        %5261 = vmatpush1.bf16.msra.mxu0 %v3481
        %5262 = vmatprep.subr.bf16.mxu0 %v3486
        %5263 = vmatpush1.bf16.msra.mxu0 %v3485
        %5264 = vmatprep.subr.bf16.mxu0 %v3490
        %5265 = vmatpush1.bf16.msra.mxu0 %v3489
        %5266 = vmatprep.subr.bf16.mxu0 %v3494
        %5267 = vmatpush1.bf16.msra.mxu0 %v3493
        %5268 = vmatprep.subr.bf16.mxu0 %v3498
        %5269 = vmatpush1.bf16.msra.mxu0 %v3497
        %5270 = vmatprep.subr.bf16.mxu0 %v3502
        %5271 = vmatpush1.bf16.msra.mxu0 %v3501
        %5272 = vmatprep.subr.bf16.mxu0 %v3506
        %5273 = vmatpush1.bf16.msra.mxu0 %v3505
        %5274 = vmatprep.subr.bf16.mxu0 %v3510
        %5275 = vmatpush1.bf16.msra.mxu0 %v3509
        %5276 = vmatprep.mubr.bf16.mxu0 %v1044
        %5277 = vmatmul.mubr.bf16.gmra.mrb[0].mxu0 %v1043
        %v5278 = vpop.f32.mrb[0].mxu0
        %v5279 = vadd.f32 %v5236, %v5278
        %v5280 = vpop.f32.mrb[0].mxu0
        %v5281 = vadd.f32 %v5238, %v5280
        %v5282 = vpop.f32.mrb[0].mxu0
        %v5283 = vadd.f32 %v5240, %v5282
        %v5284 = vpop.f32.mrb[0].mxu0
        %v5285 = vadd.f32 %v5242, %v5284
        %5286 = vdwg.mxu0
        %5287 = vmatprep.subr.bf16.mxu0 %v3514
        %5288 = vmatpush1.bf16.msra.mxu0 %v3513
        %5289 = vmatprep.subr.bf16.mxu0 %v3518
        %5290 = vmatpush1.bf16.msra.mxu0 %v3517
        %5291 = vmatprep.subr.bf16.mxu0 %v3522
        %5292 = vmatpush1.bf16.msra.mxu0 %v3521
        %5293 = vmatprep.subr.bf16.mxu0 %v3526
        %5294 = vmatpush1.bf16.msra.mxu0 %v3525
        %5295 = vmatprep.subr.bf16.mxu0 %v3530
        %5296 = vmatpush1.bf16.msra.mxu0 %v3529
        %5297 = vmatprep.subr.bf16.mxu0 %v3534
        %5298 = vmatpush1.bf16.msra.mxu0 %v3533
        %5299 = vmatprep.subr.bf16.mxu0 %v3538
        %5300 = vmatpush1.bf16.msra.mxu0 %v3537
        %5301 = vmatprep.subr.bf16.mxu0 %v3542
        %5302 = vmatpush1.bf16.msra.mxu0 %v3541
        %5303 = vmatprep.subr.bf16.mxu0 %v3546
        %5304 = vmatpush1.bf16.msra.mxu0 %v3545
        %5305 = vmatprep.subr.bf16.mxu0 %v3550
        %5306 = vmatpush1.bf16.msra.mxu0 %v3549
        %5307 = vmatprep.subr.bf16.mxu0 %v3554
        %5308 = vmatpush1.bf16.msra.mxu0 %v3553
        %5309 = vmatprep.subr.bf16.mxu0 %v3558
        %5310 = vmatpush1.bf16.msra.mxu0 %v3557
        %5311 = vmatprep.subr.bf16.mxu0 %v3562
        %5312 = vmatpush1.bf16.msra.mxu0 %v3561
        %5313 = vmatprep.subr.bf16.mxu0 %v3566
        %5314 = vmatpush1.bf16.msra.mxu0 %v3565
        %5315 = vmatprep.subr.bf16.mxu0 %v3570
        %5316 = vmatpush1.bf16.msra.mxu0 %v3569
        %5317 = vmatprep.subr.bf16.mxu0 %v3574
        %5318 = vmatpush1.bf16.msra.mxu0 %v3573
        %5319 = vmatprep.mubr.bf16.mxu0 %v1046
        %5320 = vmatmul.mubr.bf16.gmra.mrb[0].mxu0 %v1045
        %v5321 = vpop.f32.mrb[0].mxu0
        %v5322 = vadd.f32 %v5279, %v5321
        %v5323 = vpop.f32.mrb[0].mxu0
        %v5324 = vadd.f32 %v5281, %v5323
        %v5325 = vpop.f32.mrb[0].mxu0
        %v5326 = vadd.f32 %v5283, %v5325
        %v5327 = vpop.f32.mrb[0].mxu0
        %v5328 = vadd.f32 %v5285, %v5327
        %5329 = vdwg.mxu0
        %5330 = vmatprep.subr.bf16.mxu0 %v3578
        %5331 = vmatpush1.bf16.msra.mxu0 %v3577
        %5332 = vmatprep.subr.bf16.mxu0 %v3582
        %5333 = vmatpush1.bf16.msra.mxu0 %v3581
        %5334 = vmatprep.subr.bf16.mxu0 %v3586
        %5335 = vmatpush1.bf16.msra.mxu0 %v3585
        %5336 = vmatprep.subr.bf16.mxu0 %v3590
        %5337 = vmatpush1.bf16.msra.mxu0 %v3589
        %5338 = vmatprep.subr.bf16.mxu0 %v3594
        %5339 = vmatpush1.bf16.msra.mxu0 %v3593
        %5340 = vmatprep.subr.bf16.mxu0 %v3598
        %5341 = vmatpush1.bf16.msra.mxu0 %v3597
        %5342 = vmatprep.subr.bf16.mxu0 %v3602
        %5343 = vmatpush1.bf16.msra.mxu0 %v3601
        %5344 = vmatprep.subr.bf16.mxu0 %v3606
        %5345 = vmatpush1.bf16.msra.mxu0 %v3605
        %5346 = vmatprep.subr.bf16.mxu0 %v3610
        %5347 = vmatpush1.bf16.msra.mxu0 %v3609
        %5348 = vmatprep.subr.bf16.mxu0 %v3614
        %5349 = vmatpush1.bf16.msra.mxu0 %v3613
        %5350 = vmatprep.subr.bf16.mxu0 %v3618
        %5351 = vmatpush1.bf16.msra.mxu0 %v3617
        %5352 = vmatprep.subr.bf16.mxu0 %v3622
        %5353 = vmatpush1.bf16.msra.mxu0 %v3621
        %5354 = vmatprep.subr.bf16.mxu0 %v3626
        %5355 = vmatpush1.bf16.msra.mxu0 %v3625
        %5356 = vmatprep.subr.bf16.mxu0 %v3630
        %5357 = vmatpush1.bf16.msra.mxu0 %v3629
        %5358 = vmatprep.subr.bf16.mxu0 %v3634
        %5359 = vmatpush1.bf16.msra.mxu0 %v3633
        %5360 = vmatprep.subr.bf16.mxu0 %v3638
        %5361 = vmatpush1.bf16.msra.mxu0 %v3637
        %5362 = vmatprep.mubr.bf16.mxu0 %v1048
        %5363 = vmatmul.mubr.bf16.gmra.mrb[0].mxu0 %v1047
        %v5364 = vpop.f32.mrb[0].mxu0
        %v5365 = vadd.f32 %v5322, %v5364
        %v5366 = vpop.f32.mrb[0].mxu0
        %v5367 = vadd.f32 %v5324, %v5366
        %v5368 = vpop.f32.mrb[0].mxu0
        %v5369 = vadd.f32 %v5326, %v5368
        %v5370 = vpop.f32.mrb[0].mxu0
        %v5371 = vadd.f32 %v5328, %v5370
        %5372 = vdwg.mxu0
        %5373 = vmatprep.subr.bf16.mxu0 %v3642
        %5374 = vmatpush1.bf16.msra.mxu0 %v3641
        %5375 = vmatprep.subr.bf16.mxu0 %v3646
        %5376 = vmatpush1.bf16.msra.mxu0 %v3645
        %5377 = vmatprep.subr.bf16.mxu0 %v3650
        %5378 = vmatpush1.bf16.msra.mxu0 %v3649
        %5379 = vmatprep.subr.bf16.mxu0 %v3654
        %5380 = vmatpush1.bf16.msra.mxu0 %v3653
        %5381 = vmatprep.subr.bf16.mxu0 %v3658
        %5382 = vmatpush1.bf16.msra.mxu0 %v3657
        %5383 = vmatprep.subr.bf16.mxu0 %v3662
        %5384 = vmatpush1.bf16.msra.mxu0 %v3661
        %5385 = vmatprep.subr.bf16.mxu0 %v3666
        %5386 = vmatpush1.bf16.msra.mxu0 %v3665
        %5387 = vmatprep.subr.bf16.mxu0 %v3670
        %5388 = vmatpush1.bf16.msra.mxu0 %v3669
        %5389 = vmatprep.subr.bf16.mxu0 %v3674
        %5390 = vmatpush1.bf16.msra.mxu0 %v3673
        %5391 = vmatprep.subr.bf16.mxu0 %v3678
        %5392 = vmatpush1.bf16.msra.mxu0 %v3677
        %5393 = vmatprep.subr.bf16.mxu0 %v3682
        %5394 = vmatpush1.bf16.msra.mxu0 %v3681
        %5395 = vmatprep.subr.bf16.mxu0 %v3686
        %5396 = vmatpush1.bf16.msra.mxu0 %v3685
        %5397 = vmatprep.subr.bf16.mxu0 %v3690
        %5398 = vmatpush1.bf16.msra.mxu0 %v3689
        %5399 = vmatprep.subr.bf16.mxu0 %v3694
        %5400 = vmatpush1.bf16.msra.mxu0 %v3693
        %5401 = vmatprep.subr.bf16.mxu0 %v3698
        %5402 = vmatpush1.bf16.msra.mxu0 %v3697
        %5403 = vmatprep.subr.bf16.mxu0 %v3702
        %5404 = vmatpush1.bf16.msra.mxu0 %v3701
        %5405 = vmatprep.mubr.bf16.mxu0 %v1050
        %5406 = vmatmul.mubr.bf16.gmra.mrb[0].mxu0 %v1049
        %v5407 = vpop.f32.mrb[0].mxu0
        %v5408 = vadd.f32 %v5365, %v5407
        %v5409 = vpop.f32.mrb[0].mxu0
        %v5410 = vadd.f32 %v5367, %v5409
        %v5411 = vpop.f32.mrb[0].mxu0
        %v5412 = vadd.f32 %v5369, %v5411
        %v5413 = vpop.f32.mrb[0].mxu0
        %v5414 = vadd.f32 %v5371, %v5413
        %5415 = vdwg.mxu0
        %5416 = vmatprep.subr.bf16.mxu0 %v3706
        %5417 = vmatpush1.bf16.msra.mxu0 %v3705
        %5418 = vmatprep.subr.bf16.mxu0 %v3710
        %5419 = vmatpush1.bf16.msra.mxu0 %v3709
        %5420 = vmatprep.subr.bf16.mxu0 %v3714
        %5421 = vmatpush1.bf16.msra.mxu0 %v3713
        %5422 = vmatprep.subr.bf16.mxu0 %v3718
        %5423 = vmatpush1.bf16.msra.mxu0 %v3717
        %5424 = vmatprep.subr.bf16.mxu0 %v3722
        %5425 = vmatpush1.bf16.msra.mxu0 %v3721
        %5426 = vmatprep.subr.bf16.mxu0 %v3726
        %5427 = vmatpush1.bf16.msra.mxu0 %v3725
        %5428 = vmatprep.subr.bf16.mxu0 %v3730
        %5429 = vmatpush1.bf16.msra.mxu0 %v3729
        %5430 = vmatprep.subr.bf16.mxu0 %v3734
        %5431 = vmatpush1.bf16.msra.mxu0 %v3733
        %5432 = vmatprep.subr.bf16.mxu0 %v3738
        %5433 = vmatpush1.bf16.msra.mxu0 %v3737
        %5434 = vmatprep.subr.bf16.mxu0 %v3742
        %5435 = vmatpush1.bf16.msra.mxu0 %v3741
        %5436 = vmatprep.subr.bf16.mxu0 %v3746
        %5437 = vmatpush1.bf16.msra.mxu0 %v3745
        %5438 = vmatprep.subr.bf16.mxu0 %v3750
        %5439 = vmatpush1.bf16.msra.mxu0 %v3749
        %5440 = vmatprep.subr.bf16.mxu0 %v3754
        %5441 = vmatpush1.bf16.msra.mxu0 %v3753
        %5442 = vmatprep.subr.bf16.mxu0 %v3758
        %5443 = vmatpush1.bf16.msra.mxu0 %v3757
        %5444 = vmatprep.subr.bf16.mxu0 %v3762
        %5445 = vmatpush1.bf16.msra.mxu0 %v3761
        %5446 = vmatprep.subr.bf16.mxu0 %v3766
        %5447 = vmatpush1.bf16.msra.mxu0 %v3765
        %5448 = vmatprep.mubr.bf16.mxu0 %v1052
        %5449 = vmatmul.mubr.bf16.gmra.mrb[0].mxu0 %v1051
        %v5450 = vpop.f32.mrb[0].mxu0
        %v5451 = vadd.f32 %v5408, %v5450
        %v5452 = vpop.f32.mrb[0].mxu0
        %v5453 = vadd.f32 %v5410, %v5452
        %v5454 = vpop.f32.mrb[0].mxu0
        %v5455 = vadd.f32 %v5412, %v5454
        %v5456 = vpop.f32.mrb[0].mxu0
        %v5457 = vadd.f32 %v5414, %v5456
        %5458 = vdwg.mxu0
        %5459 = vmatprep.subr.bf16.mxu0 %v3770
        %5460 = vmatpush1.bf16.msra.mxu0 %v3769
        %5461 = vmatprep.subr.bf16.mxu0 %v3774
        %5462 = vmatpush1.bf16.msra.mxu0 %v3773
        %5463 = vmatprep.subr.bf16.mxu0 %v3778
        %5464 = vmatpush1.bf16.msra.mxu0 %v3777
        %5465 = vmatprep.subr.bf16.mxu0 %v3782
        %5466 = vmatpush1.bf16.msra.mxu0 %v3781
        %5467 = vmatprep.subr.bf16.mxu0 %v3786
        %5468 = vmatpush1.bf16.msra.mxu0 %v3785
        %5469 = vmatprep.subr.bf16.mxu0 %v3790
        %5470 = vmatpush1.bf16.msra.mxu0 %v3789
        %5471 = vmatprep.subr.bf16.mxu0 %v3794
        %5472 = vmatpush1.bf16.msra.mxu0 %v3793
        %5473 = vmatprep.subr.bf16.mxu0 %v3798
        %5474 = vmatpush1.bf16.msra.mxu0 %v3797
        %5475 = vmatprep.subr.bf16.mxu0 %v3802
        %5476 = vmatpush1.bf16.msra.mxu0 %v3801
        %5477 = vmatprep.subr.bf16.mxu0 %v3806
        %5478 = vmatpush1.bf16.msra.mxu0 %v3805
        %5479 = vmatprep.subr.bf16.mxu0 %v3810
        %5480 = vmatpush1.bf16.msra.mxu0 %v3809
        %5481 = vmatprep.subr.bf16.mxu0 %v3814
        %5482 = vmatpush1.bf16.msra.mxu0 %v3813
        %5483 = vmatprep.subr.bf16.mxu0 %v3818
        %5484 = vmatpush1.bf16.msra.mxu0 %v3817
        %5485 = vmatprep.subr.bf16.mxu0 %v3822
        %5486 = vmatpush1.bf16.msra.mxu0 %v3821
        %5487 = vmatprep.subr.bf16.mxu0 %v3826
        %5488 = vmatpush1.bf16.msra.mxu0 %v3825
        %5489 = vmatprep.subr.bf16.mxu0 %v3830
        %5490 = vmatpush1.bf16.msra.mxu0 %v3829
        %5491 = vmatprep.mubr.bf16.mxu0 %v1054
        %5492 = vmatmul.mubr.bf16.gmra.mrb[0].mxu0 %v1053
        %v5493 = vpop.f32.mrb[0].mxu0
        %v5494 = vadd.f32 %v5451, %v5493
        %v5495 = vpop.f32.mrb[0].mxu0
        %v5496 = vadd.f32 %v5453, %v5495
        %v5497 = vpop.f32.mrb[0].mxu0
        %v5498 = vadd.f32 %v5455, %v5497
        %v5499 = vpop.f32.mrb[0].mxu0
        %v5500 = vadd.f32 %v5457, %v5499
        %5501 = vdwg.mxu0
        %5502 = vmatprep.subr.bf16.mxu0 %v3834
        %5503 = vmatpush1.bf16.msra.mxu0 %v3833
        %5504 = vmatprep.subr.bf16.mxu0 %v3838
        %5505 = vmatpush1.bf16.msra.mxu0 %v3837
        %5506 = vmatprep.subr.bf16.mxu0 %v3842
        %5507 = vmatpush1.bf16.msra.mxu0 %v3841
        %5508 = vmatprep.subr.bf16.mxu0 %v3846
        %5509 = vmatpush1.bf16.msra.mxu0 %v3845
        %5510 = vmatprep.subr.bf16.mxu0 %v3850
        %5511 = vmatpush1.bf16.msra.mxu0 %v3849
        %5512 = vmatprep.subr.bf16.mxu0 %v3854
        %5513 = vmatpush1.bf16.msra.mxu0 %v3853
        %5514 = vmatprep.subr.bf16.mxu0 %v3858
        %5515 = vmatpush1.bf16.msra.mxu0 %v3857
        %5516 = vmatprep.subr.bf16.mxu0 %v3862
        %5517 = vmatpush1.bf16.msra.mxu0 %v3861
        %5518 = vmatprep.subr.bf16.mxu0 %v3866
        %5519 = vmatpush1.bf16.msra.mxu0 %v3865
        %5520 = vmatprep.subr.bf16.mxu0 %v3870
        %5521 = vmatpush1.bf16.msra.mxu0 %v3869
        %5522 = vmatprep.subr.bf16.mxu0 %v3874
        %5523 = vmatpush1.bf16.msra.mxu0 %v3873
        %5524 = vmatprep.subr.bf16.mxu0 %v3878
        %5525 = vmatpush1.bf16.msra.mxu0 %v3877
        %5526 = vmatprep.subr.bf16.mxu0 %v3882
        %5527 = vmatpush1.bf16.msra.mxu0 %v3881
        %5528 = vmatprep.subr.bf16.mxu0 %v3886
        %5529 = vmatpush1.bf16.msra.mxu0 %v3885
        %5530 = vmatprep.subr.bf16.mxu0 %v3890
        %5531 = vmatpush1.bf16.msra.mxu0 %v3889
        %5532 = vmatprep.subr.bf16.mxu0 %v3894
        %5533 = vmatpush1.bf16.msra.mxu0 %v3893
        %5534 = vmatprep.mubr.bf16.mxu0 %v1056
        %5535 = vmatmul.mubr.bf16.gmra.mrb[0].mxu0 %v1055
        %v5536 = vpop.f32.mrb[0].mxu0
        %v5537 = vadd.f32 %v5494, %v5536
        %v5538 = vpop.f32.mrb[0].mxu0
        %v5539 = vadd.f32 %v5496, %v5538
        %v5540 = vpop.f32.mrb[0].mxu0
        %v5541 = vadd.f32 %v5498, %v5540
        %v5542 = vpop.f32.mrb[0].mxu0
        %v5543 = vadd.f32 %v5500, %v5542
        %5544 = vdwg.mxu0
        %5545 = vst [vmem:[%s215] sm:$0xff] %v5064
        %5546 = vst [vmem:[%s215 + $0x8] sm:$0xff] %v5066
        %5547 = vst [vmem:[%s215 + $0x10] sm:$0xff] %v5537
        %5548 = vst [vmem:[%s215 + $0x18] sm:$0xff] %v5539
        %5549 = vst [vmem:[%s215 + $0x20] sm:$0xff] %v5068
        %5550 = vst [vmem:[%s215 + $0x28] sm:$0xff] %v5070
        %5551 = vst [vmem:[%s215 + $0x30] sm:$0xff] %v5541
        %5552 = vst [vmem:[%s215 + $0x38] sm:$0xff] %v5543
        %s5553 = sand.u32 %s97, 1
        %s5554 = scalar_lea.sflag [#allocation4], %s5553
        %s5555 = sand.u32 %s97, 1
        %s5556 = smul.addr %s5555, 64
        %s5557 = scalar_lea.vmem [#allocation8], %s5556
        // Predicated region
        $region45: #{tpu_custom_call.1} parent=31 // pred_check
          %p5558 = pneg %p107
        $region46: #{tpu_custom_call.1} parent=31 // pred_check_branch
          %5560 = sbr.rel (%p5558) target = $region48
        $region47: #{tpu_custom_call.1} parent=31 // pred_region
          %s5561 = smul.u32 4, %s21
          %s5563 = ssub.s32 1024, 1024
          %5564 = vsyncadd %s5554, %s5563
          %s5565 = smul.addr %s5561, 128
          %s5566 = scalar_lea.hbm %s3, %s5565
          %s5567 = sshll.u32 %s5557, 4
          %s5568 = int_to_ptr.vmem [resolvable:$true] %s5567
          %5573 = dma.vmem_to_hbm [thread:$0]  %s5568, 1024, %s5566, %s5554, 512, 1024, 32
        $region48: #{tpu_custom_call.1} parent=31 // pred_fallthru
          _
      $region32: #{tpu_custom_call.1} parent=5 // pred_fallthru
        _
      %p5574 = scmp.le.s32.totalorder 2, %s16
      // Predicated region
      $region49: #{tpu_custom_call.1} parent=5 // pred_check
        %p5575 = pneg %p5574
      $region50: #{tpu_custom_call.1} parent=5 // pred_check_branch
        %5577 = sbr.rel (%p5575) target = $region52
      $region51: #{tpu_custom_call.1} parent=5 // pred_region
        %s5578 = ssub.s32 %s16, 2
        // Predicated region
        $region53: #{tpu_custom_call.1} parent=51 // pred_check
          %p5579 = pneg %p113
        $region54: #{tpu_custom_call.1} parent=51 // pred_check_branch
          %5581 = sbr.rel (%p5579) target = $region56
        $region55: #{tpu_custom_call.1} parent=51 // pred_region
          %s5582 = sand.u32 %s98, 1
          %s5583 = scalar_lea.sflag [#allocation4], %s5582
          %s5584 = sand.u32 %s98, 1
          %s5585 = smul.addr %s5584, 64
          %s5586 = scalar_lea.vmem [#allocation8], %s5585
          %5587 = dma.done %s5583, 1024
        $region56: #{tpu_custom_call.1} parent=51 // pred_fallthru
          _
      $region52: #{tpu_custom_call.1} parent=5 // pred_fallthru
        _
    $region6: #{tpu_custom_call.1} parent=1 // loop_footer
      %s20 = sadd.s32 1, %s16
    $region7: #{tpu_custom_call.1} parent=1 // loop_footer_branch
      %15 = sbr.rel target = $region3
    $region8: #{tpu_custom_call.1} parent=1 // loop_exit
      _
    %5588 = vsyncpa [#allocation3], 1
    %s5589 = scalar_lea.sflag [#allocation3], 1
    %5590 = vsyncpa %s5589, 1
    %5591 = vsyncpa [#allocation6], 1
    %s5592 = scalar_lea.sflag [#allocation6], 1
    %5593 = vsyncpa %s5592, 1
    %5594 = vsyncpa [#allocation4], 1
    %s5595 = scalar_lea.sflag [#allocation4], 1
    %5596 = vsyncpa %s5595, 1

</llo_original>
